<compile_context>
chip_gen: v7x
topology: tpu7x:2x2x1
jax: 0.10.0
libtpu: 0.0.40
codegen_flags: <defaults>
</compile_context>

<pallas_src>
import math

import jax
import jax.numpy as jnp
from jax import lax
from jax.experimental import pallas as pl
from jax.experimental.pallas import tpu as pltpu


def _make_mha_kernel(n_heads: int, d: int, compute_dtype):
    d_head = d // n_heads

    def kernel(xq_ref, xkv_ref,
               wq_ref, bq_ref,
               wkv_ref, bkv_ref,
               wo_ref, bo_ref,
               out_ref,
               kv_ref, ctx_ref):
        # ---- K/V projection: computed once per batch element, reused across q-tiles ----
        @pl.when(pl.program_id(1) == 0)
        def _():
            xkv = xkv_ref[...].astype(compute_dtype)            # (Nkv, d)
            kv_ref[...] = (jnp.dot(xkv, wkv_ref[...],
                                   preferred_element_type=jnp.float32)
                           + bkv_ref[...]).astype(compute_dtype)  # (Nkv, 2d) = [K | V]

        # ---- Q projection for this q-tile (scale folded into W_q / b_q in wrapper) ----
        xq = xq_ref[...].astype(compute_dtype)                   # (block_q, d)
        qc = (jnp.dot(xq, wq_ref[...], preferred_element_type=jnp.float32)
              + bq_ref[...]).astype(compute_dtype)               # (block_q, d)

        # ---- per-head attention; context written into (block_q, d) scratch ----
        for h in range(n_heads):  # static python loop; n_heads is small & static
            lo = h * d_head
            qh = qc[:, lo:lo + d_head]                 # (block_q, d_head)
            kh = kv_ref[:, lo:lo + d_head]             # (Nkv,     d_head)
            vh = kv_ref[:, d + lo:d + lo + d_head]     # (Nkv,     d_head)

            # scores = qh @ kh^T without materializing a transpose (contract last dims)
            s = lax.dot_general(qh, kh, (((1,), (1,)), ((), ())),
                                preferred_element_type=jnp.float32)  # (block_q, Nkv) f32

            # numerically-stable softmax over the key axis (kept in f32)
            s = s - jnp.max(s, axis=-1, keepdims=True)
            p = jnp.exp(s)
            p = p * pl.reciprocal(jnp.sum(p, axis=-1, keepdims=True), approx=True)

            ho = jnp.dot(p.astype(compute_dtype), vh,
                         preferred_element_type=jnp.float32)         # (block_q, d_head)
            ctx_ref[:, lo:lo + d_head] = ho.astype(compute_dtype)

        # ---- single full-width output projection (contraction depth = d) ----
        out = jnp.dot(ctx_ref[...], wo_ref[...],
                      preferred_element_type=jnp.float32) + bo_ref[...]
        out_ref[...] = out.astype(out_ref.dtype)

    return kernel


def _run_pallas(kernel, xq_in, xkv_in, wq_t, bq_r, wkv_t, bkv_r, wo_t, bo_r, *,
                B, Nq, Nkv, d, block_q, compute_dtype, out_dtype,
                single_buffer_constants):
    if single_buffer_constants:
        const_kw = dict(pipeline_mode=pl.Buffered(1))
        w_buf = 1
    else:
        const_kw = {}
        w_buf = 2

    def const_spec(shape):
        return pl.BlockSpec(shape, lambda b, qi: (0,) * len(shape), **const_kw)

    xq_spec = pl.BlockSpec((pl.Squeezed(), block_q, d), lambda b, qi: (b, qi, 0))
    xkv_spec = pl.BlockSpec((pl.Squeezed(), Nkv, d), lambda b, qi: (b, 0, 0))
    out_spec = pl.BlockSpec((pl.Squeezed(), block_q, d), lambda b, qi: (b, qi, 0))

    # Explicit VMEM budget from the per-step footprint (+50% headroom), clamped to
    # [32 MiB, 64 MiB] so one setting fits v5e/v6e (128 MiB) and v7x (64 MiB / TC).
    isz_c = jnp.dtype(compute_dtype).itemsize
    isz_o = jnp.dtype(out_dtype).itemsize
    io_bytes = 2 * block_q * d * (isz_c + isz_o) + 2 * Nkv * d * isz_c   # dbl-buffered IO
    w_bytes = w_buf * (2 * d * d + d * 2 * d + 4 * d) * isz_c            # weights + biases
    scr_bytes = (Nkv * 2 * d + block_q * d) * isz_c                      # kv + ctx scratch
    tmp_bytes = (2 * block_q * d + Nkv * 2 * d + 3 * block_q * Nkv) * 4  # f32 temporaries
    vmem_limit = int(1.5 * (io_bytes + w_bytes + scr_bytes + tmp_bytes))
    vmem_limit = min(max(vmem_limit, 32 << 20), 64 << 20)

    return pl.pallas_call(
        kernel,
        out_shape=jax.ShapeDtypeStruct((B, Nq, d), out_dtype),
        grid_spec=pltpu.PrefetchScalarGridSpec(
            num_scalar_prefetch=0,
            grid=(B, Nq // block_q),
            in_specs=[
                xq_spec, xkv_spec,
                const_spec((d, d)),       # W_q  (pre-scaled, (in, out))
                const_spec((1, d)),       # b_q  (pre-scaled)
                const_spec((d, 2 * d)),   # fused [W_k | W_v]
                const_spec((1, 2 * d)),   # fused [b_k | b_v]
                const_spec((d, d)),       # W_out^T
                const_spec((1, d)),       # b_out
            ],
            out_specs=out_spec,
            scratch_shapes=[
                pltpu.VMEM((Nkv, 2 * d), compute_dtype),   # persistent [K|V] per batch
                pltpu.VMEM((block_q, d), compute_dtype),   # per-tile head context
            ]),
        compiler_params=pltpu.CompilerParams(
            # Batch axis "parallel" (megacore sharding); qi "arbitrary" so the per-batch
            # K/V scratch computed at qi==0 is valid for later q-tiles on the same core.
            dimension_semantics=("parallel", "arbitrary"),
            vmem_limit_bytes=vmem_limit),
    )(xq_in, xkv_in, wq_t, bq_r, wkv_t, bkv_r, wo_t, bo_r)


def multihead_attention(x_q, x_kv, params, n_heads: int, *,
                        block_q: int | None = None, use_bf16: bool = True):
    """x_q: (B, Nq, d), x_kv: (B, Nkv, d). Returns (B, Nq, d) in x_q.dtype."""
    B, Nq, d = x_q.shape
    Bk, Nkv, dk = x_kv.shape
    assert (B, d) == (Bk, dk)
    assert d % n_heads == 0
    d_head = d // n_heads
    scale = 1.0 / math.sqrt(d_head)

    if block_q is None:
        block_q = Nq
    assert Nq % block_q == 0, "block_q must divide Nq"

    compute_dtype = jnp.bfloat16 if use_bf16 else jnp.float32

    wq, bq = params["W_q"]
    wk, bk = params["W_k"]
    wv, bv = params["W_v"]
    wo, bo = params["W_out"]

    # Pre-transpose to (in, out); fold 1/sqrt(d_head) into W_q/b_q; fuse [W_k | W_v].
    wq_t = (wq.T * scale).astype(compute_dtype)
    wkv_t = jnp.concatenate([wk.T, wv.T], axis=1).astype(compute_dtype)   # (d, 2d)
    wo_t = wo.T.astype(compute_dtype)                                     # (d, d)

    f32 = jnp.float32
    bq_r = (bq * scale).reshape(1, d).astype(f32)
    bkv_r = jnp.concatenate([bk, bv]).reshape(1, 2 * d).astype(f32)
    bo_r = bo.reshape(1, d).astype(f32)

    # Cast activations in the wrapper: halves HBM->VMEM DMA bytes and VMEM residency.
    xq_in = x_q.astype(compute_dtype)
    xkv_in = x_kv.astype(compute_dtype)

    kernel = _make_mha_kernel(n_heads, d, compute_dtype)
    args = (xq_in, xkv_in, wq_t, bq_r, wkv_t, bkv_r, wo_t, bo_r)
    kw = dict(B=B, Nq=Nq, Nkv=Nkv, d=d, block_q=block_q,
              compute_dtype=compute_dtype, out_dtype=x_q.dtype)

    try:
        return _run_pallas(kernel, *args, **kw, single_buffer_constants=True)
    except Exception:
        # pipeline_mode=pl.Buffered(1) not accepted on this jax version; fall back to
        # default double-buffered constant blocks (identical results, more VMEM).
        return _run_pallas(kernel, *args, **kw, single_buffer_constants=False)


def init_params(key, d: int):
    """Deterministic init mirroring the module shapes.

    W_q/W_k/W_v: xavier_uniform with gain 1/sqrt(2), zero bias.
    W_out: default uniform init, zero bias.
    All weights are (out_features, in_features), PyTorch-style.
    """
    gain = 1.0 / math.sqrt(2.0)
    limit_xavier = gain * math.sqrt(6.0 / (d + d))
    limit_default = 1.0 / math.sqrt(d)

    kq, kk, kv, ko = jax.random.split(key, 4)

    def xavier(k):
        return jax.random.uniform(k, (d, d), jnp.float32,
                                  minval=-limit_xavier, maxval=limit_xavier)

    wq = xavier(kq)
    wk = xavier(kk)
    wv = xavier(kv)
    wo = jax.random.uniform(ko, (d, d), jnp.float32,
                            minval=-limit_default, maxval=limit_default)
    zb = jnp.zeros((d,), jnp.float32)
    return {
        "W_q": (wq, zb),
        "W_k": (wk, zb),
        "W_v": (wv, zb),
        "W_out": (wo, zb),
    }


def reference_mha(x_q, x_kv, params, n_heads: int):
    """Pure-JAX reference replicating the PyTorch forward (no compression, no dropout)."""
    d = x_q.shape[-1]
    d_head = d // n_heads

    def linear(x, wb):
        w, b = wb
        return x @ w.T + b

    q = linear(x_q, params["W_q"])
    k = linear(x_kv, params["W_k"])
    v = linear(x_kv, params["W_v"])

    def reshape(x):
        B, N, _ = x.shape
        return x.reshape(B, N, n_heads, d_head).transpose(0, 2, 1, 3).reshape(
            B * n_heads, N, d_head)

    B, Nq, _ = q.shape
    q, k, v = reshape(q), reshape(k), reshape(v)
    att = jax.nn.softmax(q @ k.transpose(0, 2, 1) / math.sqrt(d_head), axis=-1)
    x = att @ v
    x = x.reshape(B, n_heads, Nq, d_head).transpose(0, 2, 1, 3).reshape(B, Nq, d)
    return linear(x, params["W_out"])


if __name__ == "__main__":
    # Small demo shapes; Nq=16 with block_q=8 exercises the 2-D (batch, q-tile) grid and
    # the "compute K/V once per batch, reuse across q-tiles" path.
    # NOTE: production shapes should keep d and d_head lane-dense (multiples of 128).
    B, Nq, Nkv, d, n_heads = 2, 16, 8, 32, 4
    block_q = 8

    key = jax.random.PRNGKey(0)
    kx, kkv, kp = jax.random.split(key, 3)
    x_q = jax.random.normal(kx, (B, Nq, d), jnp.float32)
    x_kv = jax.random.normal(kkv, (B, Nkv, d), jnp.float32)
    params = init_params(kp, d)

    ref = reference_mha(x_q, x_kv, params, n_heads)

    # f32-operand path (tight check; tolerance covers the approx EUP reciprocal).
    out_f32 = multihead_attention(x_q, x_kv, params, n_heads,
                                  block_q=block_q, use_bf16=False)
    out_f32 = jax.block_until_ready(out_f32)
    assert out_f32.shape == (B, Nq, d)
    assert jnp.allclose(out_f32, ref, atol=1e-2, rtol=1e-2), "f32 path mismatch vs reference"

    # bf16-MXU path with f32 accumulation (production fast path; looser tolerance).
    out_bf16 = multihead_attention(x_q, x_kv, params, n_heads,
                                   block_q=block_q, use_bf16=True)
    out_bf16 = jax.block_until_ready(out_bf16)
    assert out_bf16.shape == (B, Nq, d)
    assert jnp.allclose(out_bf16, ref, atol=7e-2, rtol=7e-2), "bf16 path mismatch vs reference"

    print("KERNEL_OK")
</pallas_src>

<mosaic_0001>
module attributes {stable_mosaic.version = 11 : i64} {
  func.func @kernel(%arg0: i32, %arg1: i32, %arg2: memref<1x8x32xf32, #tpu.memory_space<vmem>>, %arg3: memref<1x8x32xf32, #tpu.memory_space<vmem>>, %arg4: memref<32x32xf32, #tpu.memory_space<vmem>>, %arg5: memref<1x32xf32, #tpu.memory_space<vmem>>, %arg6: memref<32x64xf32, #tpu.memory_space<vmem>>, %arg7: memref<1x64xf32, #tpu.memory_space<vmem>>, %arg8: memref<32x32xf32, #tpu.memory_space<vmem>>, %arg9: memref<1x32xf32, #tpu.memory_space<vmem>>, %arg10: memref<1x8x32xf32, #tpu.memory_space<vmem>>, %arg11: memref<8x64xf32, #tpu.memory_space<vmem>>, %arg12: memref<8x32xf32, #tpu.memory_space<vmem>>) attributes {dimension_semantics = [#tpu.dimension_semantics<parallel>, #tpu.dimension_semantics<arbitrary>], iteration_bounds = array<i64: 2, 2>, scalar_prefetch = 0 : i64, scratch_operands = 2 : i64, tpu.core_type = #tpu.core_type<tc>, window_params = [{transform_indices = @transform_0, window_bounds = array<i64: 1, 8, 32>}, {transform_indices = @transform_1, window_bounds = array<i64: 1, 8, 32>}, {pipeline_mode = #tpu.pipeline_mode<synchronous>, transform_indices = @transform_2, window_bounds = array<i64: 32, 32>}, {pipeline_mode = #tpu.pipeline_mode<synchronous>, transform_indices = @transform_3, window_bounds = array<i64: 1, 32>}, {pipeline_mode = #tpu.pipeline_mode<synchronous>, transform_indices = @transform_4, window_bounds = array<i64: 32, 64>}, {pipeline_mode = #tpu.pipeline_mode<synchronous>, transform_indices = @transform_5, window_bounds = array<i64: 1, 64>}, {pipeline_mode = #tpu.pipeline_mode<synchronous>, transform_indices = @transform_6, window_bounds = array<i64: 32, 32>}, {pipeline_mode = #tpu.pipeline_mode<synchronous>, transform_indices = @transform_7, window_bounds = array<i64: 1, 32>}, {transform_indices = @transform_8, window_bounds = array<i64: 1, 8, 32>}]} {
    %c0_i32 = arith.constant 0 : i32
    %0 = arith.cmpi eq, %arg1, %c0_i32 : i32
    %1 = arith.extui %0 : i1 to i32
    %c0_i32_0 = arith.constant 0 : i32
    %2 = arith.cmpi ne, %1, %c0_i32_0 : i32
    scf.if %2 {
      %c0_50 = arith.constant 0 : index
      %c0_51 = arith.constant 0 : index
      %c0_52 = arith.constant 0 : index
      %83 = vector.load %arg3[%c0_50, %c0_51, %c0_52] : memref<1x8x32xf32, #tpu.memory_space<vmem>>, vector<1x8x32xf32>
      %84 = vector.shape_cast %83 : vector<1x8x32xf32> to vector<8x32xf32>
      %c0_53 = arith.constant 0 : index
      %c0_54 = arith.constant 0 : index
      %85 = vector.load %arg6[%c0_53, %c0_54] : memref<32x64xf32, #tpu.memory_space<vmem>>, vector<32x64xf32>
      %cst_55 = arith.constant dense<0.000000e+00> : vector<8x64xf32>
      %86 = tpu.matmul %84, %85, %cst_55 {dimension_numbers = #tpu.dot_dimension_numbers<[1], [0], [0], [1], [0, 0, 1, 1], [], []>} : vector<8x32xf32>, vector<32x64xf32>, vector<8x64xf32> -> vector<8x64xf32>
      %c0_56 = arith.constant 0 : index
      %c0_57 = arith.constant 0 : index
      %87 = vector.load %arg7[%c0_56, %c0_57] : memref<1x64xf32, #tpu.memory_space<vmem>>, vector<1x64xf32>
      %88 = vector.broadcast %87 : vector<1x64xf32> to vector<8x64xf32>
      %89 = arith.addf %86, %88 : vector<8x64xf32>
      %c0_58 = arith.constant 0 : index
      %c0_59 = arith.constant 0 : index
      %90 = vector.load %arg11[%c0_58, %c0_59] : memref<8x64xf32, #tpu.memory_space<vmem>>, vector<8x64xf32>
      tpu.vector_store %arg11[%c0_58, %c0_59], %89 {strides = array<i32>} : memref<8x64xf32, #tpu.memory_space<vmem>>, vector<8x64xf32>,
    } else {
    }
    %c0 = arith.constant 0 : index
    %c0_1 = arith.constant 0 : index
    %c0_2 = arith.constant 0 : index
    %3 = vector.load %arg2[%c0, %c0_1, %c0_2] : memref<1x8x32xf32, #tpu.memory_space<vmem>>, vector<1x8x32xf32>
    %4 = vector.shape_cast %3 : vector<1x8x32xf32> to vector<8x32xf32>
    %c0_3 = arith.constant 0 : index
    %c0_4 = arith.constant 0 : index
    %5 = vector.load %arg4[%c0_3, %c0_4] : memref<32x32xf32, #tpu.memory_space<vmem>>, vector<32x32xf32>
    %cst = arith.constant dense<0.000000e+00> : vector<8x32xf32>
    %6 = tpu.matmul %4, %5, %cst {dimension_numbers = #tpu.dot_dimension_numbers<[1], [0], [0], [1], [0, 0, 1, 1], [], []>} : vector<8x32xf32>, vector<32x32xf32>, vector<8x32xf32> -> vector<8x32xf32>
    %c0_5 = arith.constant 0 : index
    %c0_6 = arith.constant 0 : index
    %7 = vector.load %arg5[%c0_5, %c0_6] : memref<1x32xf32, #tpu.memory_space<vmem>>, vector<1x32xf32>
    %8 = vector.broadcast %7 : vector<1x32xf32> to vector<8x32xf32>
    %9 = arith.addf %6, %8 : vector<8x32xf32>
    %10 = vector.extract_strided_slice %9 {offsets = [0, 0], sizes = [8, 8], strides = [1, 1]} : vector<8x32xf32> to vector<8x8xf32>
    %c0_7 = arith.constant 0 : index
    %c0_8 = arith.constant 0 : index
    %11 = vector.load %arg11[%c0_7, %c0_8] : memref<8x64xf32, #tpu.memory_space<vmem>>, vector<8x8xf32>
    %c0_9 = arith.constant 0 : index
    %c32 = arith.constant 32 : index
    %12 = vector.load %arg11[%c0_9, %c32] : memref<8x64xf32, #tpu.memory_space<vmem>>, vector<8x8xf32>
    %cst_10 = arith.constant dense<0.000000e+00> : vector<8x8xf32>
    %13 = tpu.matmul %10, %11, %cst_10 {dimension_numbers = #tpu.dot_dimension_numbers<[1], [1], [0], [0], [0, 0, 1, 0], [], []>} : vector<8x8xf32>, vector<8x8xf32>, vector<8x8xf32> -> vector<8x8xf32>
    %cst_11 = arith.constant dense<0xFF800000> : vector<8xf32>
    %14 = vector.multi_reduction <maximumf>, %13, %cst_11 [1] : vector<8x8xf32> to vector<8xf32>
    %15 = vector.shape_cast %14 : vector<8xf32> to vector<8x1xf32>
    %16 = vector.broadcast %15 : vector<8x1xf32> to vector<8x8xf32>
    %17 = arith.subf %13, %16 : vector<8x8xf32>
    %18 = math.exp %17 : vector<8x8xf32>
    %cst_12 = arith.constant dense<0.000000e+00> : vector<8xf32>
    %19 = vector.multi_reduction <add>, %18, %cst_12 [1] : vector<8x8xf32> to vector<8xf32>
    %20 = vector.shape_cast %19 : vector<8xf32> to vector<8x1xf32>
    %21 = tpu.reciprocal %20 {approx = true} : vector<8x1xf32> -> vector<8x1xf32>
    %22 = vector.broadcast %21 : vector<8x1xf32> to vector<8x8xf32>
    %23 = arith.mulf %18, %22 : vector<8x8xf32>
    %cst_13 = arith.constant dense<0.000000e+00> : vector<8x8xf32>
    %24 = tpu.matmul %23, %12, %cst_13 {dimension_numbers = #tpu.dot_dimension_numbers<[1], [0], [0], [1], [0, 0, 1, 1], [], []>} : vector<8x8xf32>, vector<8x8xf32>, vector<8x8xf32> -> vector<8x8xf32>
    %c0_14 = arith.constant 0 : index
    %c0_15 = arith.constant 0 : index
    %25 = vector.load %arg12[%c0_14, %c0_15] : memref<8x32xf32, #tpu.memory_space<vmem>>, vector<8x8xf32>
    tpu.vector_store %arg12[%c0_14, %c0_15], %24 {strides = array<i32>} : memref<8x32xf32, #tpu.memory_space<vmem>>, vector<8x8xf32>,
    %26 = vector.extract_strided_slice %9 {offsets = [0, 8], sizes = [8, 8], strides = [1, 1]} : vector<8x32xf32> to vector<8x8xf32>
    %c0_16 = arith.constant 0 : index
    %c8 = arith.constant 8 : index
    %27 = vector.load %arg11[%c0_16, %c8] : memref<8x64xf32, #tpu.memory_space<vmem>>, vector<8x8xf32>
    %c0_17 = arith.constant 0 : index
    %c40 = arith.constant 40 : index
    %28 = vector.load %arg11[%c0_17, %c40] : memref<8x64xf32, #tpu.memory_space<vmem>>, vector<8x8xf32>
    %cst_18 = arith.constant dense<0.000000e+00> : vector<8x8xf32>
    %29 = tpu.matmul %26, %27, %cst_18 {dimension_numbers = #tpu.dot_dimension_numbers<[1], [1], [0], [0], [0, 0, 1, 0], [], []>} : vector<8x8xf32>, vector<8x8xf32>, vector<8x8xf32> -> vector<8x8xf32>
    %cst_19 = arith.constant dense<0xFF800000> : vector<8xf32>
    %30 = vector.multi_reduction <maximumf>, %29, %cst_19 [1] : vector<8x8xf32> to vector<8xf32>
    %31 = vector.shape_cast %30 : vector<8xf32> to vector<8x1xf32>
    %32 = vector.broadcast %31 : vector<8x1xf32> to vector<8x8xf32>
    %33 = arith.subf %29, %32 : vector<8x8xf32>
    %34 = math.exp %33 : vector<8x8xf32>
    %cst_20 = arith.constant dense<0.000000e+00> : vector<8xf32>
    %35 = vector.multi_reduction <add>, %34, %cst_20 [1] : vector<8x8xf32> to vector<8xf32>
    %36 = vector.shape_cast %35 : vector<8xf32> to vector<8x1xf32>
    %37 = tpu.reciprocal %36 {approx = true} : vector<8x1xf32> -> vector<8x1xf32>
    %38 = vector.broadcast %37 : vector<8x1xf32> to vector<8x8xf32>
    %39 = arith.mulf %34, %38 : vector<8x8xf32>
    %cst_21 = arith.constant dense<0.000000e+00> : vector<8x8xf32>
    %40 = tpu.matmul %39, %28, %cst_21 {dimension_numbers = #tpu.dot_dimension_numbers<[1], [0], [0], [1], [0, 0, 1, 1], [], []>} : vector<8x8xf32>, vector<8x8xf32>, vector<8x8xf32> -> vector<8x8xf32>
    %c0_22 = arith.constant 0 : index
    %c8_23 = arith.constant 8 : index
    %41 = vector.load %arg12[%c0_22, %c8_23] : memref<8x32xf32, #tpu.memory_space<vmem>>, vector<8x8xf32>
    tpu.vector_store %arg12[%c0_22, %c8_23], %40 {strides = array<i32>} : memref<8x32xf32, #tpu.memory_space<vmem>>, vector<8x8xf32>,
    %42 = vector.extract_strided_slice %9 {offsets = [0, 16], sizes = [8, 8], strides = [1, 1]} : vector<8x32xf32> to vector<8x8xf32>
    %c0_24 = arith.constant 0 : index
    %c16 = arith.constant 16 : index
    %43 = vector.load %arg11[%c0_24, %c16] : memref<8x64xf32, #tpu.memory_space<vmem>>, vector<8x8xf32>
    %c0_25 = arith.constant 0 : index
    %c48 = arith.constant 48 : index
    %44 = vector.load %arg11[%c0_25, %c48] : memref<8x64xf32, #tpu.memory_space<vmem>>, vector<8x8xf32>
    %cst_26 = arith.constant dense<0.000000e+00> : vector<8x8xf32>
    %45 = tpu.matmul %42, %43, %cst_26 {dimension_numbers = #tpu.dot_dimension_numbers<[1], [1], [0], [0], [0, 0, 1, 0], [], []>} : vector<8x8xf32>, vector<8x8xf32>, vector<8x8xf32> -> vector<8x8xf32>
    %cst_27 = arith.constant dense<0xFF800000> : vector<8xf32>
    %46 = vector.multi_reduction <maximumf>, %45, %cst_27 [1] : vector<8x8xf32> to vector<8xf32>
    %47 = vector.shape_cast %46 : vector<8xf32> to vector<8x1xf32>
    %48 = vector.broadcast %47 : vector<8x1xf32> to vector<8x8xf32>
    %49 = arith.subf %45, %48 : vector<8x8xf32>
    %50 = math.exp %49 : vector<8x8xf32>
    %cst_28 = arith.constant dense<0.000000e+00> : vector<8xf32>
    %51 = vector.multi_reduction <add>, %50, %cst_28 [1] : vector<8x8xf32> to vector<8xf32>
    %52 = vector.shape_cast %51 : vector<8xf32> to vector<8x1xf32>
    %53 = tpu.reciprocal %52 {approx = true} : vector<8x1xf32> -> vector<8x1xf32>
    %54 = vector.broadcast %53 : vector<8x1xf32> to vector<8x8xf32>
    %55 = arith.mulf %50, %54 : vector<8x8xf32>
    %cst_29 = arith.constant dense<0.000000e+00> : vector<8x8xf32>
    %56 = tpu.matmul %55, %44, %cst_29 {dimension_numbers = #tpu.dot_dimension_numbers<[1], [0], [0], [1], [0, 0, 1, 1], [], []>} : vector<8x8xf32>, vector<8x8xf32>, vector<8x8xf32> -> vector<8x8xf32>
    %c0_30 = arith.constant 0 : index
    %c16_31 = arith.constant 16 : index
    %57 = vector.load %arg12[%c0_30, %c16_31] : memref<8x32xf32, #tpu.memory_space<vmem>>, vector<8x8xf32>
    tpu.vector_store %arg12[%c0_30, %c16_31], %56 {strides = array<i32>} : memref<8x32xf32, #tpu.memory_space<vmem>>, vector<8x8xf32>,
    %58 = vector.extract_strided_slice %9 {offsets = [0, 24], sizes = [8, 8], strides = [1, 1]} : vector<8x32xf32> to vector<8x8xf32>
    %c0_32 = arith.constant 0 : index
    %c24 = arith.constant 24 : index
    %59 = vector.load %arg11[%c0_32, %c24] : memref<8x64xf32, #tpu.memory_space<vmem>>, vector<8x8xf32>
    %c0_33 = arith.constant 0 : index
    %c56 = arith.constant 56 : index
    %60 = vector.load %arg11[%c0_33, %c56] : memref<8x64xf32, #tpu.memory_space<vmem>>, vector<8x8xf32>
    %cst_34 = arith.constant dense<0.000000e+00> : vector<8x8xf32>
    %61 = tpu.matmul %58, %59, %cst_34 {dimension_numbers = #tpu.dot_dimension_numbers<[1], [1], [0], [0], [0, 0, 1, 0], [], []>} : vector<8x8xf32>, vector<8x8xf32>, vector<8x8xf32> -> vector<8x8xf32>
    %cst_35 = arith.constant dense<0xFF800000> : vector<8xf32>
    %62 = vector.multi_reduction <maximumf>, %61, %cst_35 [1] : vector<8x8xf32> to vector<8xf32>
    %63 = vector.shape_cast %62 : vector<8xf32> to vector<8x1xf32>
    %64 = vector.broadcast %63 : vector<8x1xf32> to vector<8x8xf32>
    %65 = arith.subf %61, %64 : vector<8x8xf32>
    %66 = math.exp %65 : vector<8x8xf32>
    %cst_36 = arith.constant dense<0.000000e+00> : vector<8xf32>
    %67 = vector.multi_reduction <add>, %66, %cst_36 [1] : vector<8x8xf32> to vector<8xf32>
    %68 = vector.shape_cast %67 : vector<8xf32> to vector<8x1xf32>
    %69 = tpu.reciprocal %68 {approx = true} : vector<8x1xf32> -> vector<8x1xf32>
    %70 = vector.broadcast %69 : vector<8x1xf32> to vector<8x8xf32>
    %71 = arith.mulf %66, %70 : vector<8x8xf32>
    %cst_37 = arith.constant dense<0.000000e+00> : vector<8x8xf32>
    %72 = tpu.matmul %71, %60, %cst_37 {dimension_numbers = #tpu.dot_dimension_numbers<[1], [0], [0], [1], [0, 0, 1, 1], [], []>} : vector<8x8xf32>, vector<8x8xf32>, vector<8x8xf32> -> vector<8x8xf32>
    %c0_38 = arith.constant 0 : index
    %c24_39 = arith.constant 24 : index
    %73 = vector.load %arg12[%c0_38, %c24_39] : memref<8x32xf32, #tpu.memory_space<vmem>>, vector<8x8xf32>
    tpu.vector_store %arg12[%c0_38, %c24_39], %72 {strides = array<i32>} : memref<8x32xf32, #tpu.memory_space<vmem>>, vector<8x8xf32>,
    %c0_40 = arith.constant 0 : index
    %c0_41 = arith.constant 0 : index
    %74 = vector.load %arg12[%c0_40, %c0_41] : memref<8x32xf32, #tpu.memory_space<vmem>>, vector<8x32xf32>
    %c0_42 = arith.constant 0 : index
    %c0_43 = arith.constant 0 : index
    %75 = vector.load %arg8[%c0_42, %c0_43] : memref<32x32xf32, #tpu.memory_space<vmem>>, vector<32x32xf32>
    %cst_44 = arith.constant dense<0.000000e+00> : vector<8x32xf32>
    %76 = tpu.matmul %74, %75, %cst_44 {dimension_numbers = #tpu.dot_dimension_numbers<[1], [0], [0], [1], [0, 0, 1, 1], [], []>} : vector<8x32xf32>, vector<32x32xf32>, vector<8x32xf32> -> vector<8x32xf32>
    %c0_45 = arith.constant 0 : index
    %c0_46 = arith.constant 0 : index
    %77 = vector.load %arg9[%c0_45, %c0_46] : memref<1x32xf32, #tpu.memory_space<vmem>>, vector<1x32xf32>
    %78 = vector.broadcast %77 : vector<1x32xf32> to vector<8x32xf32>
    %79 = arith.addf %76, %78 : vector<8x32xf32>
    %c0_47 = arith.constant 0 : index
    %c0_48 = arith.constant 0 : index
    %c0_49 = arith.constant 0 : index
    %80 = vector.load %arg10[%c0_47, %c0_48, %c0_49] : memref<1x8x32xf32, #tpu.memory_space<vmem>>, vector<1x8x32xf32>
    %81 = vector.shape_cast %80 : vector<1x8x32xf32> to vector<8x32xf32>
    %82 = vector.shape_cast %79 : vector<8x32xf32> to vector<1x8x32xf32>
    tpu.vector_store %arg10[%c0_47, %c0_48, %c0_49], %82 {strides = array<i32>} : memref<1x8x32xf32, #tpu.memory_space<vmem>>, vector<1x8x32xf32>,
    return
  }
  func.func @transform_0(%arg0: i32, %arg1: i32) -> (i32, i32, i32) {
    %c0_i32 = arith.constant 0 : i32
    %c0_i32_0 = arith.constant 0 : i32
    return %arg0, %arg1, %c0_i32 : i32, i32, i32
  }
  func.func @transform_1(%arg0: i32, %arg1: i32) -> (i32, i32, i32) {
    %c0_i32 = arith.constant 0 : i32
    %c0_i32_0 = arith.constant 0 : i32
    %c0_i32_1 = arith.constant 0 : i32
    return %arg0, %c0_i32, %c0_i32_0 : i32, i32, i32
  }
  func.func @transform_2(%arg0: i32, %arg1: i32) -> (i32, i32) {
    %c0_i32 = arith.constant 0 : i32
    %c0_i32_0 = arith.constant 0 : i32
    %c0_i32_1 = arith.constant 0 : i32
    return %c0_i32, %c0_i32_0 : i32, i32
  }
  func.func @transform_3(%arg0: i32, %arg1: i32) -> (i32, i32) {
    %c0_i32 = arith.constant 0 : i32
    %c0_i32_0 = arith.constant 0 : i32
    %c0_i32_1 = arith.constant 0 : i32
    return %c0_i32, %c0_i32_0 : i32, i32
  }
  func.func @transform_4(%arg0: i32, %arg1: i32) -> (i32, i32) {
    %c0_i32 = arith.constant 0 : i32
    %c0_i32_0 = arith.constant 0 : i32
    %c0_i32_1 = arith.constant 0 : i32
    return %c0_i32, %c0_i32_0 : i32, i32
  }
  func.func @transform_5(%arg0: i32, %arg1: i32) -> (i32, i32) {
    %c0_i32 = arith.constant 0 : i32
    %c0_i32_0 = arith.constant 0 : i32
    %c0_i32_1 = arith.constant 0 : i32
    return %c0_i32, %c0_i32_0 : i32, i32
  }
  func.func @transform_6(%arg0: i32, %arg1: i32) -> (i32, i32) {
    %c0_i32 = arith.constant 0 : i32
    %c0_i32_0 = arith.constant 0 : i32
    %c0_i32_1 = arith.constant 0 : i32
    return %c0_i32, %c0_i32_0 : i32, i32
  }
  func.func @transform_7(%arg0: i32, %arg1: i32) -> (i32, i32) {
    %c0_i32 = arith.constant 0 : i32
    %c0_i32_0 = arith.constant 0 : i32
    %c0_i32_1 = arith.constant 0 : i32
    return %c0_i32, %c0_i32_0 : i32, i32
  }
  func.func @transform_8(%arg0: i32, %arg1: i32) -> (i32, i32, i32) {
    %c0_i32 = arith.constant 0 : i32
    %c0_i32_0 = arith.constant 0 : i32
    return %arg0, %arg1, %c0_i32 : i32, i32, i32
  }
}

module attributes {stable_mosaic.version = 11 : i64} {
  func.func @kernel(%arg0: i32, %arg1: i32, %arg2: memref<1x8x32xf32, #tpu.memory_space<vmem>>, %arg3: memref<1x8x32xf32, #tpu.memory_space<vmem>>, %arg4: memref<32x32xf32, #tpu.memory_space<vmem>>, %arg5: memref<1x32xf32, #tpu.memory_space<vmem>>, %arg6: memref<32x64xf32, #tpu.memory_space<vmem>>, %arg7: memref<1x64xf32, #tpu.memory_space<vmem>>, %arg8: memref<32x32xf32, #tpu.memory_space<vmem>>, %arg9: memref<1x32xf32, #tpu.memory_space<vmem>>, %arg10: memref<1x8x32xf32, #tpu.memory_space<vmem>>, %arg11: memref<8x64xf32, #tpu.memory_space<vmem>>, %arg12: memref<8x32xf32, #tpu.memory_space<vmem>>) attributes {dimension_semantics = [#tpu.dimension_semantics<parallel>, #tpu.dimension_semantics<arbitrary>], iteration_bounds = array<i64: 2, 2>, scalar_prefetch = 0 : i64, scratch_operands = 2 : i64, tpu.core_type = #tpu.core_type<tc>, window_params = [{transform_indices = @transform_0, window_bounds = array<i64: 1, 8, 32>}, {transform_indices = @transform_1, window_bounds = array<i64: 1, 8, 32>}, {pipeline_mode = #tpu.pipeline_mode<synchronous>, transform_indices = @transform_2, window_bounds = array<i64: 32, 32>}, {pipeline_mode = #tpu.pipeline_mode<synchronous>, transform_indices = @transform_3, window_bounds = array<i64: 1, 32>}, {pipeline_mode = #tpu.pipeline_mode<synchronous>, transform_indices = @transform_4, window_bounds = array<i64: 32, 64>}, {pipeline_mode = #tpu.pipeline_mode<synchronous>, transform_indices = @transform_5, window_bounds = array<i64: 1, 64>}, {pipeline_mode = #tpu.pipeline_mode<synchronous>, transform_indices = @transform_6, window_bounds = array<i64: 32, 32>}, {pipeline_mode = #tpu.pipeline_mode<synchronous>, transform_indices = @transform_7, window_bounds = array<i64: 1, 32>}, {transform_indices = @transform_8, window_bounds = array<i64: 1, 8, 32>}]} {
    %c0_i32 = arith.constant 0 : i32
    %0 = arith.cmpi eq, %arg1, %c0_i32 : i32
    %1 = arith.extui %0 : i1 to i32
    %c0_i32_0 = arith.constant 0 : i32
    %2 = arith.cmpi ne, %1, %c0_i32_0 : i32
    scf.if %2 {
      %c0_50 = arith.constant 0 : index
      %c0_51 = arith.constant 0 : index
      %c0_52 = arith.constant 0 : index
      %83 = vector.load %arg3[%c0_50, %c0_51, %c0_52] : memref<1x8x32xf32, #tpu.memory_space<vmem>>, vector<1x8x32xf32>
      %84 = vector.shape_cast %83 : vector<1x8x32xf32> to vector<8x32xf32>
      %c0_53 = arith.constant 0 : index
      %c0_54 = arith.constant 0 : index
      %85 = vector.load %arg6[%c0_53, %c0_54] : memref<32x64xf32, #tpu.memory_space<vmem>>, vector<32x64xf32>
      %cst_55 = arith.constant dense<0.000000e+00> : vector<8x64xf32>
      %86 = tpu.matmul %84, %85, %cst_55 {dimension_numbers = #tpu.dot_dimension_numbers<[1], [0], [0], [1], [0, 0, 1, 1], [], []>} : vector<8x32xf32>, vector<32x64xf32>, vector<8x64xf32> -> vector<8x64xf32>
      %c0_56 = arith.constant 0 : index
      %c0_57 = arith.constant 0 : index
      %87 = vector.load %arg7[%c0_56, %c0_57] : memref<1x64xf32, #tpu.memory_space<vmem>>, vector<1x64xf32>
      %88 = vector.broadcast %87 : vector<1x64xf32> to vector<8x64xf32>
      %89 = arith.addf %86, %88 : vector<8x64xf32>
      %c0_58 = arith.constant 0 : index
      %c0_59 = arith.constant 0 : index
      %90 = vector.load %arg11[%c0_58, %c0_59] : memref<8x64xf32, #tpu.memory_space<vmem>>, vector<8x64xf32>
      tpu.vector_store %arg11[%c0_58, %c0_59], %89 {strides = array<i32>} : memref<8x64xf32, #tpu.memory_space<vmem>>, vector<8x64xf32>,
    } else {
    }
    %c0 = arith.constant 0 : index
    %c0_1 = arith.constant 0 : index
    %c0_2 = arith.constant 0 : index
    %3 = vector.load %arg2[%c0, %c0_1, %c0_2] : memref<1x8x32xf32, #tpu.memory_space<vmem>>, vector<1x8x32xf32>
    %4 = vector.shape_cast %3 : vector<1x8x32xf32> to vector<8x32xf32>
    %c0_3 = arith.constant 0 : index
    %c0_4 = arith.constant 0 : index
    %5 = vector.load %arg4[%c0_3, %c0_4] : memref<32x32xf32, #tpu.memory_space<vmem>>, vector<32x32xf32>
    %cst = arith.constant dense<0.000000e+00> : vector<8x32xf32>
    %6 = tpu.matmul %4, %5, %cst {dimension_numbers = #tpu.dot_dimension_numbers<[1], [0], [0], [1], [0, 0, 1, 1], [], []>} : vector<8x32xf32>, vector<32x32xf32>, vector<8x32xf32> -> vector<8x32xf32>
    %c0_5 = arith.constant 0 : index
    %c0_6 = arith.constant 0 : index
    %7 = vector.load %arg5[%c0_5, %c0_6] : memref<1x32xf32, #tpu.memory_space<vmem>>, vector<1x32xf32>
    %8 = vector.broadcast %7 : vector<1x32xf32> to vector<8x32xf32>
    %9 = arith.addf %6, %8 : vector<8x32xf32>
    %10 = vector.extract_strided_slice %9 {offsets = [0, 0], sizes = [8, 8], strides = [1, 1]} : vector<8x32xf32> to vector<8x8xf32>
    %c0_7 = arith.constant 0 : index
    %c0_8 = arith.constant 0 : index
    %11 = vector.load %arg11[%c0_7, %c0_8] : memref<8x64xf32, #tpu.memory_space<vmem>>, vector<8x8xf32>
    %c0_9 = arith.constant 0 : index
    %c32 = arith.constant 32 : index
    %12 = vector.load %arg11[%c0_9, %c32] : memref<8x64xf32, #tpu.memory_space<vmem>>, vector<8x8xf32>
    %cst_10 = arith.constant dense<0.000000e+00> : vector<8x8xf32>
    %13 = tpu.matmul %10, %11, %cst_10 {dimension_numbers = #tpu.dot_dimension_numbers<[1], [1], [0], [0], [0, 0, 1, 0], [], []>} : vector<8x8xf32>, vector<8x8xf32>, vector<8x8xf32> -> vector<8x8xf32>
    %cst_11 = arith.constant dense<0xFF800000> : vector<8xf32>
    %14 = vector.multi_reduction <maximumf>, %13, %cst_11 [1] : vector<8x8xf32> to vector<8xf32>
    %15 = vector.shape_cast %14 : vector<8xf32> to vector<8x1xf32>
    %16 = vector.broadcast %15 : vector<8x1xf32> to vector<8x8xf32>
    %17 = arith.subf %13, %16 : vector<8x8xf32>
    %18 = math.exp %17 : vector<8x8xf32>
    %cst_12 = arith.constant dense<0.000000e+00> : vector<8xf32>
    %19 = vector.multi_reduction <add>, %18, %cst_12 [1] : vector<8x8xf32> to vector<8xf32>
    %20 = vector.shape_cast %19 : vector<8xf32> to vector<8x1xf32>
    %21 = tpu.reciprocal %20 {approx = true} : vector<8x1xf32> -> vector<8x1xf32>
    %22 = vector.broadcast %21 : vector<8x1xf32> to vector<8x8xf32>
    %23 = arith.mulf %18, %22 : vector<8x8xf32>
    %cst_13 = arith.constant dense<0.000000e+00> : vector<8x8xf32>
    %24 = tpu.matmul %23, %12, %cst_13 {dimension_numbers = #tpu.dot_dimension_numbers<[1], [0], [0], [1], [0, 0, 1, 1], [], []>} : vector<8x8xf32>, vector<8x8xf32>, vector<8x8xf32> -> vector<8x8xf32>
    %c0_14 = arith.constant 0 : index
    %c0_15 = arith.constant 0 : index
    %25 = vector.load %arg12[%c0_14, %c0_15] : memref<8x32xf32, #tpu.memory_space<vmem>>, vector<8x8xf32>
    tpu.vector_store %arg12[%c0_14, %c0_15], %24 {strides = array<i32>} : memref<8x32xf32, #tpu.memory_space<vmem>>, vector<8x8xf32>,
    %26 = vector.extract_strided_slice %9 {offsets = [0, 8], sizes = [8, 8], strides = [1, 1]} : vector<8x32xf32> to vector<8x8xf32>
    %c0_16 = arith.constant 0 : index
    %c8 = arith.constant 8 : index
    %27 = vector.load %arg11[%c0_16, %c8] : memref<8x64xf32, #tpu.memory_space<vmem>>, vector<8x8xf32>
    %c0_17 = arith.constant 0 : index
    %c40 = arith.constant 40 : index
    %28 = vector.load %arg11[%c0_17, %c40] : memref<8x64xf32, #tpu.memory_space<vmem>>, vector<8x8xf32>
    %cst_18 = arith.constant dense<0.000000e+00> : vector<8x8xf32>
    %29 = tpu.matmul %26, %27, %cst_18 {dimension_numbers = #tpu.dot_dimension_numbers<[1], [1], [0], [0], [0, 0, 1, 0], [], []>} : vector<8x8xf32>, vector<8x8xf32>, vector<8x8xf32> -> vector<8x8xf32>
    %cst_19 = arith.constant dense<0xFF800000> : vector<8xf32>
    %30 = vector.multi_reduction <maximumf>, %29, %cst_19 [1] : vector<8x8xf32> to vector<8xf32>
    %31 = vector.shape_cast %30 : vector<8xf32> to vector<8x1xf32>
    %32 = vector.broadcast %31 : vector<8x1xf32> to vector<8x8xf32>
    %33 = arith.subf %29, %32 : vector<8x8xf32>
    %34 = math.exp %33 : vector<8x8xf32>
    %cst_20 = arith.constant dense<0.000000e+00> : vector<8xf32>
    %35 = vector.multi_reduction <add>, %34, %cst_20 [1] : vector<8x8xf32> to vector<8xf32>
    %36 = vector.shape_cast %35 : vector<8xf32> to vector<8x1xf32>
    %37 = tpu.reciprocal %36 {approx = true} : vector<8x1xf32> -> vector<8x1xf32>
    %38 = vector.broadcast %37 : vector<8x1xf32> to vector<8x8xf32>
    %39 = arith.mulf %34, %38 : vector<8x8xf32>
    %cst_21 = arith.constant dense<0.000000e+00> : vector<8x8xf32>
    %40 = tpu.matmul %39, %28, %cst_21 {dimension_numbers = #tpu.dot_dimension_numbers<[1], [0], [0], [1], [0, 0, 1, 1], [], []>} : vector<8x8xf32>, vector<8x8xf32>, vector<8x8xf32> -> vector<8x8xf32>
    %c0_22 = arith.constant 0 : index
    %c8_23 = arith.constant 8 : index
    %41 = vector.load %arg12[%c0_22, %c8_23] : memref<8x32xf32, #tpu.memory_space<vmem>>, vector<8x8xf32>
    tpu.vector_store %arg12[%c0_22, %c8_23], %40 {strides = array<i32>} : memref<8x32xf32, #tpu.memory_space<vmem>>, vector<8x8xf32>,
    %42 = vector.extract_strided_slice %9 {offsets = [0, 16], sizes = [8, 8], strides = [1, 1]} : vector<8x32xf32> to vector<8x8xf32>
    %c0_24 = arith.constant 0 : index
    %c16 = arith.constant 16 : index
    %43 = vector.load %arg11[%c0_24, %c16] : memref<8x64xf32, #tpu.memory_space<vmem>>, vector<8x8xf32>
    %c0_25 = arith.constant 0 : index
    %c48 = arith.constant 48 : index
    %44 = vector.load %arg11[%c0_25, %c48] : memref<8x64xf32, #tpu.memory_space<vmem>>, vector<8x8xf32>
    %cst_26 = arith.constant dense<0.000000e+00> : vector<8x8xf32>
    %45 = tpu.matmul %42, %43, %cst_26 {dimension_numbers = #tpu.dot_dimension_numbers<[1], [1], [0], [0], [0, 0, 1, 0], [], []>} : vector<8x8xf32>, vector<8x8xf32>, vector<8x8xf32> -> vector<8x8xf32>
    %cst_27 = arith.constant dense<0xFF800000> : vector<8xf32>
    %46 = vector.multi_reduction <maximumf>, %45, %cst_27 [1] : vector<8x8xf32> to vector<8xf32>
    %47 = vector.shape_cast %46 : vector<8xf32> to vector<8x1xf32>
    %48 = vector.broadcast %47 : vector<8x1xf32> to vector<8x8xf32>
    %49 = arith.subf %45, %48 : vector<8x8xf32>
    %50 = math.exp %49 : vector<8x8xf32>
    %cst_28 = arith.constant dense<0.000000e+00> : vector<8xf32>
    %51 = vector.multi_reduction <add>, %50, %cst_28 [1] : vector<8x8xf32> to vector<8xf32>
    %52 = vector.shape_cast %51 : vector<8xf32> to vector<8x1xf32>
    %53 = tpu.reciprocal %52 {approx = true} : vector<8x1xf32> -> vector<8x1xf32>
    %54 = vector.broadcast %53 : vector<8x1xf32> to vector<8x8xf32>
    %55 = arith.mulf %50, %54 : vector<8x8xf32>
    %cst_29 = arith.constant dense<0.000000e+00> : vector<8x8xf32>
    %56 = tpu.matmul %55, %44, %cst_29 {dimension_numbers = #tpu.dot_dimension_numbers<[1], [0], [0], [1], [0, 0, 1, 1], [], []>} : vector<8x8xf32>, vector<8x8xf32>, vector<8x8xf32> -> vector<8x8xf32>
    %c0_30 = arith.constant 0 : index
    %c16_31 = arith.constant 16 : index
    %57 = vector.load %arg12[%c0_30, %c16_31] : memref<8x32xf32, #tpu.memory_space<vmem>>, vector<8x8xf32>
    tpu.vector_store %arg12[%c0_30, %c16_31], %56 {strides = array<i32>} : memref<8x32xf32, #tpu.memory_space<vmem>>, vector<8x8xf32>,
    %58 = vector.extract_strided_slice %9 {offsets = [0, 24], sizes = [8, 8], strides = [1, 1]} : vector<8x32xf32> to vector<8x8xf32>
    %c0_32 = arith.constant 0 : index
    %c24 = arith.constant 24 : index
    %59 = vector.load %arg11[%c0_32, %c24] : memref<8x64xf32, #tpu.memory_space<vmem>>, vector<8x8xf32>
    %c0_33 = arith.constant 0 : index
    %c56 = arith.constant 56 : index
    %60 = vector.load %arg11[%c0_33, %c56] : memref<8x64xf32, #tpu.memory_space<vmem>>, vector<8x8xf32>
    %cst_34 = arith.constant dense<0.000000e+00> : vector<8x8xf32>
    %61 = tpu.matmul %58, %59, %cst_34 {dimension_numbers = #tpu.dot_dimension_numbers<[1], [1], [0], [0], [0, 0, 1, 0], [], []>} : vector<8x8xf32>, vector<8x8xf32>, vector<8x8xf32> -> vector<8x8xf32>
    %cst_35 = arith.constant dense<0xFF800000> : vector<8xf32>
    %62 = vector.multi_reduction <maximumf>, %61, %cst_35 [1] : vector<8x8xf32> to vector<8xf32>
    %63 = vector.shape_cast %62 : vector<8xf32> to vector<8x1xf32>
    %64 = vector.broadcast %63 : vector<8x1xf32> to vector<8x8xf32>
    %65 = arith.subf %61, %64 : vector<8x8xf32>
    %66 = math.exp %65 : vector<8x8xf32>
    %cst_36 = arith.constant dense<0.000000e+00> : vector<8xf32>
    %67 = vector.multi_reduction <add>, %66, %cst_36 [1] : vector<8x8xf32> to vector<8xf32>
    %68 = vector.shape_cast %67 : vector<8xf32> to vector<8x1xf32>
    %69 = tpu.reciprocal %68 {approx = true} : vector<8x1xf32> -> vector<8x1xf32>
    %70 = vector.broadcast %69 : vector<8x1xf32> to vector<8x8xf32>
    %71 = arith.mulf %66, %70 : vector<8x8xf32>
    %cst_37 = arith.constant dense<0.000000e+00> : vector<8x8xf32>
    %72 = tpu.matmul %71, %60, %cst_37 {dimension_numbers = #tpu.dot_dimension_numbers<[1], [0], [0], [1], [0, 0, 1, 1], [], []>} : vector<8x8xf32>, vector<8x8xf32>, vector<8x8xf32> -> vector<8x8xf32>
    %c0_38 = arith.constant 0 : index
    %c24_39 = arith.constant 24 : index
    %73 = vector.load %arg12[%c0_38, %c24_39] : memref<8x32xf32, #tpu.memory_space<vmem>>, vector<8x8xf32>
    tpu.vector_store %arg12[%c0_38, %c24_39], %72 {strides = array<i32>} : memref<8x32xf32, #tpu.memory_space<vmem>>, vector<8x8xf32>,
    %c0_40 = arith.constant 0 : index
    %c0_41 = arith.constant 0 : index
    %74 = vector.load %arg12[%c0_40, %c0_41] : memref<8x32xf32, #tpu.memory_space<vmem>>, vector<8x32xf32>
    %c0_42 = arith.constant 0 : index
    %c0_43 = arith.constant 0 : index
    %75 = vector.load %arg8[%c0_42, %c0_43] : memref<32x32xf32, #tpu.memory_space<vmem>>, vector<32x32xf32>
    %cst_44 = arith.constant dense<0.000000e+00> : vector<8x32xf32>
    %76 = tpu.matmul %74, %75, %cst_44 {dimension_numbers = #tpu.dot_dimension_numbers<[1], [0], [0], [1], [0, 0, 1, 1], [], []>} : vector<8x32xf32>, vector<32x32xf32>, vector<8x32xf32> -> vector<8x32xf32>
    %c0_45 = arith.constant 0 : index
    %c0_46 = arith.constant 0 : index
    %77 = vector.load %arg9[%c0_45, %c0_46] : memref<1x32xf32, #tpu.memory_space<vmem>>, vector<1x32xf32>
    %78 = vector.broadcast %77 : vector<1x32xf32> to vector<8x32xf32>
    %79 = arith.addf %76, %78 : vector<8x32xf32>
    %c0_47 = arith.constant 0 : index
    %c0_48 = arith.constant 0 : index
    %c0_49 = arith.constant 0 : index
    %80 = vector.load %arg10[%c0_47, %c0_48, %c0_49] : memref<1x8x32xf32, #tpu.memory_space<vmem>>, vector<1x8x32xf32>
    %81 = vector.shape_cast %80 : vector<1x8x32xf32> to vector<8x32xf32>
    %82 = vector.shape_cast %79 : vector<8x32xf32> to vector<1x8x32xf32>
    tpu.vector_store %arg10[%c0_47, %c0_48, %c0_49], %82 {strides = array<i32>} : memref<1x8x32xf32, #tpu.memory_space<vmem>>, vector<1x8x32xf32>,
    return
  }
  func.func @transform_0(%arg0: i32, %arg1: i32) -> (i32, i32, i32) {
    %c0_i32 = arith.constant 0 : i32
    %c0_i32_0 = arith.constant 0 : i32
    return %arg0, %arg1, %c0_i32 : i32, i32, i32
  }
  func.func @transform_1(%arg0: i32, %arg1: i32) -> (i32, i32, i32) {
    %c0_i32 = arith.constant 0 : i32
    %c0_i32_0 = arith.constant 0 : i32
    %c0_i32_1 = arith.constant 0 : i32
    return %arg0, %c0_i32, %c0_i32_0 : i32, i32, i32
  }
  func.func @transform_2(%arg0: i32, %arg1: i32) -> (i32, i32) {
    %c0_i32 = arith.constant 0 : i32
    %c0_i32_0 = arith.constant 0 : i32
    %c0_i32_1 = arith.constant 0 : i32
    return %c0_i32, %c0_i32_0 : i32, i32
  }
  func.func @transform_3(%arg0: i32, %arg1: i32) -> (i32, i32) {
    %c0_i32 = arith.constant 0 : i32
    %c0_i32_0 = arith.constant 0 : i32
    %c0_i32_1 = arith.constant 0 : i32
    return %c0_i32, %c0_i32_0 : i32, i32
  }
  func.func @transform_4(%arg0: i32, %arg1: i32) -> (i32, i32) {
    %c0_i32 = arith.constant 0 : i32
    %c0_i32_0 = arith.constant 0 : i32
    %c0_i32_1 = arith.constant 0 : i32
    return %c0_i32, %c0_i32_0 : i32, i32
  }
  func.func @transform_5(%arg0: i32, %arg1: i32) -> (i32, i32) {
    %c0_i32 = arith.constant 0 : i32
    %c0_i32_0 = arith.constant 0 : i32
    %c0_i32_1 = arith.constant 0 : i32
    return %c0_i32, %c0_i32_0 : i32, i32
  }
  func.func @transform_6(%arg0: i32, %arg1: i32) -> (i32, i32) {
    %c0_i32 = arith.constant 0 : i32
    %c0_i32_0 = arith.constant 0 : i32
    %c0_i32_1 = arith.constant 0 : i32
    return %c0_i32, %c0_i32_0 : i32, i32
  }
  func.func @transform_7(%arg0: i32, %arg1: i32) -> (i32, i32) {
    %c0_i32 = arith.constant 0 : i32
    %c0_i32_0 = arith.constant 0 : i32
    %c0_i32_1 = arith.constant 0 : i32
    return %c0_i32, %c0_i32_0 : i32, i32
  }
  func.func @transform_8(%arg0: i32, %arg1: i32) -> (i32, i32, i32) {
    %c0_i32 = arith.constant 0 : i32
    %c0_i32_0 = arith.constant 0 : i32
    return %arg0, %arg1, %c0_i32 : i32, i32, i32
  }
}

</mosaic_0001>

<llo_original>
// kernel: tpu_custom_call.1
$region0: #{tpu_custom_call.1}
  #allocation0 [shape = 'u32[]', space=smem, size = 0x4, offset = 0x4, fixed_abs, tag = 'smem constant byte address 0x4 - core index']
  #allocation1 [shape = 'u32[144,128]{1,0:T(1,128)}', space=vmem, size = 0x12000, scoped, tag = 'internal scratch']
  #allocation2 [shape = 'f32[8,64]{1,0:T(8,128)}', space=vmem, size = 0x1000, scoped, tag = 'scratch operand']
  #allocation3 [shape = 'f32[8,32]{1,0:T(8,128)}', space=vmem, size = 0x1000, scoped, tag = 'scratch operand']
  %s0 = inlined_call_operand.hbm [shape: f32[2,16,32], index: 0, kind: input, shape index: {}]
  %s1 = inlined_call_operand.hbm [shape: f32[2,8,32], index: 1, kind: input, shape index: {}]
  %s2 = inlined_call_operand.hbm [shape: f32[32,32], index: 2, kind: input, shape index: {}]
  %s3 = inlined_call_operand.vmem [shape: f32[1,32], index: 3, kind: input, shape index: {}]
  %s4 = inlined_call_operand.hbm [shape: f32[32,64], index: 4, kind: input, shape index: {}]
  %s5 = inlined_call_operand.vmem [shape: f32[1,64], index: 5, kind: input, shape index: {}]
  %s6 = inlined_call_operand.hbm [shape: f32[32,32], index: 6, kind: input, shape index: {}]
  %s7 = inlined_call_operand.vmem [shape: f32[1,32], index: 7, kind: input, shape index: {}]
  %s8 = inlined_call_operand.hbm [shape: f32[2,16,32], index: 8, kind: output, shape index: {}]
  %s9 = sld [smem:[#allocation0]]
  $region89: #{tpu_custom_call.1} parent=0
    _
  %s11 = ssub.s32 1, %s9
  %s12 = scalar_select 0, %s11, %s9
  $region1: #{tpu_custom_call.1} parent=0
    #allocation4 [shape = 'u8[8192]{0}', space=vmem, size = 0x2000, scoped, tag = 'input window, operand 0']
    #allocation5 [shape = 's32[2]{0}', space=sflag, size = 0x8, scoped, tag = 'scoped memory for tpu_custom_call.1']
    #allocation6 [shape = 's32[2]{0}', space=sflag, size = 0x8, scoped, tag = 'scoped memory for tpu_custom_call.1']
    #allocation7 [shape = 'u8[8192]{0}', space=vmem, size = 0x2000, scoped, tag = 'input window, operand 1']
    #allocation8 [shape = 's32[2]{0}', space=sflag, size = 0x8, scoped, tag = 'scoped memory for tpu_custom_call.1']
    #allocation9 [shape = 'u8[16384]{0}', space=vmem, size = 0x4000, scoped, tag = 'input window, operand 2, single buffered']
    #allocation10 [shape = 'u8[16384]{0}', space=vmem, size = 0x4000, scoped, tag = 'input window, operand 4, single buffered']
    #allocation11 [shape = 's32[1]{0}', space=sflag, size = 0x4, scoped, tag = 'scoped memory for tpu_custom_call.1']
    #allocation12 [shape = 'u8[16384]{0}', space=vmem, size = 0x4000, scoped, tag = 'input window, operand 6, single buffered']
    #allocation13 [shape = 'u8[8192]{0}', space=vmem, size = 0x2000, scoped, tag = 'output window, operand 0']
    %13 = vsyncpa [#allocation5], 0
    %s14 = scalar_lea.sflag [#allocation5], 1
    %15 = vsyncpa %s14, 0
    %16 = vsyncpa [#allocation8], 0
    %s17 = scalar_lea.sflag [#allocation8], 1
    %18 = vsyncpa %s17, 0
    %19 = vsyncpa [#allocation11], 0
    %20 = vsyncpa [#allocation6], 0
    %s21 = scalar_lea.sflag [#allocation6], 1
    %22 = vsyncpa %s21, 0
    loop: start=0, step=1, limit=6
    $region2: #{tpu_custom_call.1} parent=1 // loop_pre_header
      _
    $region3: #{tpu_custom_call.1} parent=1 // loop_header
      %s24 = sphi 0, %s28
      %p25 = scmp.ge.s32.totalorder %s24, 6
      %s31 = sphi 0, %s43
      %s32 = sphi 0, %s39
      %s33 = sphi 0, %s31
      %s34 = sphi 0, %s32
      %s35 = sphi 0, %s33
      %s36 = sphi 0, %s34
      %s48 = sphi 0, %s50
      %s51 = sphi 0, %s48
      %s52 = sphi 0, %s51
      %s68 = sphi 0, %s52
      %s74 = sphi 0, %s76
      %s77 = sphi 0, %s74
      %s78 = sphi 0, %s77
      %s94 = sphi 0, %s78
      %s98 = sphi 0, %s98
      %s100 = sphi 0, %s98
      %s101 = sphi 0, %s100
      %s115 = sphi 0, %s101
      %s119 = sphi 0, %s119
      %s121 = sphi 0, %s119
      %s122 = sphi 0, %s121
      %s136 = sphi 0, %s122
      %s140 = sphi 0, %s140
      %s142 = sphi 0, %s140
      %s143 = sphi 0, %s142
      %s157 = sphi 0, %s143
      %s161 = sphi 0, %s161
      %s163 = sphi 0, %s161
      %s164 = sphi 0, %s163
      %s178 = sphi 0, %s164
      %s182 = sphi 0, %s182
      %s184 = sphi 0, %s182
      %s185 = sphi 0, %s184
      %s199 = sphi 0, %s185
      %s203 = sphi 0, %s203
      %s205 = sphi 0, %s203
      %s206 = sphi 0, %s205
      %s220 = sphi 0, %s206
      %s228 = sphi 0, %s230
      %s231 = sphi 0, %s228
      %s232 = sphi 0, %s231
      %s248 = sphi 0, %s232
    $region4: #{tpu_custom_call.1} parent=1 // loop_header_branch
      %27 = sbr.rel (%p25) target = $region8
    $region5: #{tpu_custom_call.1} parent=1 // loop_body
      %s29 = ssub.s32 %s24, 1
      %s30 = ssub.s32 %s24, 2
      %s37 = sadd.s32 1, %s32
      %p38 = scmp.ge.s32.totalorder %s37, 2
      %s39 = scalar_select %p38, 0, %s37
      %s40 = sadd.s32 1, %s31
      %s41 = scalar_select %p38, %s40, %s31
      %p42 = scmp.ge.s32.totalorder %s41, 2
      %s43 = scalar_select %p42, 0, %s41
      %s44 = ssub.s32 %s31, %s43
      %s45 = ssub.s32 %s32, %s39
      %s46 = sor.u32 %s44, %s45
      %p47 = scmp.eq.s32.totalorder %s46, 0
      %s49 = sadd.s32 %s48, 1
      %s50 = scalar_select %p47, %s48, %s49
      %p53 = pneg %p47
      %p54 = scmp.eq.s32.totalorder %s24, 3
      %p55 = por %p53, %p54
      %p56 = scmp.ne.s32.totalorder %s48, %s51
      %p57 = scmp.eq.s32.totalorder %s24, 0
      %p58 = por %p56, %p57
      %p59 = scmp.ne.s32.totalorder %s48, %s51
      %p60 = scmp.eq.s32.totalorder %s29, 3
      %p61 = por %p59, %p60
      %p62 = scmp.ne.s32.totalorder %s51, %s52
      %p63 = scmp.eq.s32.totalorder %s29, 0
      %p64 = por %p62, %p63
      %p65 = scmp.ne.s32.totalorder %s51, %s52
      %p66 = scmp.eq.s32.totalorder %s30, 3
      %p67 = por %p65, %p66
      %p69 = scmp.ne.s32.totalorder %s52, %s68
      %p70 = scmp.eq.s32.totalorder %s30, 0
      %p71 = por %p69, %p70
      %s72 = ssub.s32 %s31, %s43
      %p73 = scmp.eq.s32.totalorder %s72, 0
      %s75 = sadd.s32 %s74, 1
      %s76 = scalar_select %p73, %s74, %s75
      %p79 = pneg %p73
      %p80 = scmp.eq.s32.totalorder %s24, 3
      %p81 = por %p79, %p80
      %p82 = scmp.ne.s32.totalorder %s74, %s77
      %p83 = scmp.eq.s32.totalorder %s24, 0
      %p84 = por %p82, %p83
      %p85 = scmp.ne.s32.totalorder %s74, %s77
      %p86 = scmp.eq.s32.totalorder %s29, 3
      %p87 = por %p85, %p86
      %p88 = scmp.ne.s32.totalorder %s77, %s78
      %p89 = scmp.eq.s32.totalorder %s29, 0
      %p90 = por %p88, %p89
      %p91 = scmp.ne.s32.totalorder %s77, %s78
      %p92 = scmp.eq.s32.totalorder %s30, 3
      %p93 = por %p91, %p92
      %p95 = scmp.ne.s32.totalorder %s78, %s94
      %p96 = scmp.eq.s32.totalorder %s30, 0
      %p97 = por %p95, %p96
      %s99 = sadd.s32 %s98, 1
      %p102 = scmp.eq.s32.totalorder %s24, 3
      %p103 = scmp.ne.s32.totalorder %s98, %s100
      %p104 = scmp.eq.s32.totalorder %s24, 0
      %p105 = por %p103, %p104
      %p106 = scmp.ne.s32.totalorder %s98, %s100
      %p107 = scmp.eq.s32.totalorder %s29, 3
      %p108 = por %p106, %p107
      %p109 = scmp.ne.s32.totalorder %s100, %s101
      %p110 = scmp.eq.s32.totalorder %s29, 0
      %p111 = por %p109, %p110
      %p112 = scmp.ne.s32.totalorder %s100, %s101
      %p113 = scmp.eq.s32.totalorder %s30, 3
      %p114 = por %p112, %p113
      %p116 = scmp.ne.s32.totalorder %s101, %s115
      %p117 = scmp.eq.s32.totalorder %s30, 0
      %p118 = por %p116, %p117
      %s120 = sadd.s32 %s119, 1
      %p123 = scmp.eq.s32.totalorder %s24, 3
      %p124 = scmp.ne.s32.totalorder %s119, %s121
      %p125 = scmp.eq.s32.totalorder %s24, 0
      %p126 = por %p124, %p125
      %p127 = scmp.ne.s32.totalorder %s119, %s121
      %p128 = scmp.eq.s32.totalorder %s29, 3
      %p129 = por %p127, %p128
      %p130 = scmp.ne.s32.totalorder %s121, %s122
      %p131 = scmp.eq.s32.totalorder %s29, 0
      %p132 = por %p130, %p131
      %p133 = scmp.ne.s32.totalorder %s121, %s122
      %p134 = scmp.eq.s32.totalorder %s30, 3
      %p135 = por %p133, %p134
      %p137 = scmp.ne.s32.totalorder %s122, %s136
      %p138 = scmp.eq.s32.totalorder %s30, 0
      %p139 = por %p137, %p138
      %s141 = sadd.s32 %s140, 1
      %p144 = scmp.eq.s32.totalorder %s24, 3
      %p145 = scmp.ne.s32.totalorder %s140, %s142
      %p146 = scmp.eq.s32.totalorder %s24, 0
      %p147 = por %p145, %p146
      %p148 = scmp.ne.s32.totalorder %s140, %s142
      %p149 = scmp.eq.s32.totalorder %s29, 3
      %p150 = por %p148, %p149
      %p151 = scmp.ne.s32.totalorder %s142, %s143
      %p152 = scmp.eq.s32.totalorder %s29, 0
      %p153 = por %p151, %p152
      %p154 = scmp.ne.s32.totalorder %s142, %s143
      %p155 = scmp.eq.s32.totalorder %s30, 3
      %p156 = por %p154, %p155
      %p158 = scmp.ne.s32.totalorder %s143, %s157
      %p159 = scmp.eq.s32.totalorder %s30, 0
      %p160 = por %p158, %p159
      %s162 = sadd.s32 %s161, 1
      %p165 = scmp.eq.s32.totalorder %s24, 3
      %p166 = scmp.ne.s32.totalorder %s161, %s163
      %p167 = scmp.eq.s32.totalorder %s24, 0
      %p168 = por %p166, %p167
      %p169 = scmp.ne.s32.totalorder %s161, %s163
      %p170 = scmp.eq.s32.totalorder %s29, 3
      %p171 = por %p169, %p170
      %p172 = scmp.ne.s32.totalorder %s163, %s164
      %p173 = scmp.eq.s32.totalorder %s29, 0
      %p174 = por %p172, %p173
      %p175 = scmp.ne.s32.totalorder %s163, %s164
      %p176 = scmp.eq.s32.totalorder %s30, 3
      %p177 = por %p175, %p176
      %p179 = scmp.ne.s32.totalorder %s164, %s178
      %p180 = scmp.eq.s32.totalorder %s30, 0
      %p181 = por %p179, %p180
      %s183 = sadd.s32 %s182, 1
      %p186 = scmp.eq.s32.totalorder %s24, 3
      %p187 = scmp.ne.s32.totalorder %s182, %s184
      %p188 = scmp.eq.s32.totalorder %s24, 0
      %p189 = por %p187, %p188
      %p190 = scmp.ne.s32.totalorder %s182, %s184
      %p191 = scmp.eq.s32.totalorder %s29, 3
      %p192 = por %p190, %p191
      %p193 = scmp.ne.s32.totalorder %s184, %s185
      %p194 = scmp.eq.s32.totalorder %s29, 0
      %p195 = por %p193, %p194
      %p196 = scmp.ne.s32.totalorder %s184, %s185
      %p197 = scmp.eq.s32.totalorder %s30, 3
      %p198 = por %p196, %p197
      %p200 = scmp.ne.s32.totalorder %s185, %s199
      %p201 = scmp.eq.s32.totalorder %s30, 0
      %p202 = por %p200, %p201
      %s204 = sadd.s32 %s203, 1
      %p207 = scmp.eq.s32.totalorder %s24, 3
      %p208 = scmp.ne.s32.totalorder %s203, %s205
      %p209 = scmp.eq.s32.totalorder %s24, 0
      %p210 = por %p208, %p209
      %p211 = scmp.ne.s32.totalorder %s203, %s205
      %p212 = scmp.eq.s32.totalorder %s29, 3
      %p213 = por %p211, %p212
      %p214 = scmp.ne.s32.totalorder %s205, %s206
      %p215 = scmp.eq.s32.totalorder %s29, 0
      %p216 = por %p214, %p215
      %p217 = scmp.ne.s32.totalorder %s205, %s206
      %p218 = scmp.eq.s32.totalorder %s30, 3
      %p219 = por %p217, %p218
      %p221 = scmp.ne.s32.totalorder %s206, %s220
      %p222 = scmp.eq.s32.totalorder %s30, 0
      %p223 = por %p221, %p222
      %s224 = ssub.s32 %s31, %s43
      %s225 = ssub.s32 %s32, %s39
      %s226 = sor.u32 %s224, %s225
      %p227 = scmp.eq.s32.totalorder %s226, 0
      %s229 = sadd.s32 %s228, 1
      %s230 = scalar_select %p227, %s228, %s229
      %p233 = pneg %p227
      %p234 = scmp.eq.s32.totalorder %s24, 3
      %p235 = por %p233, %p234
      %p236 = scmp.ne.s32.totalorder %s228, %s231
      %p237 = scmp.eq.s32.totalorder %s24, 0
      %p238 = por %p236, %p237
      %p239 = scmp.ne.s32.totalorder %s228, %s231
      %p240 = scmp.eq.s32.totalorder %s29, 3
      %p241 = por %p239, %p240
      %p242 = scmp.ne.s32.totalorder %s231, %s232
      %p243 = scmp.eq.s32.totalorder %s29, 0
      %p244 = por %p242, %p243
      %p245 = scmp.ne.s32.totalorder %s231, %s232
      %p246 = scmp.eq.s32.totalorder %s30, 3
      %p247 = por %p245, %p246
      %p249 = scmp.ne.s32.totalorder %s232, %s248
      %p250 = scmp.eq.s32.totalorder %s30, 0
      %p251 = por %p249, %p250
      %p252 = scmp.le.s32.totalorder 1, %s24
      %p253 = scmp.lt.s32.totalorder %s24, 5
      %p254 = pnand %p252, %p253
      %p255 = pneg %p254
      // Predicated region
      $region9: #{tpu_custom_call.1} parent=5 // pred_check
        _
      $region10: #{tpu_custom_call.1} parent=5 // pred_check_branch
        %257 = sbr.rel (%p254) target = $region12
      $region11: #{tpu_custom_call.1} parent=5 // pred_region
        %s258 = ssub.s32 %s24, 1
        // Predicated region
        $region13: #{tpu_custom_call.1} parent=11 // pred_check
          %p259 = pneg %p111
        $region14: #{tpu_custom_call.1} parent=11 // pred_check_branch
          %261 = sbr.rel (%p259) target = $region16
        $region15: #{tpu_custom_call.1} parent=11 // pred_region
          %s263 = ssub.s32 512, 512
          %264 = vsyncadd [#allocation8], %s263
          %s265 = sshll.u32 [#allocation9], 4
          %s266 = int_to_ptr.vmem [resolvable:$true] %s265
          %271 = dma.hbm_to_vmem [thread:$0]  %s2, 512, %s266, [#allocation8], 128, 128, 8
        $region16: #{tpu_custom_call.1} parent=11 // pred_fallthru
          _
        // Predicated region
        $region17: #{tpu_custom_call.1} parent=11 // pred_check
          %p272 = pneg %p132
        $region18: #{tpu_custom_call.1} parent=11 // pred_check_branch
          %274 = sbr.rel (%p272) target = $region20
        $region19: #{tpu_custom_call.1} parent=11 // pred_region
          _
        $region20: #{tpu_custom_call.1} parent=11 // pred_fallthru
          _
        // Predicated region
        $region21: #{tpu_custom_call.1} parent=11 // pred_check
          %p275 = pneg %p153
        $region22: #{tpu_custom_call.1} parent=11 // pred_check_branch
          %277 = sbr.rel (%p275) target = $region24
        $region23: #{tpu_custom_call.1} parent=11 // pred_region
          %s279 = ssub.s32 512, 512
          %280 = vsyncadd [#allocation11], %s279
          %s281 = sshll.u32 [#allocation10], 4
          %s282 = int_to_ptr.vmem [resolvable:$true] %s281
          %287 = dma.hbm_to_vmem [thread:$0]  %s4, 512, %s282, [#allocation11], 128, 128, 8
        $region24: #{tpu_custom_call.1} parent=11 // pred_fallthru
          _
        // Predicated region
        $region25: #{tpu_custom_call.1} parent=11 // pred_check
          %p288 = pneg %p174
        $region26: #{tpu_custom_call.1} parent=11 // pred_check_branch
          %290 = sbr.rel (%p288) target = $region28
        $region27: #{tpu_custom_call.1} parent=11 // pred_region
          _
        $region28: #{tpu_custom_call.1} parent=11 // pred_fallthru
          _
        // Predicated region
        $region29: #{tpu_custom_call.1} parent=11 // pred_check
          %p291 = pneg %p195
        $region30: #{tpu_custom_call.1} parent=11 // pred_check_branch
          %293 = sbr.rel (%p291) target = $region32
        $region31: #{tpu_custom_call.1} parent=11 // pred_region
          %s295 = ssub.s32 512, 512
          %296 = vsyncadd [#allocation11], %s295
          %s297 = sshll.u32 [#allocation12], 4
          %s298 = int_to_ptr.vmem [resolvable:$true] %s297
          %303 = dma.hbm_to_vmem [thread:$0]  %s6, 512, %s298, [#allocation11], 128, 128, 8
        $region32: #{tpu_custom_call.1} parent=11 // pred_fallthru
          _
        // Predicated region
        $region33: #{tpu_custom_call.1} parent=11 // pred_check
          %p304 = pneg %p216
        $region34: #{tpu_custom_call.1} parent=11 // pred_check_branch
          %306 = sbr.rel (%p304) target = $region36
        $region35: #{tpu_custom_call.1} parent=11 // pred_region
          _
        $region36: #{tpu_custom_call.1} parent=11 // pred_fallthru
          _
      $region12: #{tpu_custom_call.1} parent=5 // pred_fallthru
        _
      %p307 = scmp.lt.s32.totalorder %s24, 4
      // Predicated region
      $region37: #{tpu_custom_call.1} parent=5 // pred_check
        %p308 = pneg %p307
      $region38: #{tpu_custom_call.1} parent=5 // pred_check_branch
        %310 = sbr.rel (%p308) target = $region40
      $region39: #{tpu_custom_call.1} parent=5 // pred_region
        // Predicated region
        $region41: #{tpu_custom_call.1} parent=39 // pred_check
          %p311 = pneg %p58
        $region42: #{tpu_custom_call.1} parent=39 // pred_check_branch
          %313 = sbr.rel (%p311) target = $region44
        $region43: #{tpu_custom_call.1} parent=39 // pred_region
          %s314 = sand.u32 %s48, 1
          %s315 = scalar_lea.sflag [#allocation5], %s314
          %s316 = sand.u32 %s48, 1
          %s317 = smul.addr %s316, 8
          %s318 = scalar_lea.vmem [#allocation4], %s317
          %s320 = ssub.s32 128, 128
          %321 = vsyncadd %s315, %s320
          %s322 = smul.addr %s31, 2
          %s323 = sadd.s32 %s32, %s322
          %s324 = smul.addr %s323, 128
          %s325 = scalar_lea.hbm %s0, %s324
          %s327 = sshll.u32 %s318, 4
          %s328 = int_to_ptr.vmem [resolvable:$true] %s327
          %330 = dma.hbm_to_vmem [thread:$0]  %s325, 128, %s328, %s315
        $region44: #{tpu_custom_call.1} parent=39 // pred_fallthru
          _
        // Predicated region
        $region45: #{tpu_custom_call.1} parent=39 // pred_check
          %p331 = pneg %p84
        $region46: #{tpu_custom_call.1} parent=39 // pred_check_branch
          %333 = sbr.rel (%p331) target = $region48
        $region47: #{tpu_custom_call.1} parent=39 // pred_region
          %s334 = sand.u32 %s24, 1
          %s335 = scalar_lea.sflag [#allocation8], %s334
          %s336 = sand.u32 %s74, 1
          %s337 = smul.addr %s336, 8
          %s338 = scalar_lea.vmem [#allocation7], %s337
          %s340 = ssub.s32 128, 128
          %341 = vsyncadd %s335, %s340
          %s342 = smul.addr %s31, 128
          %s343 = scalar_lea.hbm %s1, %s342
          %s345 = sshll.u32 %s338, 4
          %s346 = int_to_ptr.vmem [resolvable:$true] %s345
          %348 = dma.hbm_to_vmem [thread:$0]  %s343, 128, %s346, %s335
        $region48: #{tpu_custom_call.1} parent=39 // pred_fallthru
          _
      $region40: #{tpu_custom_call.1} parent=5 // pred_fallthru
        _
      %p349 = scmp.le.s32.totalorder 1, %s24
      %p350 = scmp.lt.s32.totalorder %s24, 5
      %p351 = pnand %p349, %p350
      %p352 = pneg %p351
      // Predicated region
      $region49: #{tpu_custom_call.1} parent=5 // pred_check
        _
      $region50: #{tpu_custom_call.1} parent=5 // pred_check_branch
        %354 = sbr.rel (%p351) target = $region52
      $region51: #{tpu_custom_call.1} parent=5 // pred_region
        %s355 = ssub.s32 %s24, 1
        %s356 = sand.u32 %s51, 1
        %s357 = scalar_lea.sflag [#allocation5], %s356
        %s358 = sand.u32 %s51, 1
        %s359 = smul.addr %s358, 8
        %s360 = scalar_lea.vmem [#allocation4], %s359
        // Predicated region
        $region53: #{tpu_custom_call.1} parent=51 // pred_check
          %p361 = pneg %p64
        $region54: #{tpu_custom_call.1} parent=51 // pred_check_branch
          %363 = sbr.rel (%p361) target = $region56
        $region55: #{tpu_custom_call.1} parent=51 // pred_region
          %364 = dma.done %s357, 128
        $region56: #{tpu_custom_call.1} parent=51 // pred_fallthru
          _
        %s365 = sand.u32 %s29, 1
        %s366 = scalar_lea.sflag [#allocation8], %s365
        %s367 = sand.u32 %s77, 1
        %s368 = smul.addr %s367, 8
        %s369 = scalar_lea.vmem [#allocation7], %s368
        // Predicated region
        $region57: #{tpu_custom_call.1} parent=51 // pred_check
          %p370 = pneg %p90
        $region58: #{tpu_custom_call.1} parent=51 // pred_check_branch
          %372 = sbr.rel (%p370) target = $region60
        $region59: #{tpu_custom_call.1} parent=51 // pred_region
          %373 = dma.done %s366, 128
        $region60: #{tpu_custom_call.1} parent=51 // pred_fallthru
          _
        // Predicated region
        $region61: #{tpu_custom_call.1} parent=51 // pred_check
          %p374 = pneg %p111
        $region62: #{tpu_custom_call.1} parent=51 // pred_check_branch
          %376 = sbr.rel (%p374) target = $region64
        $region63: #{tpu_custom_call.1} parent=51 // pred_region
          %377 = dma.done [#allocation8], 512
        $region64: #{tpu_custom_call.1} parent=51 // pred_fallthru
          _
        // Predicated region
        $region65: #{tpu_custom_call.1} parent=51 // pred_check
          %p378 = pneg %p153
        $region66: #{tpu_custom_call.1} parent=51 // pred_check_branch
          %380 = sbr.rel (%p378) target = $region68
        $region67: #{tpu_custom_call.1} parent=51 // pred_region
          %381 = dma.done [#allocation11], 512
        $region68: #{tpu_custom_call.1} parent=51 // pred_fallthru
          _
        // Predicated region
        $region69: #{tpu_custom_call.1} parent=51 // pred_check
          %p382 = pneg %p195
        $region70: #{tpu_custom_call.1} parent=51 // pred_check_branch
          %384 = sbr.rel (%p382) target = $region72
        $region71: #{tpu_custom_call.1} parent=51 // pred_region
          %385 = dma.done [#allocation11], 512
        $region72: #{tpu_custom_call.1} parent=51 // pred_fallthru
          _
        %s386 = sand.u32 %s51, 1
        %s387 = scalar_lea.sflag [#allocation5], %s386
        %s388 = sand.u32 %s51, 1
        %s389 = smul.addr %s388, 8
        %s390 = scalar_lea.vmem [#allocation4], %s389
        %p391 = pneg %p64
        %p392 = pneg %p61
        %s393 = sand.u32 %s29, 1
        %s394 = scalar_lea.sflag [#allocation8], %s393
        %s395 = sand.u32 %s77, 1
        %s396 = smul.addr %s395, 8
        %s397 = scalar_lea.vmem [#allocation7], %s396
        %p398 = pneg %p90
        %p399 = pneg %p87
        %p400 = pneg %p111
        %p401 = pneg %p108
        %p402 = pneg %p132
        %p403 = pneg %p129
        %p404 = pneg %p153
        %p405 = pneg %p150
        %p406 = pneg %p174
        %p407 = pneg %p171
        %p408 = pneg %p195
        %p409 = pneg %p192
        %p410 = pneg %p216
        %p411 = pneg %p213
        %p412 = pneg %p244
        %p413 = pneg %p241
        %s414 = sand.u32 %s231, 1
        %s415 = scalar_lea.sflag [#allocation6], %s414
        %s416 = sand.u32 %s231, 1
        %s417 = smul.addr %s416, 8
        %s418 = scalar_lea.vmem [#allocation13], %s417
        %p419 = scmp.eq.s32.totalorder %s34, 0
        // Predicated region
        $region73: #{tpu_custom_call.1} parent=51 // pred_check
          %p420 = pneg %p419
        $region74: #{tpu_custom_call.1} parent=51 // pred_check_branch
          %422 = sbr.rel (%p420) target = $region76
        $region75: #{tpu_custom_call.1} parent=51 // pred_region
          %v423 = vld [vmem:[%s369] sm:$0xff]
          %v424 = vld [vmem:[#allocation10] sm:$0xff]
          %v425 = vld [vmem:[#allocation10 + $0x8] sm:$0xff]
          %v426 = vld [vmem:[#allocation10 + $0x10] sm:$0xff]
          %v427 = vld [vmem:[#allocation10 + $0x18] sm:$0xff]
          %v428 = vld [vmem:[%s5] sm:$0x1]
          %v430 = vlaneseq
          %v431 = vshrl.u32 %v430, 7
          %v432 = vsub.s32 0, %v431
          %v433 = vrot.slane %v428, %v432
          %vm435 = vcmask 261120
          %v437 = vsel %vm435, %v423, 0
          %439 = vmatprep.subr.mxu0 0.0
          %440 = vmatpush1.msra.mxu0 %v424
          %441 = vmatprep.subr.mxu0 0.0
          %442 = vmatpush1.msra.mxu0 %v425
          %443 = vmatprep.subr.mxu0 0.0
          %444 = vmatpush1.msra.mxu0 %v426
          %445 = vmatprep.subr.mxu0 0.0
          %446 = vmatpush1.msra.mxu0 %v427
          %447 = vmatprep.subr.mxu0 0.0
          %448 = vmatpush1.msra.mxu0 0.0
          %449 = vmatprep.subr.mxu0 0.0
          %450 = vmatpush1.msra.mxu0 0.0
          %451 = vmatprep.subr.mxu0 0.0
          %452 = vmatpush1.msra.mxu0 0.0
          %453 = vmatprep.subr.mxu0 0.0
          %454 = vmatpush1.msra.mxu0 0.0
          %455 = vmatprep.subr.mxu0 0.0
          %456 = vmatpush1.msra.mxu0 0.0
          %457 = vmatprep.subr.mxu0 0.0
          %458 = vmatpush1.msra.mxu0 0.0
          %459 = vmatprep.subr.mxu0 0.0
          %460 = vmatpush1.msra.mxu0 0.0
          %461 = vmatprep.subr.mxu0 0.0
          %462 = vmatpush1.msra.mxu0 0.0
          %463 = vmatprep.subr.mxu0 0.0
          %464 = vmatpush1.msra.mxu0 0.0
          %465 = vmatprep.subr.mxu0 0.0
          %466 = vmatpush1.msra.mxu0 0.0
          %467 = vmatprep.subr.mxu0 0.0
          %468 = vmatpush1.msra.mxu0 0.0
          %469 = vmatprep.subr.mxu0 0.0
          %470 = vmatpush1.msra.mxu0 0.0
          %471 = vmatprep.subr.mxu0 0.0
          %472 = vmatpush1.msra.mxu0 0.0
          %473 = vmatprep.subr.mxu0 0.0
          %474 = vmatpush1.msra.mxu0 0.0
          %475 = vmatprep.subr.mxu0 0.0
          %476 = vmatpush1.msra.mxu0 0.0
          %477 = vmatprep.subr.mxu0 0.0
          %478 = vmatpush1.msra.mxu0 0.0
          %479 = vmatprep.subr.mxu0 0.0
          %480 = vmatpush1.msra.mxu0 0.0
          %481 = vmatprep.subr.mxu0 0.0
          %482 = vmatpush1.msra.mxu0 0.0
          %483 = vmatprep.subr.mxu0 0.0
          %484 = vmatpush1.msra.mxu0 0.0
          %485 = vmatprep.subr.mxu0 0.0
          %486 = vmatpush1.msra.mxu0 0.0
          %487 = vmatprep.subr.mxu0 0.0
          %488 = vmatpush1.msra.mxu0 0.0
          %489 = vmatprep.subr.mxu0 0.0
          %490 = vmatpush1.msra.mxu0 0.0
          %491 = vmatprep.subr.mxu0 0.0
          %492 = vmatpush1.msra.mxu0 0.0
          %493 = vmatprep.subr.mxu0 0.0
          %494 = vmatpush1.msra.mxu0 0.0
          %495 = vmatprep.subr.mxu0 0.0
          %496 = vmatpush1.msra.mxu0 0.0
          %497 = vmatprep.subr.mxu0 0.0
          %498 = vmatpush1.msra.mxu0 0.0
          %499 = vmatprep.subr.mxu0 0.0
          %500 = vmatpush1.msra.mxu0 0.0
          %501 = vmatprep.subr.mxu0 0.0
          %502 = vmatpush1.msra.mxu0 0.0
          %503 = vmatprep.mubr.f32.mxu0 0.0
          %504 = vmatmul.mubr.f32.gmra.mrb[0].mxu0 %v437
          %v505 = vpop.f32.mrb[0].mxu0
          %v506 = vadd.f32 %v433, %v505
          %v507 = vpop.f32.mrb[0].mxu0
          %508 = vdwg.mxu0
          %vm509 = vcmask 523264
          %510 = vst.msk [vmem:[#allocation2] sm:$0xff] %vm509, %v506
        $region76: #{tpu_custom_call.1} parent=51 // pred_fallthru
          _
        %v511 = vld [vmem:[%s360] sm:$0xff]
        %v512 = vld [vmem:[#allocation9] sm:$0xff]
        %v513 = vld [vmem:[#allocation9 + $0x8] sm:$0xff]
        %v514 = vld [vmem:[#allocation9 + $0x10] sm:$0xff]
        %v515 = vld [vmem:[#allocation9 + $0x18] sm:$0xff]
        %v516 = vld [vmem:[%s3] sm:$0x1]
        %v518 = vlaneseq
        %v519 = vshrl.u32 %v518, 7
        %v520 = vsub.s32 0, %v519
        %v521 = vrot.slane %v516, %v520
        %vm523 = vcmask 261120
        %v525 = vsel %vm523, %v511, 0
        %527 = vmatprep.subr.mxu0 0.0
        %528 = vmatpush1.msra.mxu0 %v512
        %529 = vmatprep.subr.mxu0 0.0
        %530 = vmatpush1.msra.mxu0 %v513
        %531 = vmatprep.subr.mxu0 0.0
        %532 = vmatpush1.msra.mxu0 %v514
        %533 = vmatprep.subr.mxu0 0.0
        %534 = vmatpush1.msra.mxu0 %v515
        %535 = vmatprep.subr.mxu0 0.0
        %536 = vmatpush1.msra.mxu0 0.0
        %537 = vmatprep.subr.mxu0 0.0
        %538 = vmatpush1.msra.mxu0 0.0
        %539 = vmatprep.subr.mxu0 0.0
        %540 = vmatpush1.msra.mxu0 0.0
        %541 = vmatprep.subr.mxu0 0.0
        %542 = vmatpush1.msra.mxu0 0.0
        %543 = vmatprep.subr.mxu0 0.0
        %544 = vmatpush1.msra.mxu0 0.0
        %545 = vmatprep.subr.mxu0 0.0
        %546 = vmatpush1.msra.mxu0 0.0
        %547 = vmatprep.subr.mxu0 0.0
        %548 = vmatpush1.msra.mxu0 0.0
        %549 = vmatprep.subr.mxu0 0.0
        %550 = vmatpush1.msra.mxu0 0.0
        %551 = vmatprep.subr.mxu0 0.0
        %552 = vmatpush1.msra.mxu0 0.0
        %553 = vmatprep.subr.mxu0 0.0
        %554 = vmatpush1.msra.mxu0 0.0
        %555 = vmatprep.subr.mxu0 0.0
        %556 = vmatpush1.msra.mxu0 0.0
        %557 = vmatprep.subr.mxu0 0.0
        %558 = vmatpush1.msra.mxu0 0.0
        %559 = vmatprep.subr.mxu0 0.0
        %560 = vmatpush1.msra.mxu0 0.0
        %561 = vmatprep.subr.mxu0 0.0
        %562 = vmatpush1.msra.mxu0 0.0
        %563 = vmatprep.subr.mxu0 0.0
        %564 = vmatpush1.msra.mxu0 0.0
        %565 = vmatprep.subr.mxu0 0.0
        %566 = vmatpush1.msra.mxu0 0.0
        %567 = vmatprep.subr.mxu0 0.0
        %568 = vmatpush1.msra.mxu0 0.0
        %569 = vmatprep.subr.mxu0 0.0
        %570 = vmatpush1.msra.mxu0 0.0
        %571 = vmatprep.subr.mxu0 0.0
        %572 = vmatpush1.msra.mxu0 0.0
        %573 = vmatprep.subr.mxu0 0.0
        %574 = vmatpush1.msra.mxu0 0.0
        %575 = vmatprep.subr.mxu0 0.0
        %576 = vmatpush1.msra.mxu0 0.0
        %577 = vmatprep.subr.mxu0 0.0
        %578 = vmatpush1.msra.mxu0 0.0
        %579 = vmatprep.subr.mxu0 0.0
        %580 = vmatpush1.msra.mxu0 0.0
        %581 = vmatprep.subr.mxu0 0.0
        %582 = vmatpush1.msra.mxu0 0.0
        %583 = vmatprep.subr.mxu0 0.0
        %584 = vmatpush1.msra.mxu0 0.0
        %585 = vmatprep.subr.mxu0 0.0
        %586 = vmatpush1.msra.mxu0 0.0
        %587 = vmatprep.subr.mxu0 0.0
        %588 = vmatpush1.msra.mxu0 0.0
        %589 = vmatprep.subr.mxu0 0.0
        %590 = vmatpush1.msra.mxu0 0.0
        %591 = vmatprep.mubr.f32.mxu0 0.0
        %592 = vmatmul.mubr.f32.gmra.mrb[0].mxu0 %v525
        %v593 = vpop.f32.mrb[0].mxu0
        %v594 = vadd.f32 %v521, %v593
        %v595 = vpop.f32.mrb[0].mxu0
        %596 = vdwg.mxu0
        %v597 = vld [vmem:[#allocation2] sm:$0xff]
        %vm598 = vcmask 64512
        %v600 = vsel %vm598, %v594, 0
        %v603 = vsel %vm598, %v597, 0
        %605 = vmatprep.subr.mxu0 0.0
        %606 = vmatpush1.xpose.msra.mxu0 %v603
        %607 = vmatprep.subr.mxu0 0.0
        %608 = vmatpush1.xpose.msra.mxu0 0.0
        %609 = vmatprep.subr.mxu0 0.0
        %610 = vmatpush1.xpose.msra.mxu0 0.0
        %611 = vmatprep.subr.mxu0 0.0
        %612 = vmatpush1.xpose.msra.mxu0 0.0
        %613 = vmatprep.subr.mxu0 0.0
        %614 = vmatpush1.xpose.msra.mxu0 0.0
        %615 = vmatprep.subr.mxu0 0.0
        %616 = vmatpush1.xpose.msra.mxu0 0.0
        %617 = vmatprep.subr.mxu0 0.0
        %618 = vmatpush1.xpose.msra.mxu0 0.0
        %619 = vmatprep.subr.mxu0 0.0
        %620 = vmatpush1.xpose.msra.mxu0 0.0
        %621 = vmatprep.subr.mxu0 0.0
        %622 = vmatpush1.xpose.msra.mxu0 0.0
        %623 = vmatprep.subr.mxu0 0.0
        %624 = vmatpush1.xpose.msra.mxu0 0.0
        %625 = vmatprep.subr.mxu0 0.0
        %626 = vmatpush1.xpose.msra.mxu0 0.0
        %627 = vmatprep.subr.mxu0 0.0
        %628 = vmatpush1.xpose.msra.mxu0 0.0
        %629 = vmatprep.subr.mxu0 0.0
        %630 = vmatpush1.xpose.msra.mxu0 0.0
        %631 = vmatprep.subr.mxu0 0.0
        %632 = vmatpush1.xpose.msra.mxu0 0.0
        %633 = vmatprep.subr.mxu0 0.0
        %634 = vmatpush1.xpose.msra.mxu0 0.0
        %635 = vmatprep.subr.mxu0 0.0
        %636 = vmatpush1.xpose.msra.mxu0 0.0
        %637 = vmatprep.subr.mxu0 0.0
        %638 = vmatpush1.xpose.msra.mxu0 0.0
        %639 = vmatprep.subr.mxu0 0.0
        %640 = vmatpush1.xpose.msra.mxu0 0.0
        %641 = vmatprep.subr.mxu0 0.0
        %642 = vmatpush1.xpose.msra.mxu0 0.0
        %643 = vmatprep.subr.mxu0 0.0
        %644 = vmatpush1.xpose.msra.mxu0 0.0
        %645 = vmatprep.subr.mxu0 0.0
        %646 = vmatpush1.xpose.msra.mxu0 0.0
        %647 = vmatprep.subr.mxu0 0.0
        %648 = vmatpush1.xpose.msra.mxu0 0.0
        %649 = vmatprep.subr.mxu0 0.0
        %650 = vmatpush1.xpose.msra.mxu0 0.0
        %651 = vmatprep.subr.mxu0 0.0
        %652 = vmatpush1.xpose.msra.mxu0 0.0
        %653 = vmatprep.subr.mxu0 0.0
        %654 = vmatpush1.xpose.msra.mxu0 0.0
        %655 = vmatprep.subr.mxu0 0.0
        %656 = vmatpush1.xpose.msra.mxu0 0.0
        %657 = vmatprep.subr.mxu0 0.0
        %658 = vmatpush1.xpose.msra.mxu0 0.0
        %659 = vmatprep.subr.mxu0 0.0
        %660 = vmatpush1.xpose.msra.mxu0 0.0
        %661 = vmatprep.subr.mxu0 0.0
        %662 = vmatpush1.xpose.msra.mxu0 0.0
        %663 = vmatprep.subr.mxu0 0.0
        %664 = vmatpush1.xpose.msra.mxu0 0.0
        %665 = vmatprep.subr.mxu0 0.0
        %666 = vmatpush1.xpose.msra.mxu0 0.0
        %667 = vmatprep.subr.mxu0 0.0
        %668 = vmatpush1.xpose.msra.mxu0 0.0
        %669 = vmatprep.mubr.f32.mxu0 0.0
        %670 = vmatmul.mubr.f32.gmra.mrb[0].mxu0 %v600
        %v671 = vpop.f32.mrb[0].mxu0
        %v672 = vadd.f32 0.0, %v671
        %v673 = vpop.f32.mrb[0].mxu0
        %674 = vdwg.mxu0
        %v675 = vsel %vm598, %v672, -inf
        %676 = vmax.xlane.f32.xlu0 %v675
        %v677 = vpop.xlane.xlu0 %676
        %v678 = vsub.f32 %v672, %v677
        %v679 = vmul.f32 %v678, 1.442695
        %v680 = vpow.pop %v679
        %v681 = vsel %vm598, %v680, 0.0
        %682 = vadd.xlane.f32.xlu0 %v681
        %v683 = vpop.xlane.xlu0 %682
        %v684 = vrcp.pop %v683
        %v685 = vmul.f32 %v680, %v684
        %686 = vrot.lane.b32.xlu0 %v597, 96
        %v687 = vpop.permute.xlu0 %686
        %v690 = vsel %vm598, %v685, 0
        %692 = vmatprep.subr.mxu0 0.0
        %693 = vmatpush1.msra.mxu0 %v687
        %694 = vmatprep.subr.mxu0 0.0
        %695 = vmatpush1.msra.mxu0 0.0
        %696 = vmatprep.subr.mxu0 0.0
        %697 = vmatpush1.msra.mxu0 0.0
        %698 = vmatprep.subr.mxu0 0.0
        %699 = vmatpush1.msra.mxu0 0.0
        %700 = vmatprep.subr.mxu0 0.0
        %701 = vmatpush1.msra.mxu0 0.0
        %702 = vmatprep.subr.mxu0 0.0
        %703 = vmatpush1.msra.mxu0 0.0
        %704 = vmatprep.subr.mxu0 0.0
        %705 = vmatpush1.msra.mxu0 0.0
        %706 = vmatprep.subr.mxu0 0.0
        %707 = vmatpush1.msra.mxu0 0.0
        %708 = vmatprep.subr.mxu0 0.0
        %709 = vmatpush1.msra.mxu0 0.0
        %710 = vmatprep.subr.mxu0 0.0
        %711 = vmatpush1.msra.mxu0 0.0
        %712 = vmatprep.subr.mxu0 0.0
        %713 = vmatpush1.msra.mxu0 0.0
        %714 = vmatprep.subr.mxu0 0.0
        %715 = vmatpush1.msra.mxu0 0.0
        %716 = vmatprep.subr.mxu0 0.0
        %717 = vmatpush1.msra.mxu0 0.0
        %718 = vmatprep.subr.mxu0 0.0
        %719 = vmatpush1.msra.mxu0 0.0
        %720 = vmatprep.subr.mxu0 0.0
        %721 = vmatpush1.msra.mxu0 0.0
        %722 = vmatprep.subr.mxu0 0.0
        %723 = vmatpush1.msra.mxu0 0.0
        %724 = vmatprep.subr.mxu0 0.0
        %725 = vmatpush1.msra.mxu0 0.0
        %726 = vmatprep.subr.mxu0 0.0
        %727 = vmatpush1.msra.mxu0 0.0
        %728 = vmatprep.subr.mxu0 0.0
        %729 = vmatpush1.msra.mxu0 0.0
        %730 = vmatprep.subr.mxu0 0.0
        %731 = vmatpush1.msra.mxu0 0.0
        %732 = vmatprep.subr.mxu0 0.0
        %733 = vmatpush1.msra.mxu0 0.0
        %734 = vmatprep.subr.mxu0 0.0
        %735 = vmatpush1.msra.mxu0 0.0
        %736 = vmatprep.subr.mxu0 0.0
        %737 = vmatpush1.msra.mxu0 0.0
        %738 = vmatprep.subr.mxu0 0.0
        %739 = vmatpush1.msra.mxu0 0.0
        %740 = vmatprep.subr.mxu0 0.0
        %741 = vmatpush1.msra.mxu0 0.0
        %742 = vmatprep.subr.mxu0 0.0
        %743 = vmatpush1.msra.mxu0 0.0
        %744 = vmatprep.subr.mxu0 0.0
        %745 = vmatpush1.msra.mxu0 0.0
        %746 = vmatprep.subr.mxu0 0.0
        %747 = vmatpush1.msra.mxu0 0.0
        %748 = vmatprep.subr.mxu0 0.0
        %749 = vmatpush1.msra.mxu0 0.0
        %750 = vmatprep.subr.mxu0 0.0
        %751 = vmatpush1.msra.mxu0 0.0
        %752 = vmatprep.subr.mxu0 0.0
        %753 = vmatpush1.msra.mxu0 0.0
        %754 = vmatprep.subr.mxu0 0.0
        %755 = vmatpush1.msra.mxu0 0.0
        %756 = vmatprep.mubr.f32.mxu0 0.0
        %757 = vmatmul.mubr.f32.gmra.mrb[0].mxu0 %v690
        %v758 = vpop.f32.mrb[0].mxu0
        %v759 = vadd.f32 0.0, %v758
        %v760 = vpop.f32.mrb[0].mxu0
        %761 = vdwg.mxu0
        %762 = vst.msk [vmem:[#allocation3] sm:$0xff] %vm598, %v759
        %v763 = vld [vmem:[#allocation2] sm:$0xff]
        %764 = vrot.lane.b32.xlu0 %v594, 120
        %v765 = vpop.permute.xlu0 %764
        %767 = vrot.lane.b32.xlu0 %v763, 120
        %v768 = vpop.permute.xlu0 %767
        %v769 = vsel %vm598, %v765, 0
        %v771 = vsel %vm598, %v768, 0
        %773 = vmatprep.subr.mxu0 0.0
        %774 = vmatpush1.xpose.msra.mxu0 %v771
        %775 = vmatprep.subr.mxu0 0.0
        %776 = vmatpush1.xpose.msra.mxu0 0.0
        %777 = vmatprep.subr.mxu0 0.0
        %778 = vmatpush1.xpose.msra.mxu0 0.0
        %779 = vmatprep.subr.mxu0 0.0
        %780 = vmatpush1.xpose.msra.mxu0 0.0
        %781 = vmatprep.subr.mxu0 0.0
        %782 = vmatpush1.xpose.msra.mxu0 0.0
        %783 = vmatprep.subr.mxu0 0.0
        %784 = vmatpush1.xpose.msra.mxu0 0.0
        %785 = vmatprep.subr.mxu0 0.0
        %786 = vmatpush1.xpose.msra.mxu0 0.0
        %787 = vmatprep.subr.mxu0 0.0
        %788 = vmatpush1.xpose.msra.mxu0 0.0
        %789 = vmatprep.subr.mxu0 0.0
        %790 = vmatpush1.xpose.msra.mxu0 0.0
        %791 = vmatprep.subr.mxu0 0.0
        %792 = vmatpush1.xpose.msra.mxu0 0.0
        %793 = vmatprep.subr.mxu0 0.0
        %794 = vmatpush1.xpose.msra.mxu0 0.0
        %795 = vmatprep.subr.mxu0 0.0
        %796 = vmatpush1.xpose.msra.mxu0 0.0
        %797 = vmatprep.subr.mxu0 0.0
        %798 = vmatpush1.xpose.msra.mxu0 0.0
        %799 = vmatprep.subr.mxu0 0.0
        %800 = vmatpush1.xpose.msra.mxu0 0.0
        %801 = vmatprep.subr.mxu0 0.0
        %802 = vmatpush1.xpose.msra.mxu0 0.0
        %803 = vmatprep.subr.mxu0 0.0
        %804 = vmatpush1.xpose.msra.mxu0 0.0
        %805 = vmatprep.subr.mxu0 0.0
        %806 = vmatpush1.xpose.msra.mxu0 0.0
        %807 = vmatprep.subr.mxu0 0.0
        %808 = vmatpush1.xpose.msra.mxu0 0.0
        %809 = vmatprep.subr.mxu0 0.0
        %810 = vmatpush1.xpose.msra.mxu0 0.0
        %811 = vmatprep.subr.mxu0 0.0
        %812 = vmatpush1.xpose.msra.mxu0 0.0
        %813 = vmatprep.subr.mxu0 0.0
        %814 = vmatpush1.xpose.msra.mxu0 0.0
        %815 = vmatprep.subr.mxu0 0.0
        %816 = vmatpush1.xpose.msra.mxu0 0.0
        %817 = vmatprep.subr.mxu0 0.0
        %818 = vmatpush1.xpose.msra.mxu0 0.0
        %819 = vmatprep.subr.mxu0 0.0
        %820 = vmatpush1.xpose.msra.mxu0 0.0
        %821 = vmatprep.subr.mxu0 0.0
        %822 = vmatpush1.xpose.msra.mxu0 0.0
        %823 = vmatprep.subr.mxu0 0.0
        %824 = vmatpush1.xpose.msra.mxu0 0.0
        %825 = vmatprep.subr.mxu0 0.0
        %826 = vmatpush1.xpose.msra.mxu0 0.0
        %827 = vmatprep.subr.mxu0 0.0
        %828 = vmatpush1.xpose.msra.mxu0 0.0
        %829 = vmatprep.subr.mxu0 0.0
        %830 = vmatpush1.xpose.msra.mxu0 0.0
        %831 = vmatprep.subr.mxu0 0.0
        %832 = vmatpush1.xpose.msra.mxu0 0.0
        %833 = vmatprep.subr.mxu0 0.0
        %834 = vmatpush1.xpose.msra.mxu0 0.0
        %835 = vmatprep.subr.mxu0 0.0
        %836 = vmatpush1.xpose.msra.mxu0 0.0
        %837 = vmatprep.mubr.f32.mxu0 0.0
        %838 = vmatmul.mubr.f32.gmra.mrb[0].mxu0 %v769
        %v839 = vpop.f32.mrb[0].mxu0
        %v840 = vadd.f32 0.0, %v839
        %v841 = vpop.f32.mrb[0].mxu0
        %842 = vdwg.mxu0
        %v843 = vsel %vm598, %v840, -inf
        %844 = vmax.xlane.f32.xlu0 %v843
        %v845 = vpop.xlane.xlu0 %844
        %v846 = vsub.f32 %v840, %v845
        %v847 = vmul.f32 %v846, 1.442695
        %v848 = vpow.pop %v847
        %v849 = vsel %vm598, %v848, 0.0
        %850 = vadd.xlane.f32.xlu0 %v849
        %v851 = vpop.xlane.xlu0 %850
        %v852 = vrcp.pop %v851
        %v853 = vmul.f32 %v848, %v852
        %854 = vrot.lane.b32.xlu0 %v763, 88
        %v855 = vpop.permute.xlu0 %854
        %v858 = vsel %vm598, %v853, 0
        %860 = vmatprep.subr.mxu0 0.0
        %861 = vmatpush1.msra.mxu0 %v855
        %862 = vmatprep.subr.mxu0 0.0
        %863 = vmatpush1.msra.mxu0 0.0
        %864 = vmatprep.subr.mxu0 0.0
        %865 = vmatpush1.msra.mxu0 0.0
        %866 = vmatprep.subr.mxu0 0.0
        %867 = vmatpush1.msra.mxu0 0.0
        %868 = vmatprep.subr.mxu0 0.0
        %869 = vmatpush1.msra.mxu0 0.0
        %870 = vmatprep.subr.mxu0 0.0
        %871 = vmatpush1.msra.mxu0 0.0
        %872 = vmatprep.subr.mxu0 0.0
        %873 = vmatpush1.msra.mxu0 0.0
        %874 = vmatprep.subr.mxu0 0.0
        %875 = vmatpush1.msra.mxu0 0.0
        %876 = vmatprep.subr.mxu0 0.0
        %877 = vmatpush1.msra.mxu0 0.0
        %878 = vmatprep.subr.mxu0 0.0
        %879 = vmatpush1.msra.mxu0 0.0
        %880 = vmatprep.subr.mxu0 0.0
        %881 = vmatpush1.msra.mxu0 0.0
        %882 = vmatprep.subr.mxu0 0.0
        %883 = vmatpush1.msra.mxu0 0.0
        %884 = vmatprep.subr.mxu0 0.0
        %885 = vmatpush1.msra.mxu0 0.0
        %886 = vmatprep.subr.mxu0 0.0
        %887 = vmatpush1.msra.mxu0 0.0
        %888 = vmatprep.subr.mxu0 0.0
        %889 = vmatpush1.msra.mxu0 0.0
        %890 = vmatprep.subr.mxu0 0.0
        %891 = vmatpush1.msra.mxu0 0.0
        %892 = vmatprep.subr.mxu0 0.0
        %893 = vmatpush1.msra.mxu0 0.0
        %894 = vmatprep.subr.mxu0 0.0
        %895 = vmatpush1.msra.mxu0 0.0
        %896 = vmatprep.subr.mxu0 0.0
        %897 = vmatpush1.msra.mxu0 0.0
        %898 = vmatprep.subr.mxu0 0.0
        %899 = vmatpush1.msra.mxu0 0.0
        %900 = vmatprep.subr.mxu0 0.0
        %901 = vmatpush1.msra.mxu0 0.0
        %902 = vmatprep.subr.mxu0 0.0
        %903 = vmatpush1.msra.mxu0 0.0
        %904 = vmatprep.subr.mxu0 0.0
        %905 = vmatpush1.msra.mxu0 0.0
        %906 = vmatprep.subr.mxu0 0.0
        %907 = vmatpush1.msra.mxu0 0.0
        %908 = vmatprep.subr.mxu0 0.0
        %909 = vmatpush1.msra.mxu0 0.0
        %910 = vmatprep.subr.mxu0 0.0
        %911 = vmatpush1.msra.mxu0 0.0
        %912 = vmatprep.subr.mxu0 0.0
        %913 = vmatpush1.msra.mxu0 0.0
        %914 = vmatprep.subr.mxu0 0.0
        %915 = vmatpush1.msra.mxu0 0.0
        %916 = vmatprep.subr.mxu0 0.0
        %917 = vmatpush1.msra.mxu0 0.0
        %918 = vmatprep.subr.mxu0 0.0
        %919 = vmatpush1.msra.mxu0 0.0
        %920 = vmatprep.subr.mxu0 0.0
        %921 = vmatpush1.msra.mxu0 0.0
        %922 = vmatprep.subr.mxu0 0.0
        %923 = vmatpush1.msra.mxu0 0.0
        %924 = vmatprep.mubr.f32.mxu0 0.0
        %925 = vmatmul.mubr.f32.gmra.mrb[0].mxu0 %v858
        %v926 = vpop.f32.mrb[0].mxu0
        %v927 = vadd.f32 0.0, %v926
        %v928 = vpop.f32.mrb[0].mxu0
        %929 = vdwg.mxu0
        %931 = vrot.lane.b32.xlu0 %v927, 8
        %v932 = vpop.permute.xlu0 %931
        %vm934 = vcmask 130112
        %935 = vst.msk [vmem:[#allocation3] sm:$0xff] %vm934, %v932
        %v936 = vld [vmem:[#allocation2] sm:$0xff]
        %937 = vrot.lane.b32.xlu0 %v594, 112
        %v938 = vpop.permute.xlu0 %937
        %940 = vrot.lane.b32.xlu0 %v936, 112
        %v941 = vpop.permute.xlu0 %940
        %v942 = vsel %vm598, %v938, 0
        %v944 = vsel %vm598, %v941, 0
        %946 = vmatprep.subr.mxu0 0.0
        %947 = vmatpush1.xpose.msra.mxu0 %v944
        %948 = vmatprep.subr.mxu0 0.0
        %949 = vmatpush1.xpose.msra.mxu0 0.0
        %950 = vmatprep.subr.mxu0 0.0
        %951 = vmatpush1.xpose.msra.mxu0 0.0
        %952 = vmatprep.subr.mxu0 0.0
        %953 = vmatpush1.xpose.msra.mxu0 0.0
        %954 = vmatprep.subr.mxu0 0.0
        %955 = vmatpush1.xpose.msra.mxu0 0.0
        %956 = vmatprep.subr.mxu0 0.0
        %957 = vmatpush1.xpose.msra.mxu0 0.0
        %958 = vmatprep.subr.mxu0 0.0
        %959 = vmatpush1.xpose.msra.mxu0 0.0
        %960 = vmatprep.subr.mxu0 0.0
        %961 = vmatpush1.xpose.msra.mxu0 0.0
        %962 = vmatprep.subr.mxu0 0.0
        %963 = vmatpush1.xpose.msra.mxu0 0.0
        %964 = vmatprep.subr.mxu0 0.0
        %965 = vmatpush1.xpose.msra.mxu0 0.0
        %966 = vmatprep.subr.mxu0 0.0
        %967 = vmatpush1.xpose.msra.mxu0 0.0
        %968 = vmatprep.subr.mxu0 0.0
        %969 = vmatpush1.xpose.msra.mxu0 0.0
        %970 = vmatprep.subr.mxu0 0.0
        %971 = vmatpush1.xpose.msra.mxu0 0.0
        %972 = vmatprep.subr.mxu0 0.0
        %973 = vmatpush1.xpose.msra.mxu0 0.0
        %974 = vmatprep.subr.mxu0 0.0
        %975 = vmatpush1.xpose.msra.mxu0 0.0
        %976 = vmatprep.subr.mxu0 0.0
        %977 = vmatpush1.xpose.msra.mxu0 0.0
        %978 = vmatprep.subr.mxu0 0.0
        %979 = vmatpush1.xpose.msra.mxu0 0.0
        %980 = vmatprep.subr.mxu0 0.0
        %981 = vmatpush1.xpose.msra.mxu0 0.0
        %982 = vmatprep.subr.mxu0 0.0
        %983 = vmatpush1.xpose.msra.mxu0 0.0
        %984 = vmatprep.subr.mxu0 0.0
        %985 = vmatpush1.xpose.msra.mxu0 0.0
        %986 = vmatprep.subr.mxu0 0.0
        %987 = vmatpush1.xpose.msra.mxu0 0.0
        %988 = vmatprep.subr.mxu0 0.0
        %989 = vmatpush1.xpose.msra.mxu0 0.0
        %990 = vmatprep.subr.mxu0 0.0
        %991 = vmatpush1.xpose.msra.mxu0 0.0
        %992 = vmatprep.subr.mxu0 0.0
        %993 = vmatpush1.xpose.msra.mxu0 0.0
        %994 = vmatprep.subr.mxu0 0.0
        %995 = vmatpush1.xpose.msra.mxu0 0.0
        %996 = vmatprep.subr.mxu0 0.0
        %997 = vmatpush1.xpose.msra.mxu0 0.0
        %998 = vmatprep.subr.mxu0 0.0
        %999 = vmatpush1.xpose.msra.mxu0 0.0
        %1000 = vmatprep.subr.mxu0 0.0
        %1001 = vmatpush1.xpose.msra.mxu0 0.0
        %1002 = vmatprep.subr.mxu0 0.0
        %1003 = vmatpush1.xpose.msra.mxu0 0.0
        %1004 = vmatprep.subr.mxu0 0.0
        %1005 = vmatpush1.xpose.msra.mxu0 0.0
        %1006 = vmatprep.subr.mxu0 0.0
        %1007 = vmatpush1.xpose.msra.mxu0 0.0
        %1008 = vmatprep.subr.mxu0 0.0
        %1009 = vmatpush1.xpose.msra.mxu0 0.0
        %1010 = vmatprep.mubr.f32.mxu0 0.0
        %1011 = vmatmul.mubr.f32.gmra.mrb[0].mxu0 %v942
        %v1012 = vpop.f32.mrb[0].mxu0
        %v1013 = vadd.f32 0.0, %v1012
        %v1014 = vpop.f32.mrb[0].mxu0
        %1015 = vdwg.mxu0
        %v1016 = vsel %vm598, %v1013, -inf
        %1017 = vmax.xlane.f32.xlu0 %v1016
        %v1018 = vpop.xlane.xlu0 %1017
        %v1019 = vsub.f32 %v1013, %v1018
        %v1020 = vmul.f32 %v1019, 1.442695
        %v1021 = vpow.pop %v1020
        %v1022 = vsel %vm598, %v1021, 0.0
        %1023 = vadd.xlane.f32.xlu0 %v1022
        %v1024 = vpop.xlane.xlu0 %1023
        %v1025 = vrcp.pop %v1024
        %v1026 = vmul.f32 %v1021, %v1025
        %1027 = vrot.lane.b32.xlu0 %v936, 80
        %v1028 = vpop.permute.xlu0 %1027
        %v1031 = vsel %vm598, %v1026, 0
        %1033 = vmatprep.subr.mxu0 0.0
        %1034 = vmatpush1.msra.mxu0 %v1028
        %1035 = vmatprep.subr.mxu0 0.0
        %1036 = vmatpush1.msra.mxu0 0.0
        %1037 = vmatprep.subr.mxu0 0.0
        %1038 = vmatpush1.msra.mxu0 0.0
        %1039 = vmatprep.subr.mxu0 0.0
        %1040 = vmatpush1.msra.mxu0 0.0
        %1041 = vmatprep.subr.mxu0 0.0
        %1042 = vmatpush1.msra.mxu0 0.0
        %1043 = vmatprep.subr.mxu0 0.0
        %1044 = vmatpush1.msra.mxu0 0.0
        %1045 = vmatprep.subr.mxu0 0.0
        %1046 = vmatpush1.msra.mxu0 0.0
        %1047 = vmatprep.subr.mxu0 0.0
        %1048 = vmatpush1.msra.mxu0 0.0
        %1049 = vmatprep.subr.mxu0 0.0
        %1050 = vmatpush1.msra.mxu0 0.0
        %1051 = vmatprep.subr.mxu0 0.0
        %1052 = vmatpush1.msra.mxu0 0.0
        %1053 = vmatprep.subr.mxu0 0.0
        %1054 = vmatpush1.msra.mxu0 0.0
        %1055 = vmatprep.subr.mxu0 0.0
        %1056 = vmatpush1.msra.mxu0 0.0
        %1057 = vmatprep.subr.mxu0 0.0
        %1058 = vmatpush1.msra.mxu0 0.0
        %1059 = vmatprep.subr.mxu0 0.0
        %1060 = vmatpush1.msra.mxu0 0.0
        %1061 = vmatprep.subr.mxu0 0.0
        %1062 = vmatpush1.msra.mxu0 0.0
        %1063 = vmatprep.subr.mxu0 0.0
        %1064 = vmatpush1.msra.mxu0 0.0
        %1065 = vmatprep.subr.mxu0 0.0
        %1066 = vmatpush1.msra.mxu0 0.0
        %1067 = vmatprep.subr.mxu0 0.0
        %1068 = vmatpush1.msra.mxu0 0.0
        %1069 = vmatprep.subr.mxu0 0.0
        %1070 = vmatpush1.msra.mxu0 0.0
        %1071 = vmatprep.subr.mxu0 0.0
        %1072 = vmatpush1.msra.mxu0 0.0
        %1073 = vmatprep.subr.mxu0 0.0
        %1074 = vmatpush1.msra.mxu0 0.0
        %1075 = vmatprep.subr.mxu0 0.0
        %1076 = vmatpush1.msra.mxu0 0.0
        %1077 = vmatprep.subr.mxu0 0.0
        %1078 = vmatpush1.msra.mxu0 0.0
        %1079 = vmatprep.subr.mxu0 0.0
        %1080 = vmatpush1.msra.mxu0 0.0
        %1081 = vmatprep.subr.mxu0 0.0
        %1082 = vmatpush1.msra.mxu0 0.0
        %1083 = vmatprep.subr.mxu0 0.0
        %1084 = vmatpush1.msra.mxu0 0.0
        %1085 = vmatprep.subr.mxu0 0.0
        %1086 = vmatpush1.msra.mxu0 0.0
        %1087 = vmatprep.subr.mxu0 0.0
        %1088 = vmatpush1.msra.mxu0 0.0
        %1089 = vmatprep.subr.mxu0 0.0
        %1090 = vmatpush1.msra.mxu0 0.0
        %1091 = vmatprep.subr.mxu0 0.0
        %1092 = vmatpush1.msra.mxu0 0.0
        %1093 = vmatprep.subr.mxu0 0.0
        %1094 = vmatpush1.msra.mxu0 0.0
        %1095 = vmatprep.subr.mxu0 0.0
        %1096 = vmatpush1.msra.mxu0 0.0
        %1097 = vmatprep.mubr.f32.mxu0 0.0
        %1098 = vmatmul.mubr.f32.gmra.mrb[0].mxu0 %v1031
        %v1099 = vpop.f32.mrb[0].mxu0
        %v1100 = vadd.f32 0.0, %v1099
        %v1101 = vpop.f32.mrb[0].mxu0
        %1102 = vdwg.mxu0
        %1104 = vrot.lane.b32.xlu0 %v1100, 16
        %v1105 = vpop.permute.xlu0 %1104
        %vm1107 = vcmask 195712
        %1108 = vst.msk [vmem:[#allocation3] sm:$0xff] %vm1107, %v1105
        %v1109 = vld [vmem:[#allocation2] sm:$0xff]
        %1110 = vrot.lane.b32.xlu0 %v594, 104
        %v1111 = vpop.permute.xlu0 %1110
        %1113 = vrot.lane.b32.xlu0 %v1109, 104
        %v1114 = vpop.permute.xlu0 %1113
        %v1115 = vsel %vm598, %v1111, 0
        %v1117 = vsel %vm598, %v1114, 0
        %1119 = vmatprep.subr.mxu0 0.0
        %1120 = vmatpush1.xpose.msra.mxu0 %v1117
        %1121 = vmatprep.subr.mxu0 0.0
        %1122 = vmatpush1.xpose.msra.mxu0 0.0
        %1123 = vmatprep.subr.mxu0 0.0
        %1124 = vmatpush1.xpose.msra.mxu0 0.0
        %1125 = vmatprep.subr.mxu0 0.0
        %1126 = vmatpush1.xpose.msra.mxu0 0.0
        %1127 = vmatprep.subr.mxu0 0.0
        %1128 = vmatpush1.xpose.msra.mxu0 0.0
        %1129 = vmatprep.subr.mxu0 0.0
        %1130 = vmatpush1.xpose.msra.mxu0 0.0
        %1131 = vmatprep.subr.mxu0 0.0
        %1132 = vmatpush1.xpose.msra.mxu0 0.0
        %1133 = vmatprep.subr.mxu0 0.0
        %1134 = vmatpush1.xpose.msra.mxu0 0.0
        %1135 = vmatprep.subr.mxu0 0.0
        %1136 = vmatpush1.xpose.msra.mxu0 0.0
        %1137 = vmatprep.subr.mxu0 0.0
        %1138 = vmatpush1.xpose.msra.mxu0 0.0
        %1139 = vmatprep.subr.mxu0 0.0
        %1140 = vmatpush1.xpose.msra.mxu0 0.0
        %1141 = vmatprep.subr.mxu0 0.0
        %1142 = vmatpush1.xpose.msra.mxu0 0.0
        %1143 = vmatprep.subr.mxu0 0.0
        %1144 = vmatpush1.xpose.msra.mxu0 0.0
        %1145 = vmatprep.subr.mxu0 0.0
        %1146 = vmatpush1.xpose.msra.mxu0 0.0
        %1147 = vmatprep.subr.mxu0 0.0
        %1148 = vmatpush1.xpose.msra.mxu0 0.0
        %1149 = vmatprep.subr.mxu0 0.0
        %1150 = vmatpush1.xpose.msra.mxu0 0.0
        %1151 = vmatprep.subr.mxu0 0.0
        %1152 = vmatpush1.xpose.msra.mxu0 0.0
        %1153 = vmatprep.subr.mxu0 0.0
        %1154 = vmatpush1.xpose.msra.mxu0 0.0
        %1155 = vmatprep.subr.mxu0 0.0
        %1156 = vmatpush1.xpose.msra.mxu0 0.0
        %1157 = vmatprep.subr.mxu0 0.0
        %1158 = vmatpush1.xpose.msra.mxu0 0.0
        %1159 = vmatprep.subr.mxu0 0.0
        %1160 = vmatpush1.xpose.msra.mxu0 0.0
        %1161 = vmatprep.subr.mxu0 0.0
        %1162 = vmatpush1.xpose.msra.mxu0 0.0
        %1163 = vmatprep.subr.mxu0 0.0
        %1164 = vmatpush1.xpose.msra.mxu0 0.0
        %1165 = vmatprep.subr.mxu0 0.0
        %1166 = vmatpush1.xpose.msra.mxu0 0.0
        %1167 = vmatprep.subr.mxu0 0.0
        %1168 = vmatpush1.xpose.msra.mxu0 0.0
        %1169 = vmatprep.subr.mxu0 0.0
        %1170 = vmatpush1.xpose.msra.mxu0 0.0
        %1171 = vmatprep.subr.mxu0 0.0
        %1172 = vmatpush1.xpose.msra.mxu0 0.0
        %1173 = vmatprep.subr.mxu0 0.0
        %1174 = vmatpush1.xpose.msra.mxu0 0.0
        %1175 = vmatprep.subr.mxu0 0.0
        %1176 = vmatpush1.xpose.msra.mxu0 0.0
        %1177 = vmatprep.subr.mxu0 0.0
        %1178 = vmatpush1.xpose.msra.mxu0 0.0
        %1179 = vmatprep.subr.mxu0 0.0
        %1180 = vmatpush1.xpose.msra.mxu0 0.0
        %1181 = vmatprep.subr.mxu0 0.0
        %1182 = vmatpush1.xpose.msra.mxu0 0.0
        %1183 = vmatprep.mubr.f32.mxu0 0.0
        %1184 = vmatmul.mubr.f32.gmra.mrb[0].mxu0 %v1115
        %v1185 = vpop.f32.mrb[0].mxu0
        %v1186 = vadd.f32 0.0, %v1185
        %v1187 = vpop.f32.mrb[0].mxu0
        %1188 = vdwg.mxu0
        %v1189 = vsel %vm598, %v1186, -inf
        %1190 = vmax.xlane.f32.xlu0 %v1189
        %v1191 = vpop.xlane.xlu0 %1190
        %v1192 = vsub.f32 %v1186, %v1191
        %v1193 = vmul.f32 %v1192, 1.442695
        %v1194 = vpow.pop %v1193
        %v1195 = vsel %vm598, %v1194, 0.0
        %1196 = vadd.xlane.f32.xlu0 %v1195
        %v1197 = vpop.xlane.xlu0 %1196
        %v1198 = vrcp.pop %v1197
        %v1199 = vmul.f32 %v1194, %v1198
        %1200 = vrot.lane.b32.xlu0 %v1109, 72
        %v1201 = vpop.permute.xlu0 %1200
        %v1204 = vsel %vm598, %v1199, 0
        %1206 = vmatprep.subr.mxu0 0.0
        %1207 = vmatpush1.msra.mxu0 %v1201
        %1208 = vmatprep.subr.mxu0 0.0
        %1209 = vmatpush1.msra.mxu0 0.0
        %1210 = vmatprep.subr.mxu0 0.0
        %1211 = vmatpush1.msra.mxu0 0.0
        %1212 = vmatprep.subr.mxu0 0.0
        %1213 = vmatpush1.msra.mxu0 0.0
        %1214 = vmatprep.subr.mxu0 0.0
        %1215 = vmatpush1.msra.mxu0 0.0
        %1216 = vmatprep.subr.mxu0 0.0
        %1217 = vmatpush1.msra.mxu0 0.0
        %1218 = vmatprep.subr.mxu0 0.0
        %1219 = vmatpush1.msra.mxu0 0.0
        %1220 = vmatprep.subr.mxu0 0.0
        %1221 = vmatpush1.msra.mxu0 0.0
        %1222 = vmatprep.subr.mxu0 0.0
        %1223 = vmatpush1.msra.mxu0 0.0
        %1224 = vmatprep.subr.mxu0 0.0
        %1225 = vmatpush1.msra.mxu0 0.0
        %1226 = vmatprep.subr.mxu0 0.0
        %1227 = vmatpush1.msra.mxu0 0.0
        %1228 = vmatprep.subr.mxu0 0.0
        %1229 = vmatpush1.msra.mxu0 0.0
        %1230 = vmatprep.subr.mxu0 0.0
        %1231 = vmatpush1.msra.mxu0 0.0
        %1232 = vmatprep.subr.mxu0 0.0
        %1233 = vmatpush1.msra.mxu0 0.0
        %1234 = vmatprep.subr.mxu0 0.0
        %1235 = vmatpush1.msra.mxu0 0.0
        %1236 = vmatprep.subr.mxu0 0.0
        %1237 = vmatpush1.msra.mxu0 0.0
        %1238 = vmatprep.subr.mxu0 0.0
        %1239 = vmatpush1.msra.mxu0 0.0
        %1240 = vmatprep.subr.mxu0 0.0
        %1241 = vmatpush1.msra.mxu0 0.0
        %1242 = vmatprep.subr.mxu0 0.0
        %1243 = vmatpush1.msra.mxu0 0.0
        %1244 = vmatprep.subr.mxu0 0.0
        %1245 = vmatpush1.msra.mxu0 0.0
        %1246 = vmatprep.subr.mxu0 0.0
        %1247 = vmatpush1.msra.mxu0 0.0
        %1248 = vmatprep.subr.mxu0 0.0
        %1249 = vmatpush1.msra.mxu0 0.0
        %1250 = vmatprep.subr.mxu0 0.0
        %1251 = vmatpush1.msra.mxu0 0.0
        %1252 = vmatprep.subr.mxu0 0.0
        %1253 = vmatpush1.msra.mxu0 0.0
        %1254 = vmatprep.subr.mxu0 0.0
        %1255 = vmatpush1.msra.mxu0 0.0
        %1256 = vmatprep.subr.mxu0 0.0
        %1257 = vmatpush1.msra.mxu0 0.0
        %1258 = vmatprep.subr.mxu0 0.0
        %1259 = vmatpush1.msra.mxu0 0.0
        %1260 = vmatprep.subr.mxu0 0.0
        %1261 = vmatpush1.msra.mxu0 0.0
        %1262 = vmatprep.subr.mxu0 0.0
        %1263 = vmatpush1.msra.mxu0 0.0
        %1264 = vmatprep.subr.mxu0 0.0
        %1265 = vmatpush1.msra.mxu0 0.0
        %1266 = vmatprep.subr.mxu0 0.0
        %1267 = vmatpush1.msra.mxu0 0.0
        %1268 = vmatprep.subr.mxu0 0.0
        %1269 = vmatpush1.msra.mxu0 0.0
        %1270 = vmatprep.mubr.f32.mxu0 0.0
        %1271 = vmatmul.mubr.f32.gmra.mrb[0].mxu0 %v1204
        %v1272 = vpop.f32.mrb[0].mxu0
        %v1273 = vadd.f32 0.0, %v1272
        %v1274 = vpop.f32.mrb[0].mxu0
        %1275 = vdwg.mxu0
        %1277 = vrot.lane.b32.xlu0 %v1273, 24
        %v1278 = vpop.permute.xlu0 %1277
        %vm1280 = vcmask 261312
        %1281 = vst.msk [vmem:[#allocation3] sm:$0xff] %vm1280, %v1278
        %v1282 = vld [vmem:[#allocation3] sm:$0xff]
        %v1283 = vld [vmem:[#allocation12] sm:$0xff]
        %v1284 = vld [vmem:[#allocation12 + $0x8] sm:$0xff]
        %v1285 = vld [vmem:[#allocation12 + $0x10] sm:$0xff]
        %v1286 = vld [vmem:[#allocation12 + $0x18] sm:$0xff]
        %v1287 = vld [vmem:[%s7] sm:$0x1]
        %v1289 = vlaneseq
        %v1290 = vshrl.u32 %v1289, 7
        %v1291 = vsub.s32 0, %v1290
        %v1292 = vrot.slane %v1287, %v1291
        %v1295 = vsel %vm523, %v1282, 0
        %1297 = vmatprep.subr.mxu0 0.0
        %1298 = vmatpush1.msra.mxu0 %v1283
        %1299 = vmatprep.subr.mxu0 0.0
        %1300 = vmatpush1.msra.mxu0 %v1284
        %1301 = vmatprep.subr.mxu0 0.0
        %1302 = vmatpush1.msra.mxu0 %v1285
        %1303 = vmatprep.subr.mxu0 0.0
        %1304 = vmatpush1.msra.mxu0 %v1286
        %1305 = vmatprep.subr.mxu0 0.0
        %1306 = vmatpush1.msra.mxu0 0.0
        %1307 = vmatprep.subr.mxu0 0.0
        %1308 = vmatpush1.msra.mxu0 0.0
        %1309 = vmatprep.subr.mxu0 0.0
        %1310 = vmatpush1.msra.mxu0 0.0
        %1311 = vmatprep.subr.mxu0 0.0
        %1312 = vmatpush1.msra.mxu0 0.0
        %1313 = vmatprep.subr.mxu0 0.0
        %1314 = vmatpush1.msra.mxu0 0.0
        %1315 = vmatprep.subr.mxu0 0.0
        %1316 = vmatpush1.msra.mxu0 0.0
        %1317 = vmatprep.subr.mxu0 0.0
        %1318 = vmatpush1.msra.mxu0 0.0
        %1319 = vmatprep.subr.mxu0 0.0
        %1320 = vmatpush1.msra.mxu0 0.0
        %1321 = vmatprep.subr.mxu0 0.0
        %1322 = vmatpush1.msra.mxu0 0.0
        %1323 = vmatprep.subr.mxu0 0.0
        %1324 = vmatpush1.msra.mxu0 0.0
        %1325 = vmatprep.subr.mxu0 0.0
        %1326 = vmatpush1.msra.mxu0 0.0
        %1327 = vmatprep.subr.mxu0 0.0
        %1328 = vmatpush1.msra.mxu0 0.0
        %1329 = vmatprep.subr.mxu0 0.0
        %1330 = vmatpush1.msra.mxu0 0.0
        %1331 = vmatprep.subr.mxu0 0.0
        %1332 = vmatpush1.msra.mxu0 0.0
        %1333 = vmatprep.subr.mxu0 0.0
        %1334 = vmatpush1.msra.mxu0 0.0
        %1335 = vmatprep.subr.mxu0 0.0
        %1336 = vmatpush1.msra.mxu0 0.0
        %1337 = vmatprep.subr.mxu0 0.0
        %1338 = vmatpush1.msra.mxu0 0.0
        %1339 = vmatprep.subr.mxu0 0.0
        %1340 = vmatpush1.msra.mxu0 0.0
        %1341 = vmatprep.subr.mxu0 0.0
        %1342 = vmatpush1.msra.mxu0 0.0
        %1343 = vmatprep.subr.mxu0 0.0
        %1344 = vmatpush1.msra.mxu0 0.0
        %1345 = vmatprep.subr.mxu0 0.0
        %1346 = vmatpush1.msra.mxu0 0.0
        %1347 = vmatprep.subr.mxu0 0.0
        %1348 = vmatpush1.msra.mxu0 0.0
        %1349 = vmatprep.subr.mxu0 0.0
        %1350 = vmatpush1.msra.mxu0 0.0
        %1351 = vmatprep.subr.mxu0 0.0
        %1352 = vmatpush1.msra.mxu0 0.0
        %1353 = vmatprep.subr.mxu0 0.0
        %1354 = vmatpush1.msra.mxu0 0.0
        %1355 = vmatprep.subr.mxu0 0.0
        %1356 = vmatpush1.msra.mxu0 0.0
        %1357 = vmatprep.subr.mxu0 0.0
        %1358 = vmatpush1.msra.mxu0 0.0
        %1359 = vmatprep.subr.mxu0 0.0
        %1360 = vmatpush1.msra.mxu0 0.0
        %1361 = vmatprep.mubr.f32.mxu0 0.0
        %1362 = vmatmul.mubr.f32.gmra.mrb[0].mxu0 %v1295
        %v1363 = vpop.f32.mrb[0].mxu0
        %v1364 = vadd.f32 %v1292, %v1363
        %v1365 = vpop.f32.mrb[0].mxu0
        %1366 = vdwg.mxu0
        %1367 = vst.msk [vmem:[%s418] sm:$0xff] %vm523, %v1364
        %s1368 = sand.u32 %s231, 1
        %s1369 = scalar_lea.sflag [#allocation6], %s1368
        %s1370 = sand.u32 %s231, 1
        %s1371 = smul.addr %s1370, 8
        %s1372 = scalar_lea.vmem [#allocation13], %s1371
        // Predicated region
        $region77: #{tpu_custom_call.1} parent=51 // pred_check
          %p1373 = pneg %p241
        $region78: #{tpu_custom_call.1} parent=51 // pred_check_branch
          %1375 = sbr.rel (%p1373) target = $region80
        $region79: #{tpu_custom_call.1} parent=51 // pred_region
          %s1377 = ssub.s32 128, 128
          %1378 = vsyncadd %s1369, %s1377
          %s1379 = smul.addr %s33, 2
          %s1380 = sadd.s32 %s34, %s1379
          %s1381 = smul.addr %s1380, 128
          %s1382 = scalar_lea.hbm %s8, %s1381
          %s1384 = sshll.u32 %s1372, 4
          %s1385 = int_to_ptr.vmem [resolvable:$true] %s1384
          %1387 = dma.vmem_to_hbm [thread:$0]  %s1385, 128, %s1382, %s1369
        $region80: #{tpu_custom_call.1} parent=51 // pred_fallthru
          _
      $region52: #{tpu_custom_call.1} parent=5 // pred_fallthru
        _
      %p1388 = scmp.le.s32.totalorder 2, %s24
      // Predicated region
      $region81: #{tpu_custom_call.1} parent=5 // pred_check
        %p1389 = pneg %p1388
      $region82: #{tpu_custom_call.1} parent=5 // pred_check_branch
        %1391 = sbr.rel (%p1389) target = $region84
      $region83: #{tpu_custom_call.1} parent=5 // pred_region
        %s1392 = ssub.s32 %s24, 2
        // Predicated region
        $region85: #{tpu_custom_call.1} parent=83 // pred_check
          %p1393 = pneg %p247
        $region86: #{tpu_custom_call.1} parent=83 // pred_check_branch
          %1395 = sbr.rel (%p1393) target = $region88
        $region87: #{tpu_custom_call.1} parent=83 // pred_region
          %s1396 = sand.u32 %s232, 1
          %s1397 = scalar_lea.sflag [#allocation6], %s1396
          %s1398 = sand.u32 %s232, 1
          %s1399 = smul.addr %s1398, 8
          %s1400 = scalar_lea.vmem [#allocation13], %s1399
          %1401 = dma.done %s1397, 128
        $region88: #{tpu_custom_call.1} parent=83 // pred_fallthru
          _
      $region84: #{tpu_custom_call.1} parent=5 // pred_fallthru
        _
    $region6: #{tpu_custom_call.1} parent=1 // loop_footer
      %s28 = sadd.s32 1, %s24
    $region7: #{tpu_custom_call.1} parent=1 // loop_footer_branch
      %23 = sbr.rel target = $region3
    $region8: #{tpu_custom_call.1} parent=1 // loop_exit
      _
    %1402 = vsyncpa [#allocation5], 1
    %s1403 = scalar_lea.sflag [#allocation5], 1
    %1404 = vsyncpa %s1403, 1
    %1405 = vsyncpa [#allocation8], 1
    %s1406 = scalar_lea.sflag [#allocation8], 1
    %1407 = vsyncpa %s1406, 1
    %1408 = vsyncpa [#allocation11], 1
    %1409 = vsyncpa [#allocation6], 1
    %s1410 = scalar_lea.sflag [#allocation6], 1
    %1411 = vsyncpa %s1410, 1

// kernel: tpu_custom_call.1
$region0: #{tpu_custom_call.1}
  #allocation0 [shape = 'u32[]', space=smem, size = 0x4, offset = 0x4, fixed_abs, tag = 'smem constant byte address 0x4 - core index']
  #allocation1 [shape = 'u32[144,128]{1,0:T(1,128)}', space=vmem, size = 0x12000, scoped, tag = 'internal scratch']
  #allocation2 [shape = 'f32[8,64]{1,0:T(8,128)}', space=vmem, size = 0x1000, scoped, tag = 'scratch operand']
  #allocation3 [shape = 'f32[8,32]{1,0:T(8,128)}', space=vmem, size = 0x1000, scoped, tag = 'scratch operand']
  %s0 = inlined_call_operand.hbm [shape: f32[2,16,32], index: 0, kind: input, shape index: {}]
  %s1 = inlined_call_operand.hbm [shape: f32[2,8,32], index: 1, kind: input, shape index: {}]
  %s2 = inlined_call_operand.hbm [shape: f32[32,32], index: 2, kind: input, shape index: {}]
  %s3 = inlined_call_operand.vmem [shape: f32[1,32], index: 3, kind: input, shape index: {}]
  %s4 = inlined_call_operand.hbm [shape: f32[32,64], index: 4, kind: input, shape index: {}]
  %s5 = inlined_call_operand.vmem [shape: f32[1,64], index: 5, kind: input, shape index: {}]
  %s6 = inlined_call_operand.hbm [shape: f32[32,32], index: 6, kind: input, shape index: {}]
  %s7 = inlined_call_operand.vmem [shape: f32[1,32], index: 7, kind: input, shape index: {}]
  %s8 = inlined_call_operand.hbm [shape: f32[2,16,32], index: 8, kind: output, shape index: {}]
  %s9 = sld [smem:[#allocation0]]
  $region89: #{tpu_custom_call.1} parent=0
    _
  %s11 = ssub.s32 1, %s9
  %s12 = scalar_select 0, %s11, %s9
  $region1: #{tpu_custom_call.1} parent=0
    #allocation4 [shape = 'u8[8192]{0}', space=vmem, size = 0x2000, scoped, tag = 'input window, operand 0']
    #allocation5 [shape = 's32[2]{0}', space=sflag, size = 0x8, scoped, tag = 'scoped memory for tpu_custom_call.1']
    #allocation6 [shape = 's32[2]{0}', space=sflag, size = 0x8, scoped, tag = 'scoped memory for tpu_custom_call.1']
    #allocation7 [shape = 'u8[8192]{0}', space=vmem, size = 0x2000, scoped, tag = 'input window, operand 1']
    #allocation8 [shape = 's32[2]{0}', space=sflag, size = 0x8, scoped, tag = 'scoped memory for tpu_custom_call.1']
    #allocation9 [shape = 'u8[16384]{0}', space=vmem, size = 0x4000, scoped, tag = 'input window, operand 2, single buffered']
    #allocation10 [shape = 'u8[16384]{0}', space=vmem, size = 0x4000, scoped, tag = 'input window, operand 4, single buffered']
    #allocation11 [shape = 's32[1]{0}', space=sflag, size = 0x4, scoped, tag = 'scoped memory for tpu_custom_call.1']
    #allocation12 [shape = 'u8[16384]{0}', space=vmem, size = 0x4000, scoped, tag = 'input window, operand 6, single buffered']
    #allocation13 [shape = 'u8[8192]{0}', space=vmem, size = 0x2000, scoped, tag = 'output window, operand 0']
    %13 = vsyncpa [#allocation5], 0
    %s14 = scalar_lea.sflag [#allocation5], 1
    %15 = vsyncpa %s14, 0
    %16 = vsyncpa [#allocation8], 0
    %s17 = scalar_lea.sflag [#allocation8], 1
    %18 = vsyncpa %s17, 0
    %19 = vsyncpa [#allocation11], 0
    %20 = vsyncpa [#allocation6], 0
    %s21 = scalar_lea.sflag [#allocation6], 1
    %22 = vsyncpa %s21, 0
    loop: start=0, step=1, limit=6
    $region2: #{tpu_custom_call.1} parent=1 // loop_pre_header
      _
    $region3: #{tpu_custom_call.1} parent=1 // loop_header
      %s24 = sphi 0, %s28
      %p25 = scmp.ge.s32.totalorder %s24, 6
      %s31 = sphi 0, %s43
      %s32 = sphi 0, %s39
      %s33 = sphi 0, %s31
      %s34 = sphi 0, %s32
      %s35 = sphi 0, %s33
      %s36 = sphi 0, %s34
      %s48 = sphi 0, %s50
      %s51 = sphi 0, %s48
      %s52 = sphi 0, %s51
      %s68 = sphi 0, %s52
      %s74 = sphi 0, %s76
      %s77 = sphi 0, %s74
      %s78 = sphi 0, %s77
      %s94 = sphi 0, %s78
      %s98 = sphi 0, %s98
      %s100 = sphi 0, %s98
      %s101 = sphi 0, %s100
      %s115 = sphi 0, %s101
      %s119 = sphi 0, %s119
      %s121 = sphi 0, %s119
      %s122 = sphi 0, %s121
      %s136 = sphi 0, %s122
      %s140 = sphi 0, %s140
      %s142 = sphi 0, %s140
      %s143 = sphi 0, %s142
      %s157 = sphi 0, %s143
      %s161 = sphi 0, %s161
      %s163 = sphi 0, %s161
      %s164 = sphi 0, %s163
      %s178 = sphi 0, %s164
      %s182 = sphi 0, %s182
      %s184 = sphi 0, %s182
      %s185 = sphi 0, %s184
      %s199 = sphi 0, %s185
      %s203 = sphi 0, %s203
      %s205 = sphi 0, %s203
      %s206 = sphi 0, %s205
      %s220 = sphi 0, %s206
      %s228 = sphi 0, %s230
      %s231 = sphi 0, %s228
      %s232 = sphi 0, %s231
      %s248 = sphi 0, %s232
    $region4: #{tpu_custom_call.1} parent=1 // loop_header_branch
      %27 = sbr.rel (%p25) target = $region8
    $region5: #{tpu_custom_call.1} parent=1 // loop_body
      %s29 = ssub.s32 %s24, 1
      %s30 = ssub.s32 %s24, 2
      %s37 = sadd.s32 1, %s32
      %p38 = scmp.ge.s32.totalorder %s37, 2
      %s39 = scalar_select %p38, 0, %s37
      %s40 = sadd.s32 1, %s31
      %s41 = scalar_select %p38, %s40, %s31
      %p42 = scmp.ge.s32.totalorder %s41, 2
      %s43 = scalar_select %p42, 0, %s41
      %s44 = ssub.s32 %s31, %s43
      %s45 = ssub.s32 %s32, %s39
      %s46 = sor.u32 %s44, %s45
      %p47 = scmp.eq.s32.totalorder %s46, 0
      %s49 = sadd.s32 %s48, 1
      %s50 = scalar_select %p47, %s48, %s49
      %p53 = pneg %p47
      %p54 = scmp.eq.s32.totalorder %s24, 3
      %p55 = por %p53, %p54
      %p56 = scmp.ne.s32.totalorder %s48, %s51
      %p57 = scmp.eq.s32.totalorder %s24, 0
      %p58 = por %p56, %p57
      %p59 = scmp.ne.s32.totalorder %s48, %s51
      %p60 = scmp.eq.s32.totalorder %s29, 3
      %p61 = por %p59, %p60
      %p62 = scmp.ne.s32.totalorder %s51, %s52
      %p63 = scmp.eq.s32.totalorder %s29, 0
      %p64 = por %p62, %p63
      %p65 = scmp.ne.s32.totalorder %s51, %s52
      %p66 = scmp.eq.s32.totalorder %s30, 3
      %p67 = por %p65, %p66
      %p69 = scmp.ne.s32.totalorder %s52, %s68
      %p70 = scmp.eq.s32.totalorder %s30, 0
      %p71 = por %p69, %p70
      %s72 = ssub.s32 %s31, %s43
      %p73 = scmp.eq.s32.totalorder %s72, 0
      %s75 = sadd.s32 %s74, 1
      %s76 = scalar_select %p73, %s74, %s75
      %p79 = pneg %p73
      %p80 = scmp.eq.s32.totalorder %s24, 3
      %p81 = por %p79, %p80
      %p82 = scmp.ne.s32.totalorder %s74, %s77
      %p83 = scmp.eq.s32.totalorder %s24, 0
      %p84 = por %p82, %p83
      %p85 = scmp.ne.s32.totalorder %s74, %s77
      %p86 = scmp.eq.s32.totalorder %s29, 3
      %p87 = por %p85, %p86
      %p88 = scmp.ne.s32.totalorder %s77, %s78
      %p89 = scmp.eq.s32.totalorder %s29, 0
      %p90 = por %p88, %p89
      %p91 = scmp.ne.s32.totalorder %s77, %s78
      %p92 = scmp.eq.s32.totalorder %s30, 3
      %p93 = por %p91, %p92
      %p95 = scmp.ne.s32.totalorder %s78, %s94
      %p96 = scmp.eq.s32.totalorder %s30, 0
      %p97 = por %p95, %p96
      %s99 = sadd.s32 %s98, 1
      %p102 = scmp.eq.s32.totalorder %s24, 3
      %p103 = scmp.ne.s32.totalorder %s98, %s100
      %p104 = scmp.eq.s32.totalorder %s24, 0
      %p105 = por %p103, %p104
      %p106 = scmp.ne.s32.totalorder %s98, %s100
      %p107 = scmp.eq.s32.totalorder %s29, 3
      %p108 = por %p106, %p107
      %p109 = scmp.ne.s32.totalorder %s100, %s101
      %p110 = scmp.eq.s32.totalorder %s29, 0
      %p111 = por %p109, %p110
      %p112 = scmp.ne.s32.totalorder %s100, %s101
      %p113 = scmp.eq.s32.totalorder %s30, 3
      %p114 = por %p112, %p113
      %p116 = scmp.ne.s32.totalorder %s101, %s115
      %p117 = scmp.eq.s32.totalorder %s30, 0
      %p118 = por %p116, %p117
      %s120 = sadd.s32 %s119, 1
      %p123 = scmp.eq.s32.totalorder %s24, 3
      %p124 = scmp.ne.s32.totalorder %s119, %s121
      %p125 = scmp.eq.s32.totalorder %s24, 0
      %p126 = por %p124, %p125
      %p127 = scmp.ne.s32.totalorder %s119, %s121
      %p128 = scmp.eq.s32.totalorder %s29, 3
      %p129 = por %p127, %p128
      %p130 = scmp.ne.s32.totalorder %s121, %s122
      %p131 = scmp.eq.s32.totalorder %s29, 0
      %p132 = por %p130, %p131
      %p133 = scmp.ne.s32.totalorder %s121, %s122
      %p134 = scmp.eq.s32.totalorder %s30, 3
      %p135 = por %p133, %p134
      %p137 = scmp.ne.s32.totalorder %s122, %s136
      %p138 = scmp.eq.s32.totalorder %s30, 0
      %p139 = por %p137, %p138
      %s141 = sadd.s32 %s140, 1
      %p144 = scmp.eq.s32.totalorder %s24, 3
      %p145 = scmp.ne.s32.totalorder %s140, %s142
      %p146 = scmp.eq.s32.totalorder %s24, 0
      %p147 = por %p145, %p146
      %p148 = scmp.ne.s32.totalorder %s140, %s142
      %p149 = scmp.eq.s32.totalorder %s29, 3
      %p150 = por %p148, %p149
      %p151 = scmp.ne.s32.totalorder %s142, %s143
      %p152 = scmp.eq.s32.totalorder %s29, 0
      %p153 = por %p151, %p152
      %p154 = scmp.ne.s32.totalorder %s142, %s143
      %p155 = scmp.eq.s32.totalorder %s30, 3
      %p156 = por %p154, %p155
      %p158 = scmp.ne.s32.totalorder %s143, %s157
      %p159 = scmp.eq.s32.totalorder %s30, 0
      %p160 = por %p158, %p159
      %s162 = sadd.s32 %s161, 1
      %p165 = scmp.eq.s32.totalorder %s24, 3
      %p166 = scmp.ne.s32.totalorder %s161, %s163
      %p167 = scmp.eq.s32.totalorder %s24, 0
      %p168 = por %p166, %p167
      %p169 = scmp.ne.s32.totalorder %s161, %s163
      %p170 = scmp.eq.s32.totalorder %s29, 3
      %p171 = por %p169, %p170
      %p172 = scmp.ne.s32.totalorder %s163, %s164
      %p173 = scmp.eq.s32.totalorder %s29, 0
      %p174 = por %p172, %p173
      %p175 = scmp.ne.s32.totalorder %s163, %s164
      %p176 = scmp.eq.s32.totalorder %s30, 3
      %p177 = por %p175, %p176
      %p179 = scmp.ne.s32.totalorder %s164, %s178
      %p180 = scmp.eq.s32.totalorder %s30, 0
      %p181 = por %p179, %p180
      %s183 = sadd.s32 %s182, 1
      %p186 = scmp.eq.s32.totalorder %s24, 3
      %p187 = scmp.ne.s32.totalorder %s182, %s184
      %p188 = scmp.eq.s32.totalorder %s24, 0
      %p189 = por %p187, %p188
      %p190 = scmp.ne.s32.totalorder %s182, %s184
      %p191 = scmp.eq.s32.totalorder %s29, 3
      %p192 = por %p190, %p191
      %p193 = scmp.ne.s32.totalorder %s184, %s185
      %p194 = scmp.eq.s32.totalorder %s29, 0
      %p195 = por %p193, %p194
      %p196 = scmp.ne.s32.totalorder %s184, %s185
      %p197 = scmp.eq.s32.totalorder %s30, 3
      %p198 = por %p196, %p197
      %p200 = scmp.ne.s32.totalorder %s185, %s199
      %p201 = scmp.eq.s32.totalorder %s30, 0
      %p202 = por %p200, %p201
      %s204 = sadd.s32 %s203, 1
      %p207 = scmp.eq.s32.totalorder %s24, 3
      %p208 = scmp.ne.s32.totalorder %s203, %s205
      %p209 = scmp.eq.s32.totalorder %s24, 0
      %p210 = por %p208, %p209
      %p211 = scmp.ne.s32.totalorder %s203, %s205
      %p212 = scmp.eq.s32.totalorder %s29, 3
      %p213 = por %p211, %p212
      %p214 = scmp.ne.s32.totalorder %s205, %s206
      %p215 = scmp.eq.s32.totalorder %s29, 0
      %p216 = por %p214, %p215
      %p217 = scmp.ne.s32.totalorder %s205, %s206
      %p218 = scmp.eq.s32.totalorder %s30, 3
      %p219 = por %p217, %p218
      %p221 = scmp.ne.s32.totalorder %s206, %s220
      %p222 = scmp.eq.s32.totalorder %s30, 0
      %p223 = por %p221, %p222
      %s224 = ssub.s32 %s31, %s43
      %s225 = ssub.s32 %s32, %s39
      %s226 = sor.u32 %s224, %s225
      %p227 = scmp.eq.s32.totalorder %s226, 0
      %s229 = sadd.s32 %s228, 1
      %s230 = scalar_select %p227, %s228, %s229
      %p233 = pneg %p227
      %p234 = scmp.eq.s32.totalorder %s24, 3
      %p235 = por %p233, %p234
      %p236 = scmp.ne.s32.totalorder %s228, %s231
      %p237 = scmp.eq.s32.totalorder %s24, 0
      %p238 = por %p236, %p237
      %p239 = scmp.ne.s32.totalorder %s228, %s231
      %p240 = scmp.eq.s32.totalorder %s29, 3
      %p241 = por %p239, %p240
      %p242 = scmp.ne.s32.totalorder %s231, %s232
      %p243 = scmp.eq.s32.totalorder %s29, 0
      %p244 = por %p242, %p243
      %p245 = scmp.ne.s32.totalorder %s231, %s232
      %p246 = scmp.eq.s32.totalorder %s30, 3
      %p247 = por %p245, %p246
      %p249 = scmp.ne.s32.totalorder %s232, %s248
      %p250 = scmp.eq.s32.totalorder %s30, 0
      %p251 = por %p249, %p250
      %p252 = scmp.le.s32.totalorder 1, %s24
      %p253 = scmp.lt.s32.totalorder %s24, 5
      %p254 = pnand %p252, %p253
      %p255 = pneg %p254
      // Predicated region
      $region9: #{tpu_custom_call.1} parent=5 // pred_check
        _
      $region10: #{tpu_custom_call.1} parent=5 // pred_check_branch
        %257 = sbr.rel (%p254) target = $region12
      $region11: #{tpu_custom_call.1} parent=5 // pred_region
        %s258 = ssub.s32 %s24, 1
        // Predicated region
        $region13: #{tpu_custom_call.1} parent=11 // pred_check
          %p259 = pneg %p111
        $region14: #{tpu_custom_call.1} parent=11 // pred_check_branch
          %261 = sbr.rel (%p259) target = $region16
        $region15: #{tpu_custom_call.1} parent=11 // pred_region
          %s263 = ssub.s32 512, 512
          %264 = vsyncadd [#allocation8], %s263
          %s265 = sshll.u32 [#allocation9], 4
          %s266 = int_to_ptr.vmem [resolvable:$true] %s265
          %271 = dma.hbm_to_vmem [thread:$0]  %s2, 512, %s266, [#allocation8], 128, 128, 8
        $region16: #{tpu_custom_call.1} parent=11 // pred_fallthru
          _
        // Predicated region
        $region17: #{tpu_custom_call.1} parent=11 // pred_check
          %p272 = pneg %p132
        $region18: #{tpu_custom_call.1} parent=11 // pred_check_branch
          %274 = sbr.rel (%p272) target = $region20
        $region19: #{tpu_custom_call.1} parent=11 // pred_region
          _
        $region20: #{tpu_custom_call.1} parent=11 // pred_fallthru
          _
        // Predicated region
        $region21: #{tpu_custom_call.1} parent=11 // pred_check
          %p275 = pneg %p153
        $region22: #{tpu_custom_call.1} parent=11 // pred_check_branch
          %277 = sbr.rel (%p275) target = $region24
        $region23: #{tpu_custom_call.1} parent=11 // pred_region
          %s279 = ssub.s32 512, 512
          %280 = vsyncadd [#allocation11], %s279
          %s281 = sshll.u32 [#allocation10], 4
          %s282 = int_to_ptr.vmem [resolvable:$true] %s281
          %287 = dma.hbm_to_vmem [thread:$0]  %s4, 512, %s282, [#allocation11], 128, 128, 8
        $region24: #{tpu_custom_call.1} parent=11 // pred_fallthru
          _
        // Predicated region
        $region25: #{tpu_custom_call.1} parent=11 // pred_check
          %p288 = pneg %p174
        $region26: #{tpu_custom_call.1} parent=11 // pred_check_branch
          %290 = sbr.rel (%p288) target = $region28
        $region27: #{tpu_custom_call.1} parent=11 // pred_region
          _
        $region28: #{tpu_custom_call.1} parent=11 // pred_fallthru
          _
        // Predicated region
        $region29: #{tpu_custom_call.1} parent=11 // pred_check
          %p291 = pneg %p195
        $region30: #{tpu_custom_call.1} parent=11 // pred_check_branch
          %293 = sbr.rel (%p291) target = $region32
        $region31: #{tpu_custom_call.1} parent=11 // pred_region
          %s295 = ssub.s32 512, 512
          %296 = vsyncadd [#allocation11], %s295
          %s297 = sshll.u32 [#allocation12], 4
          %s298 = int_to_ptr.vmem [resolvable:$true] %s297
          %303 = dma.hbm_to_vmem [thread:$0]  %s6, 512, %s298, [#allocation11], 128, 128, 8
        $region32: #{tpu_custom_call.1} parent=11 // pred_fallthru
          _
        // Predicated region
        $region33: #{tpu_custom_call.1} parent=11 // pred_check
          %p304 = pneg %p216
        $region34: #{tpu_custom_call.1} parent=11 // pred_check_branch
          %306 = sbr.rel (%p304) target = $region36
        $region35: #{tpu_custom_call.1} parent=11 // pred_region
          _
        $region36: #{tpu_custom_call.1} parent=11 // pred_fallthru
          _
      $region12: #{tpu_custom_call.1} parent=5 // pred_fallthru
        _
      %p307 = scmp.lt.s32.totalorder %s24, 4
      // Predicated region
      $region37: #{tpu_custom_call.1} parent=5 // pred_check
        %p308 = pneg %p307
      $region38: #{tpu_custom_call.1} parent=5 // pred_check_branch
        %310 = sbr.rel (%p308) target = $region40
      $region39: #{tpu_custom_call.1} parent=5 // pred_region
        // Predicated region
        $region41: #{tpu_custom_call.1} parent=39 // pred_check
          %p311 = pneg %p58
        $region42: #{tpu_custom_call.1} parent=39 // pred_check_branch
          %313 = sbr.rel (%p311) target = $region44
        $region43: #{tpu_custom_call.1} parent=39 // pred_region
          %s314 = sand.u32 %s48, 1
          %s315 = scalar_lea.sflag [#allocation5], %s314
          %s316 = sand.u32 %s48, 1
          %s317 = smul.addr %s316, 8
          %s318 = scalar_lea.vmem [#allocation4], %s317
          %s320 = ssub.s32 128, 128
          %321 = vsyncadd %s315, %s320
          %s322 = smul.addr %s31, 2
          %s323 = sadd.s32 %s32, %s322
          %s324 = smul.addr %s323, 128
          %s325 = scalar_lea.hbm %s0, %s324
          %s327 = sshll.u32 %s318, 4
          %s328 = int_to_ptr.vmem [resolvable:$true] %s327
          %330 = dma.hbm_to_vmem [thread:$0]  %s325, 128, %s328, %s315
        $region44: #{tpu_custom_call.1} parent=39 // pred_fallthru
          _
        // Predicated region
        $region45: #{tpu_custom_call.1} parent=39 // pred_check
          %p331 = pneg %p84
        $region46: #{tpu_custom_call.1} parent=39 // pred_check_branch
          %333 = sbr.rel (%p331) target = $region48
        $region47: #{tpu_custom_call.1} parent=39 // pred_region
          %s334 = sand.u32 %s24, 1
          %s335 = scalar_lea.sflag [#allocation8], %s334
          %s336 = sand.u32 %s74, 1
          %s337 = smul.addr %s336, 8
          %s338 = scalar_lea.vmem [#allocation7], %s337
          %s340 = ssub.s32 128, 128
          %341 = vsyncadd %s335, %s340
          %s342 = smul.addr %s31, 128
          %s343 = scalar_lea.hbm %s1, %s342
          %s345 = sshll.u32 %s338, 4
          %s346 = int_to_ptr.vmem [resolvable:$true] %s345
          %348 = dma.hbm_to_vmem [thread:$0]  %s343, 128, %s346, %s335
        $region48: #{tpu_custom_call.1} parent=39 // pred_fallthru
          _
      $region40: #{tpu_custom_call.1} parent=5 // pred_fallthru
        _
      %p349 = scmp.le.s32.totalorder 1, %s24
      %p350 = scmp.lt.s32.totalorder %s24, 5
      %p351 = pnand %p349, %p350
      %p352 = pneg %p351
      // Predicated region
      $region49: #{tpu_custom_call.1} parent=5 // pred_check
        _
      $region50: #{tpu_custom_call.1} parent=5 // pred_check_branch
        %354 = sbr.rel (%p351) target = $region52
      $region51: #{tpu_custom_call.1} parent=5 // pred_region
        %s355 = ssub.s32 %s24, 1
        %s356 = sand.u32 %s51, 1
        %s357 = scalar_lea.sflag [#allocation5], %s356
        %s358 = sand.u32 %s51, 1
        %s359 = smul.addr %s358, 8
        %s360 = scalar_lea.vmem [#allocation4], %s359
        // Predicated region
        $region53: #{tpu_custom_call.1} parent=51 // pred_check
          %p361 = pneg %p64
        $region54: #{tpu_custom_call.1} parent=51 // pred_check_branch
          %363 = sbr.rel (%p361) target = $region56
        $region55: #{tpu_custom_call.1} parent=51 // pred_region
          %364 = dma.done %s357, 128
        $region56: #{tpu_custom_call.1} parent=51 // pred_fallthru
          _
        %s365 = sand.u32 %s29, 1
        %s366 = scalar_lea.sflag [#allocation8], %s365
        %s367 = sand.u32 %s77, 1
        %s368 = smul.addr %s367, 8
        %s369 = scalar_lea.vmem [#allocation7], %s368
        // Predicated region
        $region57: #{tpu_custom_call.1} parent=51 // pred_check
          %p370 = pneg %p90
        $region58: #{tpu_custom_call.1} parent=51 // pred_check_branch
          %372 = sbr.rel (%p370) target = $region60
        $region59: #{tpu_custom_call.1} parent=51 // pred_region
          %373 = dma.done %s366, 128
        $region60: #{tpu_custom_call.1} parent=51 // pred_fallthru
          _
        // Predicated region
        $region61: #{tpu_custom_call.1} parent=51 // pred_check
          %p374 = pneg %p111
        $region62: #{tpu_custom_call.1} parent=51 // pred_check_branch
          %376 = sbr.rel (%p374) target = $region64
        $region63: #{tpu_custom_call.1} parent=51 // pred_region
          %377 = dma.done [#allocation8], 512
        $region64: #{tpu_custom_call.1} parent=51 // pred_fallthru
          _
        // Predicated region
        $region65: #{tpu_custom_call.1} parent=51 // pred_check
          %p378 = pneg %p153
        $region66: #{tpu_custom_call.1} parent=51 // pred_check_branch
          %380 = sbr.rel (%p378) target = $region68
        $region67: #{tpu_custom_call.1} parent=51 // pred_region
          %381 = dma.done [#allocation11], 512
        $region68: #{tpu_custom_call.1} parent=51 // pred_fallthru
          _
        // Predicated region
        $region69: #{tpu_custom_call.1} parent=51 // pred_check
          %p382 = pneg %p195
        $region70: #{tpu_custom_call.1} parent=51 // pred_check_branch
          %384 = sbr.rel (%p382) target = $region72
        $region71: #{tpu_custom_call.1} parent=51 // pred_region
          %385 = dma.done [#allocation11], 512
        $region72: #{tpu_custom_call.1} parent=51 // pred_fallthru
          _
        %s386 = sand.u32 %s51, 1
        %s387 = scalar_lea.sflag [#allocation5], %s386
        %s388 = sand.u32 %s51, 1
        %s389 = smul.addr %s388, 8
        %s390 = scalar_lea.vmem [#allocation4], %s389
        %p391 = pneg %p64
        %p392 = pneg %p61
        %s393 = sand.u32 %s29, 1
        %s394 = scalar_lea.sflag [#allocation8], %s393
        %s395 = sand.u32 %s77, 1
        %s396 = smul.addr %s395, 8
        %s397 = scalar_lea.vmem [#allocation7], %s396
        %p398 = pneg %p90
        %p399 = pneg %p87
        %p400 = pneg %p111
        %p401 = pneg %p108
        %p402 = pneg %p132
        %p403 = pneg %p129
        %p404 = pneg %p153
        %p405 = pneg %p150
        %p406 = pneg %p174
        %p407 = pneg %p171
        %p408 = pneg %p195
        %p409 = pneg %p192
        %p410 = pneg %p216
        %p411 = pneg %p213
        %p412 = pneg %p244
        %p413 = pneg %p241
        %s414 = sand.u32 %s231, 1
        %s415 = scalar_lea.sflag [#allocation6], %s414
        %s416 = sand.u32 %s231, 1
        %s417 = smul.addr %s416, 8
        %s418 = scalar_lea.vmem [#allocation13], %s417
        %p419 = scmp.eq.s32.totalorder %s34, 0
        // Predicated region
        $region73: #{tpu_custom_call.1} parent=51 // pred_check
          %p420 = pneg %p419
        $region74: #{tpu_custom_call.1} parent=51 // pred_check_branch
          %422 = sbr.rel (%p420) target = $region76
        $region75: #{tpu_custom_call.1} parent=51 // pred_region
          %v423 = vld [vmem:[%s369] sm:$0xff]
          %v424 = vld [vmem:[#allocation10] sm:$0xff]
          %v425 = vld [vmem:[#allocation10 + $0x8] sm:$0xff]
          %v426 = vld [vmem:[#allocation10 + $0x10] sm:$0xff]
          %v427 = vld [vmem:[#allocation10 + $0x18] sm:$0xff]
          %v428 = vld [vmem:[%s5] sm:$0x1]
          %v430 = vlaneseq
          %v431 = vshrl.u32 %v430, 7
          %v432 = vsub.s32 0, %v431
          %v433 = vrot.slane %v428, %v432
          %vm435 = vcmask 261120
          %v437 = vsel %vm435, %v423, 0
          %439 = vmatprep.subr.mxu0 0.0
          %440 = vmatpush1.msra.mxu0 %v424
          %441 = vmatprep.subr.mxu0 0.0
          %442 = vmatpush1.msra.mxu0 %v425
          %443 = vmatprep.subr.mxu0 0.0
          %444 = vmatpush1.msra.mxu0 %v426
          %445 = vmatprep.subr.mxu0 0.0
          %446 = vmatpush1.msra.mxu0 %v427
          %447 = vmatprep.subr.mxu0 0.0
          %448 = vmatpush1.msra.mxu0 0.0
          %449 = vmatprep.subr.mxu0 0.0
          %450 = vmatpush1.msra.mxu0 0.0
          %451 = vmatprep.subr.mxu0 0.0
          %452 = vmatpush1.msra.mxu0 0.0
          %453 = vmatprep.subr.mxu0 0.0
          %454 = vmatpush1.msra.mxu0 0.0
          %455 = vmatprep.subr.mxu0 0.0
          %456 = vmatpush1.msra.mxu0 0.0
          %457 = vmatprep.subr.mxu0 0.0
          %458 = vmatpush1.msra.mxu0 0.0
          %459 = vmatprep.subr.mxu0 0.0
          %460 = vmatpush1.msra.mxu0 0.0
          %461 = vmatprep.subr.mxu0 0.0
          %462 = vmatpush1.msra.mxu0 0.0
          %463 = vmatprep.subr.mxu0 0.0
          %464 = vmatpush1.msra.mxu0 0.0
          %465 = vmatprep.subr.mxu0 0.0
          %466 = vmatpush1.msra.mxu0 0.0
          %467 = vmatprep.subr.mxu0 0.0
          %468 = vmatpush1.msra.mxu0 0.0
          %469 = vmatprep.subr.mxu0 0.0
          %470 = vmatpush1.msra.mxu0 0.0
          %471 = vmatprep.subr.mxu0 0.0
          %472 = vmatpush1.msra.mxu0 0.0
          %473 = vmatprep.subr.mxu0 0.0
          %474 = vmatpush1.msra.mxu0 0.0
          %475 = vmatprep.subr.mxu0 0.0
          %476 = vmatpush1.msra.mxu0 0.0
          %477 = vmatprep.subr.mxu0 0.0
          %478 = vmatpush1.msra.mxu0 0.0
          %479 = vmatprep.subr.mxu0 0.0
          %480 = vmatpush1.msra.mxu0 0.0
          %481 = vmatprep.subr.mxu0 0.0
          %482 = vmatpush1.msra.mxu0 0.0
          %483 = vmatprep.subr.mxu0 0.0
          %484 = vmatpush1.msra.mxu0 0.0
          %485 = vmatprep.subr.mxu0 0.0
          %486 = vmatpush1.msra.mxu0 0.0
          %487 = vmatprep.subr.mxu0 0.0
          %488 = vmatpush1.msra.mxu0 0.0
          %489 = vmatprep.subr.mxu0 0.0
          %490 = vmatpush1.msra.mxu0 0.0
          %491 = vmatprep.subr.mxu0 0.0
          %492 = vmatpush1.msra.mxu0 0.0
          %493 = vmatprep.subr.mxu0 0.0
          %494 = vmatpush1.msra.mxu0 0.0
          %495 = vmatprep.subr.mxu0 0.0
          %496 = vmatpush1.msra.mxu0 0.0
          %497 = vmatprep.subr.mxu0 0.0
          %498 = vmatpush1.msra.mxu0 0.0
          %499 = vmatprep.subr.mxu0 0.0
          %500 = vmatpush1.msra.mxu0 0.0
          %501 = vmatprep.subr.mxu0 0.0
          %502 = vmatpush1.msra.mxu0 0.0
          %503 = vmatprep.mubr.f32.mxu0 0.0
          %504 = vmatmul.mubr.f32.gmra.mrb[0].mxu0 %v437
          %v505 = vpop.f32.mrb[0].mxu0
          %v506 = vadd.f32 %v433, %v505
          %v507 = vpop.f32.mrb[0].mxu0
          %508 = vdwg.mxu0
          %vm509 = vcmask 523264
          %510 = vst.msk [vmem:[#allocation2] sm:$0xff] %vm509, %v506
        $region76: #{tpu_custom_call.1} parent=51 // pred_fallthru
          _
        %v511 = vld [vmem:[%s360] sm:$0xff]
        %v512 = vld [vmem:[#allocation9] sm:$0xff]
        %v513 = vld [vmem:[#allocation9 + $0x8] sm:$0xff]
        %v514 = vld [vmem:[#allocation9 + $0x10] sm:$0xff]
        %v515 = vld [vmem:[#allocation9 + $0x18] sm:$0xff]
        %v516 = vld [vmem:[%s3] sm:$0x1]
        %v518 = vlaneseq
        %v519 = vshrl.u32 %v518, 7
        %v520 = vsub.s32 0, %v519
        %v521 = vrot.slane %v516, %v520
        %vm523 = vcmask 261120
        %v525 = vsel %vm523, %v511, 0
        %527 = vmatprep.subr.mxu0 0.0
        %528 = vmatpush1.msra.mxu0 %v512
        %529 = vmatprep.subr.mxu0 0.0
        %530 = vmatpush1.msra.mxu0 %v513
        %531 = vmatprep.subr.mxu0 0.0
        %532 = vmatpush1.msra.mxu0 %v514
        %533 = vmatprep.subr.mxu0 0.0
        %534 = vmatpush1.msra.mxu0 %v515
        %535 = vmatprep.subr.mxu0 0.0
        %536 = vmatpush1.msra.mxu0 0.0
        %537 = vmatprep.subr.mxu0 0.0
        %538 = vmatpush1.msra.mxu0 0.0
        %539 = vmatprep.subr.mxu0 0.0
        %540 = vmatpush1.msra.mxu0 0.0
        %541 = vmatprep.subr.mxu0 0.0
        %542 = vmatpush1.msra.mxu0 0.0
        %543 = vmatprep.subr.mxu0 0.0
        %544 = vmatpush1.msra.mxu0 0.0
        %545 = vmatprep.subr.mxu0 0.0
        %546 = vmatpush1.msra.mxu0 0.0
        %547 = vmatprep.subr.mxu0 0.0
        %548 = vmatpush1.msra.mxu0 0.0
        %549 = vmatprep.subr.mxu0 0.0
        %550 = vmatpush1.msra.mxu0 0.0
        %551 = vmatprep.subr.mxu0 0.0
        %552 = vmatpush1.msra.mxu0 0.0
        %553 = vmatprep.subr.mxu0 0.0
        %554 = vmatpush1.msra.mxu0 0.0
        %555 = vmatprep.subr.mxu0 0.0
        %556 = vmatpush1.msra.mxu0 0.0
        %557 = vmatprep.subr.mxu0 0.0
        %558 = vmatpush1.msra.mxu0 0.0
        %559 = vmatprep.subr.mxu0 0.0
        %560 = vmatpush1.msra.mxu0 0.0
        %561 = vmatprep.subr.mxu0 0.0
        %562 = vmatpush1.msra.mxu0 0.0
        %563 = vmatprep.subr.mxu0 0.0
        %564 = vmatpush1.msra.mxu0 0.0
        %565 = vmatprep.subr.mxu0 0.0
        %566 = vmatpush1.msra.mxu0 0.0
        %567 = vmatprep.subr.mxu0 0.0
        %568 = vmatpush1.msra.mxu0 0.0
        %569 = vmatprep.subr.mxu0 0.0
        %570 = vmatpush1.msra.mxu0 0.0
        %571 = vmatprep.subr.mxu0 0.0
        %572 = vmatpush1.msra.mxu0 0.0
        %573 = vmatprep.subr.mxu0 0.0
        %574 = vmatpush1.msra.mxu0 0.0
        %575 = vmatprep.subr.mxu0 0.0
        %576 = vmatpush1.msra.mxu0 0.0
        %577 = vmatprep.subr.mxu0 0.0
        %578 = vmatpush1.msra.mxu0 0.0
        %579 = vmatprep.subr.mxu0 0.0
        %580 = vmatpush1.msra.mxu0 0.0
        %581 = vmatprep.subr.mxu0 0.0
        %582 = vmatpush1.msra.mxu0 0.0
        %583 = vmatprep.subr.mxu0 0.0
        %584 = vmatpush1.msra.mxu0 0.0
        %585 = vmatprep.subr.mxu0 0.0
        %586 = vmatpush1.msra.mxu0 0.0
        %587 = vmatprep.subr.mxu0 0.0
        %588 = vmatpush1.msra.mxu0 0.0
        %589 = vmatprep.subr.mxu0 0.0
        %590 = vmatpush1.msra.mxu0 0.0
        %591 = vmatprep.mubr.f32.mxu0 0.0
        %592 = vmatmul.mubr.f32.gmra.mrb[0].mxu0 %v525
        %v593 = vpop.f32.mrb[0].mxu0
        %v594 = vadd.f32 %v521, %v593
        %v595 = vpop.f32.mrb[0].mxu0
        %596 = vdwg.mxu0
        %v597 = vld [vmem:[#allocation2] sm:$0xff]
        %vm598 = vcmask 64512
        %v600 = vsel %vm598, %v594, 0
        %v603 = vsel %vm598, %v597, 0
        %605 = vmatprep.subr.mxu0 0.0
        %606 = vmatpush1.xpose.msra.mxu0 %v603
        %607 = vmatprep.subr.mxu0 0.0
        %608 = vmatpush1.xpose.msra.mxu0 0.0
        %609 = vmatprep.subr.mxu0 0.0
        %610 = vmatpush1.xpose.msra.mxu0 0.0
        %611 = vmatprep.subr.mxu0 0.0
        %612 = vmatpush1.xpose.msra.mxu0 0.0
        %613 = vmatprep.subr.mxu0 0.0
        %614 = vmatpush1.xpose.msra.mxu0 0.0
        %615 = vmatprep.subr.mxu0 0.0
        %616 = vmatpush1.xpose.msra.mxu0 0.0
        %617 = vmatprep.subr.mxu0 0.0
        %618 = vmatpush1.xpose.msra.mxu0 0.0
        %619 = vmatprep.subr.mxu0 0.0
        %620 = vmatpush1.xpose.msra.mxu0 0.0
        %621 = vmatprep.subr.mxu0 0.0
        %622 = vmatpush1.xpose.msra.mxu0 0.0
        %623 = vmatprep.subr.mxu0 0.0
        %624 = vmatpush1.xpose.msra.mxu0 0.0
        %625 = vmatprep.subr.mxu0 0.0
        %626 = vmatpush1.xpose.msra.mxu0 0.0
        %627 = vmatprep.subr.mxu0 0.0
        %628 = vmatpush1.xpose.msra.mxu0 0.0
        %629 = vmatprep.subr.mxu0 0.0
        %630 = vmatpush1.xpose.msra.mxu0 0.0
        %631 = vmatprep.subr.mxu0 0.0
        %632 = vmatpush1.xpose.msra.mxu0 0.0
        %633 = vmatprep.subr.mxu0 0.0
        %634 = vmatpush1.xpose.msra.mxu0 0.0
        %635 = vmatprep.subr.mxu0 0.0
        %636 = vmatpush1.xpose.msra.mxu0 0.0
        %637 = vmatprep.subr.mxu0 0.0
        %638 = vmatpush1.xpose.msra.mxu0 0.0
        %639 = vmatprep.subr.mxu0 0.0
        %640 = vmatpush1.xpose.msra.mxu0 0.0
        %641 = vmatprep.subr.mxu0 0.0
        %642 = vmatpush1.xpose.msra.mxu0 0.0
        %643 = vmatprep.subr.mxu0 0.0
        %644 = vmatpush1.xpose.msra.mxu0 0.0
        %645 = vmatprep.subr.mxu0 0.0
        %646 = vmatpush1.xpose.msra.mxu0 0.0
        %647 = vmatprep.subr.mxu0 0.0
        %648 = vmatpush1.xpose.msra.mxu0 0.0
        %649 = vmatprep.subr.mxu0 0.0
        %650 = vmatpush1.xpose.msra.mxu0 0.0
        %651 = vmatprep.subr.mxu0 0.0
        %652 = vmatpush1.xpose.msra.mxu0 0.0
        %653 = vmatprep.subr.mxu0 0.0
        %654 = vmatpush1.xpose.msra.mxu0 0.0
        %655 = vmatprep.subr.mxu0 0.0
        %656 = vmatpush1.xpose.msra.mxu0 0.0
        %657 = vmatprep.subr.mxu0 0.0
        %658 = vmatpush1.xpose.msra.mxu0 0.0
        %659 = vmatprep.subr.mxu0 0.0
        %660 = vmatpush1.xpose.msra.mxu0 0.0
        %661 = vmatprep.subr.mxu0 0.0
        %662 = vmatpush1.xpose.msra.mxu0 0.0
        %663 = vmatprep.subr.mxu0 0.0
        %664 = vmatpush1.xpose.msra.mxu0 0.0
        %665 = vmatprep.subr.mxu0 0.0
        %666 = vmatpush1.xpose.msra.mxu0 0.0
        %667 = vmatprep.subr.mxu0 0.0
        %668 = vmatpush1.xpose.msra.mxu0 0.0
        %669 = vmatprep.mubr.f32.mxu0 0.0
        %670 = vmatmul.mubr.f32.gmra.mrb[0].mxu0 %v600
        %v671 = vpop.f32.mrb[0].mxu0
        %v672 = vadd.f32 0.0, %v671
        %v673 = vpop.f32.mrb[0].mxu0
        %674 = vdwg.mxu0
        %v675 = vsel %vm598, %v672, -inf
        %676 = vmax.xlane.f32.xlu0 %v675
        %v677 = vpop.xlane.xlu0 %676
        %v678 = vsub.f32 %v672, %v677
        %v679 = vmul.f32 %v678, 1.442695
        %v680 = vpow.pop %v679
        %v681 = vsel %vm598, %v680, 0.0
        %682 = vadd.xlane.f32.xlu0 %v681
        %v683 = vpop.xlane.xlu0 %682
        %v684 = vrcp.pop %v683
        %v685 = vmul.f32 %v680, %v684
        %686 = vrot.lane.b32.xlu0 %v597, 96
        %v687 = vpop.permute.xlu0 %686
        %v690 = vsel %vm598, %v685, 0
        %692 = vmatprep.subr.mxu0 0.0
        %693 = vmatpush1.msra.mxu0 %v687
        %694 = vmatprep.subr.mxu0 0.0
        %695 = vmatpush1.msra.mxu0 0.0
        %696 = vmatprep.subr.mxu0 0.0
        %697 = vmatpush1.msra.mxu0 0.0
        %698 = vmatprep.subr.mxu0 0.0
        %699 = vmatpush1.msra.mxu0 0.0
        %700 = vmatprep.subr.mxu0 0.0
        %701 = vmatpush1.msra.mxu0 0.0
        %702 = vmatprep.subr.mxu0 0.0
        %703 = vmatpush1.msra.mxu0 0.0
        %704 = vmatprep.subr.mxu0 0.0
        %705 = vmatpush1.msra.mxu0 0.0
        %706 = vmatprep.subr.mxu0 0.0
        %707 = vmatpush1.msra.mxu0 0.0
        %708 = vmatprep.subr.mxu0 0.0
        %709 = vmatpush1.msra.mxu0 0.0
        %710 = vmatprep.subr.mxu0 0.0
        %711 = vmatpush1.msra.mxu0 0.0
        %712 = vmatprep.subr.mxu0 0.0
        %713 = vmatpush1.msra.mxu0 0.0
        %714 = vmatprep.subr.mxu0 0.0
        %715 = vmatpush1.msra.mxu0 0.0
        %716 = vmatprep.subr.mxu0 0.0
        %717 = vmatpush1.msra.mxu0 0.0
        %718 = vmatprep.subr.mxu0 0.0
        %719 = vmatpush1.msra.mxu0 0.0
        %720 = vmatprep.subr.mxu0 0.0
        %721 = vmatpush1.msra.mxu0 0.0
        %722 = vmatprep.subr.mxu0 0.0
        %723 = vmatpush1.msra.mxu0 0.0
        %724 = vmatprep.subr.mxu0 0.0
        %725 = vmatpush1.msra.mxu0 0.0
        %726 = vmatprep.subr.mxu0 0.0
        %727 = vmatpush1.msra.mxu0 0.0
        %728 = vmatprep.subr.mxu0 0.0
        %729 = vmatpush1.msra.mxu0 0.0
        %730 = vmatprep.subr.mxu0 0.0
        %731 = vmatpush1.msra.mxu0 0.0
        %732 = vmatprep.subr.mxu0 0.0
        %733 = vmatpush1.msra.mxu0 0.0
        %734 = vmatprep.subr.mxu0 0.0
        %735 = vmatpush1.msra.mxu0 0.0
        %736 = vmatprep.subr.mxu0 0.0
        %737 = vmatpush1.msra.mxu0 0.0
        %738 = vmatprep.subr.mxu0 0.0
        %739 = vmatpush1.msra.mxu0 0.0
        %740 = vmatprep.subr.mxu0 0.0
        %741 = vmatpush1.msra.mxu0 0.0
        %742 = vmatprep.subr.mxu0 0.0
        %743 = vmatpush1.msra.mxu0 0.0
        %744 = vmatprep.subr.mxu0 0.0
        %745 = vmatpush1.msra.mxu0 0.0
        %746 = vmatprep.subr.mxu0 0.0
        %747 = vmatpush1.msra.mxu0 0.0
        %748 = vmatprep.subr.mxu0 0.0
        %749 = vmatpush1.msra.mxu0 0.0
        %750 = vmatprep.subr.mxu0 0.0
        %751 = vmatpush1.msra.mxu0 0.0
        %752 = vmatprep.subr.mxu0 0.0
        %753 = vmatpush1.msra.mxu0 0.0
        %754 = vmatprep.subr.mxu0 0.0
        %755 = vmatpush1.msra.mxu0 0.0
        %756 = vmatprep.mubr.f32.mxu0 0.0
        %757 = vmatmul.mubr.f32.gmra.mrb[0].mxu0 %v690
        %v758 = vpop.f32.mrb[0].mxu0
        %v759 = vadd.f32 0.0, %v758
        %v760 = vpop.f32.mrb[0].mxu0
        %761 = vdwg.mxu0
        %762 = vst.msk [vmem:[#allocation3] sm:$0xff] %vm598, %v759
        %v763 = vld [vmem:[#allocation2] sm:$0xff]
        %764 = vrot.lane.b32.xlu0 %v594, 120
        %v765 = vpop.permute.xlu0 %764
        %767 = vrot.lane.b32.xlu0 %v763, 120
        %v768 = vpop.permute.xlu0 %767
        %v769 = vsel %vm598, %v765, 0
        %v771 = vsel %vm598, %v768, 0
        %773 = vmatprep.subr.mxu0 0.0
        %774 = vmatpush1.xpose.msra.mxu0 %v771
        %775 = vmatprep.subr.mxu0 0.0
        %776 = vmatpush1.xpose.msra.mxu0 0.0
        %777 = vmatprep.subr.mxu0 0.0
        %778 = vmatpush1.xpose.msra.mxu0 0.0
        %779 = vmatprep.subr.mxu0 0.0
        %780 = vmatpush1.xpose.msra.mxu0 0.0
        %781 = vmatprep.subr.mxu0 0.0
        %782 = vmatpush1.xpose.msra.mxu0 0.0
        %783 = vmatprep.subr.mxu0 0.0
        %784 = vmatpush1.xpose.msra.mxu0 0.0
        %785 = vmatprep.subr.mxu0 0.0
        %786 = vmatpush1.xpose.msra.mxu0 0.0
        %787 = vmatprep.subr.mxu0 0.0
        %788 = vmatpush1.xpose.msra.mxu0 0.0
        %789 = vmatprep.subr.mxu0 0.0
        %790 = vmatpush1.xpose.msra.mxu0 0.0
        %791 = vmatprep.subr.mxu0 0.0
        %792 = vmatpush1.xpose.msra.mxu0 0.0
        %793 = vmatprep.subr.mxu0 0.0
        %794 = vmatpush1.xpose.msra.mxu0 0.0
        %795 = vmatprep.subr.mxu0 0.0
        %796 = vmatpush1.xpose.msra.mxu0 0.0
        %797 = vmatprep.subr.mxu0 0.0
        %798 = vmatpush1.xpose.msra.mxu0 0.0
        %799 = vmatprep.subr.mxu0 0.0
        %800 = vmatpush1.xpose.msra.mxu0 0.0
        %801 = vmatprep.subr.mxu0 0.0
        %802 = vmatpush1.xpose.msra.mxu0 0.0
        %803 = vmatprep.subr.mxu0 0.0
        %804 = vmatpush1.xpose.msra.mxu0 0.0
        %805 = vmatprep.subr.mxu0 0.0
        %806 = vmatpush1.xpose.msra.mxu0 0.0
        %807 = vmatprep.subr.mxu0 0.0
        %808 = vmatpush1.xpose.msra.mxu0 0.0
        %809 = vmatprep.subr.mxu0 0.0
        %810 = vmatpush1.xpose.msra.mxu0 0.0
        %811 = vmatprep.subr.mxu0 0.0
        %812 = vmatpush1.xpose.msra.mxu0 0.0
        %813 = vmatprep.subr.mxu0 0.0
        %814 = vmatpush1.xpose.msra.mxu0 0.0
        %815 = vmatprep.subr.mxu0 0.0
        %816 = vmatpush1.xpose.msra.mxu0 0.0
        %817 = vmatprep.subr.mxu0 0.0
        %818 = vmatpush1.xpose.msra.mxu0 0.0
        %819 = vmatprep.subr.mxu0 0.0
        %820 = vmatpush1.xpose.msra.mxu0 0.0
        %821 = vmatprep.subr.mxu0 0.0
        %822 = vmatpush1.xpose.msra.mxu0 0.0
        %823 = vmatprep.subr.mxu0 0.0
        %824 = vmatpush1.xpose.msra.mxu0 0.0
        %825 = vmatprep.subr.mxu0 0.0
        %826 = vmatpush1.xpose.msra.mxu0 0.0
        %827 = vmatprep.subr.mxu0 0.0
        %828 = vmatpush1.xpose.msra.mxu0 0.0
        %829 = vmatprep.subr.mxu0 0.0
        %830 = vmatpush1.xpose.msra.mxu0 0.0
        %831 = vmatprep.subr.mxu0 0.0
        %832 = vmatpush1.xpose.msra.mxu0 0.0
        %833 = vmatprep.subr.mxu0 0.0
        %834 = vmatpush1.xpose.msra.mxu0 0.0
        %835 = vmatprep.subr.mxu0 0.0
        %836 = vmatpush1.xpose.msra.mxu0 0.0
        %837 = vmatprep.mubr.f32.mxu0 0.0
        %838 = vmatmul.mubr.f32.gmra.mrb[0].mxu0 %v769
        %v839 = vpop.f32.mrb[0].mxu0
        %v840 = vadd.f32 0.0, %v839
        %v841 = vpop.f32.mrb[0].mxu0
        %842 = vdwg.mxu0
        %v843 = vsel %vm598, %v840, -inf
        %844 = vmax.xlane.f32.xlu0 %v843
        %v845 = vpop.xlane.xlu0 %844
        %v846 = vsub.f32 %v840, %v845
        %v847 = vmul.f32 %v846, 1.442695
        %v848 = vpow.pop %v847
        %v849 = vsel %vm598, %v848, 0.0
        %850 = vadd.xlane.f32.xlu0 %v849
        %v851 = vpop.xlane.xlu0 %850
        %v852 = vrcp.pop %v851
        %v853 = vmul.f32 %v848, %v852
        %854 = vrot.lane.b32.xlu0 %v763, 88
        %v855 = vpop.permute.xlu0 %854
        %v858 = vsel %vm598, %v853, 0
        %860 = vmatprep.subr.mxu0 0.0
        %861 = vmatpush1.msra.mxu0 %v855
        %862 = vmatprep.subr.mxu0 0.0
        %863 = vmatpush1.msra.mxu0 0.0
        %864 = vmatprep.subr.mxu0 0.0
        %865 = vmatpush1.msra.mxu0 0.0
        %866 = vmatprep.subr.mxu0 0.0
        %867 = vmatpush1.msra.mxu0 0.0
        %868 = vmatprep.subr.mxu0 0.0
        %869 = vmatpush1.msra.mxu0 0.0
        %870 = vmatprep.subr.mxu0 0.0
        %871 = vmatpush1.msra.mxu0 0.0
        %872 = vmatprep.subr.mxu0 0.0
        %873 = vmatpush1.msra.mxu0 0.0
        %874 = vmatprep.subr.mxu0 0.0
        %875 = vmatpush1.msra.mxu0 0.0
        %876 = vmatprep.subr.mxu0 0.0
        %877 = vmatpush1.msra.mxu0 0.0
        %878 = vmatprep.subr.mxu0 0.0
        %879 = vmatpush1.msra.mxu0 0.0
        %880 = vmatprep.subr.mxu0 0.0
        %881 = vmatpush1.msra.mxu0 0.0
        %882 = vmatprep.subr.mxu0 0.0
        %883 = vmatpush1.msra.mxu0 0.0
        %884 = vmatprep.subr.mxu0 0.0
        %885 = vmatpush1.msra.mxu0 0.0
        %886 = vmatprep.subr.mxu0 0.0
        %887 = vmatpush1.msra.mxu0 0.0
        %888 = vmatprep.subr.mxu0 0.0
        %889 = vmatpush1.msra.mxu0 0.0
        %890 = vmatprep.subr.mxu0 0.0
        %891 = vmatpush1.msra.mxu0 0.0
        %892 = vmatprep.subr.mxu0 0.0
        %893 = vmatpush1.msra.mxu0 0.0
        %894 = vmatprep.subr.mxu0 0.0
        %895 = vmatpush1.msra.mxu0 0.0
        %896 = vmatprep.subr.mxu0 0.0
        %897 = vmatpush1.msra.mxu0 0.0
        %898 = vmatprep.subr.mxu0 0.0
        %899 = vmatpush1.msra.mxu0 0.0
        %900 = vmatprep.subr.mxu0 0.0
        %901 = vmatpush1.msra.mxu0 0.0
        %902 = vmatprep.subr.mxu0 0.0
        %903 = vmatpush1.msra.mxu0 0.0
        %904 = vmatprep.subr.mxu0 0.0
        %905 = vmatpush1.msra.mxu0 0.0
        %906 = vmatprep.subr.mxu0 0.0
        %907 = vmatpush1.msra.mxu0 0.0
        %908 = vmatprep.subr.mxu0 0.0
        %909 = vmatpush1.msra.mxu0 0.0
        %910 = vmatprep.subr.mxu0 0.0
        %911 = vmatpush1.msra.mxu0 0.0
        %912 = vmatprep.subr.mxu0 0.0
        %913 = vmatpush1.msra.mxu0 0.0
        %914 = vmatprep.subr.mxu0 0.0
        %915 = vmatpush1.msra.mxu0 0.0
        %916 = vmatprep.subr.mxu0 0.0
        %917 = vmatpush1.msra.mxu0 0.0
        %918 = vmatprep.subr.mxu0 0.0
        %919 = vmatpush1.msra.mxu0 0.0
        %920 = vmatprep.subr.mxu0 0.0
        %921 = vmatpush1.msra.mxu0 0.0
        %922 = vmatprep.subr.mxu0 0.0
        %923 = vmatpush1.msra.mxu0 0.0
        %924 = vmatprep.mubr.f32.mxu0 0.0
        %925 = vmatmul.mubr.f32.gmra.mrb[0].mxu0 %v858
        %v926 = vpop.f32.mrb[0].mxu0
        %v927 = vadd.f32 0.0, %v926
        %v928 = vpop.f32.mrb[0].mxu0
        %929 = vdwg.mxu0
        %931 = vrot.lane.b32.xlu0 %v927, 8
        %v932 = vpop.permute.xlu0 %931
        %vm934 = vcmask 130112
        %935 = vst.msk [vmem:[#allocation3] sm:$0xff] %vm934, %v932
        %v936 = vld [vmem:[#allocation2] sm:$0xff]
        %937 = vrot.lane.b32.xlu0 %v594, 112
        %v938 = vpop.permute.xlu0 %937
        %940 = vrot.lane.b32.xlu0 %v936, 112
        %v941 = vpop.permute.xlu0 %940
        %v942 = vsel %vm598, %v938, 0
        %v944 = vsel %vm598, %v941, 0
        %946 = vmatprep.subr.mxu0 0.0
        %947 = vmatpush1.xpose.msra.mxu0 %v944
        %948 = vmatprep.subr.mxu0 0.0
        %949 = vmatpush1.xpose.msra.mxu0 0.0
        %950 = vmatprep.subr.mxu0 0.0
        %951 = vmatpush1.xpose.msra.mxu0 0.0
        %952 = vmatprep.subr.mxu0 0.0
        %953 = vmatpush1.xpose.msra.mxu0 0.0
        %954 = vmatprep.subr.mxu0 0.0
        %955 = vmatpush1.xpose.msra.mxu0 0.0
        %956 = vmatprep.subr.mxu0 0.0
        %957 = vmatpush1.xpose.msra.mxu0 0.0
        %958 = vmatprep.subr.mxu0 0.0
        %959 = vmatpush1.xpose.msra.mxu0 0.0
        %960 = vmatprep.subr.mxu0 0.0
        %961 = vmatpush1.xpose.msra.mxu0 0.0
        %962 = vmatprep.subr.mxu0 0.0
        %963 = vmatpush1.xpose.msra.mxu0 0.0
        %964 = vmatprep.subr.mxu0 0.0
        %965 = vmatpush1.xpose.msra.mxu0 0.0
        %966 = vmatprep.subr.mxu0 0.0
        %967 = vmatpush1.xpose.msra.mxu0 0.0
        %968 = vmatprep.subr.mxu0 0.0
        %969 = vmatpush1.xpose.msra.mxu0 0.0
        %970 = vmatprep.subr.mxu0 0.0
        %971 = vmatpush1.xpose.msra.mxu0 0.0
        %972 = vmatprep.subr.mxu0 0.0
        %973 = vmatpush1.xpose.msra.mxu0 0.0
        %974 = vmatprep.subr.mxu0 0.0
        %975 = vmatpush1.xpose.msra.mxu0 0.0
        %976 = vmatprep.subr.mxu0 0.0
        %977 = vmatpush1.xpose.msra.mxu0 0.0
        %978 = vmatprep.subr.mxu0 0.0
        %979 = vmatpush1.xpose.msra.mxu0 0.0
        %980 = vmatprep.subr.mxu0 0.0
        %981 = vmatpush1.xpose.msra.mxu0 0.0
        %982 = vmatprep.subr.mxu0 0.0
        %983 = vmatpush1.xpose.msra.mxu0 0.0
        %984 = vmatprep.subr.mxu0 0.0
        %985 = vmatpush1.xpose.msra.mxu0 0.0
        %986 = vmatprep.subr.mxu0 0.0
        %987 = vmatpush1.xpose.msra.mxu0 0.0
        %988 = vmatprep.subr.mxu0 0.0
        %989 = vmatpush1.xpose.msra.mxu0 0.0
        %990 = vmatprep.subr.mxu0 0.0
        %991 = vmatpush1.xpose.msra.mxu0 0.0
        %992 = vmatprep.subr.mxu0 0.0
        %993 = vmatpush1.xpose.msra.mxu0 0.0
        %994 = vmatprep.subr.mxu0 0.0
        %995 = vmatpush1.xpose.msra.mxu0 0.0
        %996 = vmatprep.subr.mxu0 0.0
        %997 = vmatpush1.xpose.msra.mxu0 0.0
        %998 = vmatprep.subr.mxu0 0.0
        %999 = vmatpush1.xpose.msra.mxu0 0.0
        %1000 = vmatprep.subr.mxu0 0.0
        %1001 = vmatpush1.xpose.msra.mxu0 0.0
        %1002 = vmatprep.subr.mxu0 0.0
        %1003 = vmatpush1.xpose.msra.mxu0 0.0
        %1004 = vmatprep.subr.mxu0 0.0
        %1005 = vmatpush1.xpose.msra.mxu0 0.0
        %1006 = vmatprep.subr.mxu0 0.0
        %1007 = vmatpush1.xpose.msra.mxu0 0.0
        %1008 = vmatprep.subr.mxu0 0.0
        %1009 = vmatpush1.xpose.msra.mxu0 0.0
        %1010 = vmatprep.mubr.f32.mxu0 0.0
        %1011 = vmatmul.mubr.f32.gmra.mrb[0].mxu0 %v942
        %v1012 = vpop.f32.mrb[0].mxu0
        %v1013 = vadd.f32 0.0, %v1012
        %v1014 = vpop.f32.mrb[0].mxu0
        %1015 = vdwg.mxu0
        %v1016 = vsel %vm598, %v1013, -inf
        %1017 = vmax.xlane.f32.xlu0 %v1016
        %v1018 = vpop.xlane.xlu0 %1017
        %v1019 = vsub.f32 %v1013, %v1018
        %v1020 = vmul.f32 %v1019, 1.442695
        %v1021 = vpow.pop %v1020
        %v1022 = vsel %vm598, %v1021, 0.0
        %1023 = vadd.xlane.f32.xlu0 %v1022
        %v1024 = vpop.xlane.xlu0 %1023
        %v1025 = vrcp.pop %v1024
        %v1026 = vmul.f32 %v1021, %v1025
        %1027 = vrot.lane.b32.xlu0 %v936, 80
        %v1028 = vpop.permute.xlu0 %1027
        %v1031 = vsel %vm598, %v1026, 0
        %1033 = vmatprep.subr.mxu0 0.0
        %1034 = vmatpush1.msra.mxu0 %v1028
        %1035 = vmatprep.subr.mxu0 0.0
        %1036 = vmatpush1.msra.mxu0 0.0
        %1037 = vmatprep.subr.mxu0 0.0
        %1038 = vmatpush1.msra.mxu0 0.0
        %1039 = vmatprep.subr.mxu0 0.0
        %1040 = vmatpush1.msra.mxu0 0.0
        %1041 = vmatprep.subr.mxu0 0.0
        %1042 = vmatpush1.msra.mxu0 0.0
        %1043 = vmatprep.subr.mxu0 0.0
        %1044 = vmatpush1.msra.mxu0 0.0
        %1045 = vmatprep.subr.mxu0 0.0
        %1046 = vmatpush1.msra.mxu0 0.0
        %1047 = vmatprep.subr.mxu0 0.0
        %1048 = vmatpush1.msra.mxu0 0.0
        %1049 = vmatprep.subr.mxu0 0.0
        %1050 = vmatpush1.msra.mxu0 0.0
        %1051 = vmatprep.subr.mxu0 0.0
        %1052 = vmatpush1.msra.mxu0 0.0
        %1053 = vmatprep.subr.mxu0 0.0
        %1054 = vmatpush1.msra.mxu0 0.0
        %1055 = vmatprep.subr.mxu0 0.0
        %1056 = vmatpush1.msra.mxu0 0.0
        %1057 = vmatprep.subr.mxu0 0.0
        %1058 = vmatpush1.msra.mxu0 0.0
        %1059 = vmatprep.subr.mxu0 0.0
        %1060 = vmatpush1.msra.mxu0 0.0
        %1061 = vmatprep.subr.mxu0 0.0
        %1062 = vmatpush1.msra.mxu0 0.0
        %1063 = vmatprep.subr.mxu0 0.0
        %1064 = vmatpush1.msra.mxu0 0.0
        %1065 = vmatprep.subr.mxu0 0.0
        %1066 = vmatpush1.msra.mxu0 0.0
        %1067 = vmatprep.subr.mxu0 0.0
        %1068 = vmatpush1.msra.mxu0 0.0
        %1069 = vmatprep.subr.mxu0 0.0
        %1070 = vmatpush1.msra.mxu0 0.0
        %1071 = vmatprep.subr.mxu0 0.0
        %1072 = vmatpush1.msra.mxu0 0.0
        %1073 = vmatprep.subr.mxu0 0.0
        %1074 = vmatpush1.msra.mxu0 0.0
        %1075 = vmatprep.subr.mxu0 0.0
        %1076 = vmatpush1.msra.mxu0 0.0
        %1077 = vmatprep.subr.mxu0 0.0
        %1078 = vmatpush1.msra.mxu0 0.0
        %1079 = vmatprep.subr.mxu0 0.0
        %1080 = vmatpush1.msra.mxu0 0.0
        %1081 = vmatprep.subr.mxu0 0.0
        %1082 = vmatpush1.msra.mxu0 0.0
        %1083 = vmatprep.subr.mxu0 0.0
        %1084 = vmatpush1.msra.mxu0 0.0
        %1085 = vmatprep.subr.mxu0 0.0
        %1086 = vmatpush1.msra.mxu0 0.0
        %1087 = vmatprep.subr.mxu0 0.0
        %1088 = vmatpush1.msra.mxu0 0.0
        %1089 = vmatprep.subr.mxu0 0.0
        %1090 = vmatpush1.msra.mxu0 0.0
        %1091 = vmatprep.subr.mxu0 0.0
        %1092 = vmatpush1.msra.mxu0 0.0
        %1093 = vmatprep.subr.mxu0 0.0
        %1094 = vmatpush1.msra.mxu0 0.0
        %1095 = vmatprep.subr.mxu0 0.0
        %1096 = vmatpush1.msra.mxu0 0.0
        %1097 = vmatprep.mubr.f32.mxu0 0.0
        %1098 = vmatmul.mubr.f32.gmra.mrb[0].mxu0 %v1031
        %v1099 = vpop.f32.mrb[0].mxu0
        %v1100 = vadd.f32 0.0, %v1099
        %v1101 = vpop.f32.mrb[0].mxu0
        %1102 = vdwg.mxu0
        %1104 = vrot.lane.b32.xlu0 %v1100, 16
        %v1105 = vpop.permute.xlu0 %1104
        %vm1107 = vcmask 195712
        %1108 = vst.msk [vmem:[#allocation3] sm:$0xff] %vm1107, %v1105
        %v1109 = vld [vmem:[#allocation2] sm:$0xff]
        %1110 = vrot.lane.b32.xlu0 %v594, 104
        %v1111 = vpop.permute.xlu0 %1110
        %1113 = vrot.lane.b32.xlu0 %v1109, 104
        %v1114 = vpop.permute.xlu0 %1113
        %v1115 = vsel %vm598, %v1111, 0
        %v1117 = vsel %vm598, %v1114, 0
        %1119 = vmatprep.subr.mxu0 0.0
        %1120 = vmatpush1.xpose.msra.mxu0 %v1117
        %1121 = vmatprep.subr.mxu0 0.0
        %1122 = vmatpush1.xpose.msra.mxu0 0.0
        %1123 = vmatprep.subr.mxu0 0.0
        %1124 = vmatpush1.xpose.msra.mxu0 0.0
        %1125 = vmatprep.subr.mxu0 0.0
        %1126 = vmatpush1.xpose.msra.mxu0 0.0
        %1127 = vmatprep.subr.mxu0 0.0
        %1128 = vmatpush1.xpose.msra.mxu0 0.0
        %1129 = vmatprep.subr.mxu0 0.0
        %1130 = vmatpush1.xpose.msra.mxu0 0.0
        %1131 = vmatprep.subr.mxu0 0.0
        %1132 = vmatpush1.xpose.msra.mxu0 0.0
        %1133 = vmatprep.subr.mxu0 0.0
        %1134 = vmatpush1.xpose.msra.mxu0 0.0
        %1135 = vmatprep.subr.mxu0 0.0
        %1136 = vmatpush1.xpose.msra.mxu0 0.0
        %1137 = vmatprep.subr.mxu0 0.0
        %1138 = vmatpush1.xpose.msra.mxu0 0.0
        %1139 = vmatprep.subr.mxu0 0.0
        %1140 = vmatpush1.xpose.msra.mxu0 0.0
        %1141 = vmatprep.subr.mxu0 0.0
        %1142 = vmatpush1.xpose.msra.mxu0 0.0
        %1143 = vmatprep.subr.mxu0 0.0
        %1144 = vmatpush1.xpose.msra.mxu0 0.0
        %1145 = vmatprep.subr.mxu0 0.0
        %1146 = vmatpush1.xpose.msra.mxu0 0.0
        %1147 = vmatprep.subr.mxu0 0.0
        %1148 = vmatpush1.xpose.msra.mxu0 0.0
        %1149 = vmatprep.subr.mxu0 0.0
        %1150 = vmatpush1.xpose.msra.mxu0 0.0
        %1151 = vmatprep.subr.mxu0 0.0
        %1152 = vmatpush1.xpose.msra.mxu0 0.0
        %1153 = vmatprep.subr.mxu0 0.0
        %1154 = vmatpush1.xpose.msra.mxu0 0.0
        %1155 = vmatprep.subr.mxu0 0.0
        %1156 = vmatpush1.xpose.msra.mxu0 0.0
        %1157 = vmatprep.subr.mxu0 0.0
        %1158 = vmatpush1.xpose.msra.mxu0 0.0
        %1159 = vmatprep.subr.mxu0 0.0
        %1160 = vmatpush1.xpose.msra.mxu0 0.0
        %1161 = vmatprep.subr.mxu0 0.0
        %1162 = vmatpush1.xpose.msra.mxu0 0.0
        %1163 = vmatprep.subr.mxu0 0.0
        %1164 = vmatpush1.xpose.msra.mxu0 0.0
        %1165 = vmatprep.subr.mxu0 0.0
        %1166 = vmatpush1.xpose.msra.mxu0 0.0
        %1167 = vmatprep.subr.mxu0 0.0
        %1168 = vmatpush1.xpose.msra.mxu0 0.0
        %1169 = vmatprep.subr.mxu0 0.0
        %1170 = vmatpush1.xpose.msra.mxu0 0.0
        %1171 = vmatprep.subr.mxu0 0.0
        %1172 = vmatpush1.xpose.msra.mxu0 0.0
        %1173 = vmatprep.subr.mxu0 0.0
        %1174 = vmatpush1.xpose.msra.mxu0 0.0
        %1175 = vmatprep.subr.mxu0 0.0
        %1176 = vmatpush1.xpose.msra.mxu0 0.0
        %1177 = vmatprep.subr.mxu0 0.0
        %1178 = vmatpush1.xpose.msra.mxu0 0.0
        %1179 = vmatprep.subr.mxu0 0.0
        %1180 = vmatpush1.xpose.msra.mxu0 0.0
        %1181 = vmatprep.subr.mxu0 0.0
        %1182 = vmatpush1.xpose.msra.mxu0 0.0
        %1183 = vmatprep.mubr.f32.mxu0 0.0
        %1184 = vmatmul.mubr.f32.gmra.mrb[0].mxu0 %v1115
        %v1185 = vpop.f32.mrb[0].mxu0
        %v1186 = vadd.f32 0.0, %v1185
        %v1187 = vpop.f32.mrb[0].mxu0
        %1188 = vdwg.mxu0
        %v1189 = vsel %vm598, %v1186, -inf
        %1190 = vmax.xlane.f32.xlu0 %v1189
        %v1191 = vpop.xlane.xlu0 %1190
        %v1192 = vsub.f32 %v1186, %v1191
        %v1193 = vmul.f32 %v1192, 1.442695
        %v1194 = vpow.pop %v1193
        %v1195 = vsel %vm598, %v1194, 0.0
        %1196 = vadd.xlane.f32.xlu0 %v1195
        %v1197 = vpop.xlane.xlu0 %1196
        %v1198 = vrcp.pop %v1197
        %v1199 = vmul.f32 %v1194, %v1198
        %1200 = vrot.lane.b32.xlu0 %v1109, 72
        %v1201 = vpop.permute.xlu0 %1200
        %v1204 = vsel %vm598, %v1199, 0
        %1206 = vmatprep.subr.mxu0 0.0
        %1207 = vmatpush1.msra.mxu0 %v1201
        %1208 = vmatprep.subr.mxu0 0.0
        %1209 = vmatpush1.msra.mxu0 0.0
        %1210 = vmatprep.subr.mxu0 0.0
        %1211 = vmatpush1.msra.mxu0 0.0
        %1212 = vmatprep.subr.mxu0 0.0
        %1213 = vmatpush1.msra.mxu0 0.0
        %1214 = vmatprep.subr.mxu0 0.0
        %1215 = vmatpush1.msra.mxu0 0.0
        %1216 = vmatprep.subr.mxu0 0.0
        %1217 = vmatpush1.msra.mxu0 0.0
        %1218 = vmatprep.subr.mxu0 0.0
        %1219 = vmatpush1.msra.mxu0 0.0
        %1220 = vmatprep.subr.mxu0 0.0
        %1221 = vmatpush1.msra.mxu0 0.0
        %1222 = vmatprep.subr.mxu0 0.0
        %1223 = vmatpush1.msra.mxu0 0.0
        %1224 = vmatprep.subr.mxu0 0.0
        %1225 = vmatpush1.msra.mxu0 0.0
        %1226 = vmatprep.subr.mxu0 0.0
        %1227 = vmatpush1.msra.mxu0 0.0
        %1228 = vmatprep.subr.mxu0 0.0
        %1229 = vmatpush1.msra.mxu0 0.0
        %1230 = vmatprep.subr.mxu0 0.0
        %1231 = vmatpush1.msra.mxu0 0.0
        %1232 = vmatprep.subr.mxu0 0.0
        %1233 = vmatpush1.msra.mxu0 0.0
        %1234 = vmatprep.subr.mxu0 0.0
        %1235 = vmatpush1.msra.mxu0 0.0
        %1236 = vmatprep.subr.mxu0 0.0
        %1237 = vmatpush1.msra.mxu0 0.0
        %1238 = vmatprep.subr.mxu0 0.0
        %1239 = vmatpush1.msra.mxu0 0.0
        %1240 = vmatprep.subr.mxu0 0.0
        %1241 = vmatpush1.msra.mxu0 0.0
        %1242 = vmatprep.subr.mxu0 0.0
        %1243 = vmatpush1.msra.mxu0 0.0
        %1244 = vmatprep.subr.mxu0 0.0
        %1245 = vmatpush1.msra.mxu0 0.0
        %1246 = vmatprep.subr.mxu0 0.0
        %1247 = vmatpush1.msra.mxu0 0.0
        %1248 = vmatprep.subr.mxu0 0.0
        %1249 = vmatpush1.msra.mxu0 0.0
        %1250 = vmatprep.subr.mxu0 0.0
        %1251 = vmatpush1.msra.mxu0 0.0
        %1252 = vmatprep.subr.mxu0 0.0
        %1253 = vmatpush1.msra.mxu0 0.0
        %1254 = vmatprep.subr.mxu0 0.0
        %1255 = vmatpush1.msra.mxu0 0.0
        %1256 = vmatprep.subr.mxu0 0.0
        %1257 = vmatpush1.msra.mxu0 0.0
        %1258 = vmatprep.subr.mxu0 0.0
        %1259 = vmatpush1.msra.mxu0 0.0
        %1260 = vmatprep.subr.mxu0 0.0
        %1261 = vmatpush1.msra.mxu0 0.0
        %1262 = vmatprep.subr.mxu0 0.0
        %1263 = vmatpush1.msra.mxu0 0.0
        %1264 = vmatprep.subr.mxu0 0.0
        %1265 = vmatpush1.msra.mxu0 0.0
        %1266 = vmatprep.subr.mxu0 0.0
        %1267 = vmatpush1.msra.mxu0 0.0
        %1268 = vmatprep.subr.mxu0 0.0
        %1269 = vmatpush1.msra.mxu0 0.0
        %1270 = vmatprep.mubr.f32.mxu0 0.0
        %1271 = vmatmul.mubr.f32.gmra.mrb[0].mxu0 %v1204
        %v1272 = vpop.f32.mrb[0].mxu0
        %v1273 = vadd.f32 0.0, %v1272
        %v1274 = vpop.f32.mrb[0].mxu0
        %1275 = vdwg.mxu0
        %1277 = vrot.lane.b32.xlu0 %v1273, 24
        %v1278 = vpop.permute.xlu0 %1277
        %vm1280 = vcmask 261312
        %1281 = vst.msk [vmem:[#allocation3] sm:$0xff] %vm1280, %v1278
        %v1282 = vld [vmem:[#allocation3] sm:$0xff]
        %v1283 = vld [vmem:[#allocation12] sm:$0xff]
        %v1284 = vld [vmem:[#allocation12 + $0x8] sm:$0xff]
        %v1285 = vld [vmem:[#allocation12 + $0x10] sm:$0xff]
        %v1286 = vld [vmem:[#allocation12 + $0x18] sm:$0xff]
        %v1287 = vld [vmem:[%s7] sm:$0x1]
        %v1289 = vlaneseq
        %v1290 = vshrl.u32 %v1289, 7
        %v1291 = vsub.s32 0, %v1290
        %v1292 = vrot.slane %v1287, %v1291
        %v1295 = vsel %vm523, %v1282, 0
        %1297 = vmatprep.subr.mxu0 0.0
        %1298 = vmatpush1.msra.mxu0 %v1283
        %1299 = vmatprep.subr.mxu0 0.0
        %1300 = vmatpush1.msra.mxu0 %v1284
        %1301 = vmatprep.subr.mxu0 0.0
        %1302 = vmatpush1.msra.mxu0 %v1285
        %1303 = vmatprep.subr.mxu0 0.0
        %1304 = vmatpush1.msra.mxu0 %v1286
        %1305 = vmatprep.subr.mxu0 0.0
        %1306 = vmatpush1.msra.mxu0 0.0
        %1307 = vmatprep.subr.mxu0 0.0
        %1308 = vmatpush1.msra.mxu0 0.0
        %1309 = vmatprep.subr.mxu0 0.0
        %1310 = vmatpush1.msra.mxu0 0.0
        %1311 = vmatprep.subr.mxu0 0.0
        %1312 = vmatpush1.msra.mxu0 0.0
        %1313 = vmatprep.subr.mxu0 0.0
        %1314 = vmatpush1.msra.mxu0 0.0
        %1315 = vmatprep.subr.mxu0 0.0
        %1316 = vmatpush1.msra.mxu0 0.0
        %1317 = vmatprep.subr.mxu0 0.0
        %1318 = vmatpush1.msra.mxu0 0.0
        %1319 = vmatprep.subr.mxu0 0.0
        %1320 = vmatpush1.msra.mxu0 0.0
        %1321 = vmatprep.subr.mxu0 0.0
        %1322 = vmatpush1.msra.mxu0 0.0
        %1323 = vmatprep.subr.mxu0 0.0
        %1324 = vmatpush1.msra.mxu0 0.0
        %1325 = vmatprep.subr.mxu0 0.0
        %1326 = vmatpush1.msra.mxu0 0.0
        %1327 = vmatprep.subr.mxu0 0.0
        %1328 = vmatpush1.msra.mxu0 0.0
        %1329 = vmatprep.subr.mxu0 0.0
        %1330 = vmatpush1.msra.mxu0 0.0
        %1331 = vmatprep.subr.mxu0 0.0
        %1332 = vmatpush1.msra.mxu0 0.0
        %1333 = vmatprep.subr.mxu0 0.0
        %1334 = vmatpush1.msra.mxu0 0.0
        %1335 = vmatprep.subr.mxu0 0.0
        %1336 = vmatpush1.msra.mxu0 0.0
        %1337 = vmatprep.subr.mxu0 0.0
        %1338 = vmatpush1.msra.mxu0 0.0
        %1339 = vmatprep.subr.mxu0 0.0
        %1340 = vmatpush1.msra.mxu0 0.0
        %1341 = vmatprep.subr.mxu0 0.0
        %1342 = vmatpush1.msra.mxu0 0.0
        %1343 = vmatprep.subr.mxu0 0.0
        %1344 = vmatpush1.msra.mxu0 0.0
        %1345 = vmatprep.subr.mxu0 0.0
        %1346 = vmatpush1.msra.mxu0 0.0
        %1347 = vmatprep.subr.mxu0 0.0
        %1348 = vmatpush1.msra.mxu0 0.0
        %1349 = vmatprep.subr.mxu0 0.0
        %1350 = vmatpush1.msra.mxu0 0.0
        %1351 = vmatprep.subr.mxu0 0.0
        %1352 = vmatpush1.msra.mxu0 0.0
        %1353 = vmatprep.subr.mxu0 0.0
        %1354 = vmatpush1.msra.mxu0 0.0
        %1355 = vmatprep.subr.mxu0 0.0
        %1356 = vmatpush1.msra.mxu0 0.0
        %1357 = vmatprep.subr.mxu0 0.0
        %1358 = vmatpush1.msra.mxu0 0.0
        %1359 = vmatprep.subr.mxu0 0.0
        %1360 = vmatpush1.msra.mxu0 0.0
        %1361 = vmatprep.mubr.f32.mxu0 0.0
        %1362 = vmatmul.mubr.f32.gmra.mrb[0].mxu0 %v1295
        %v1363 = vpop.f32.mrb[0].mxu0
        %v1364 = vadd.f32 %v1292, %v1363
        %v1365 = vpop.f32.mrb[0].mxu0
        %1366 = vdwg.mxu0
        %1367 = vst.msk [vmem:[%s418] sm:$0xff] %vm523, %v1364
        %s1368 = sand.u32 %s231, 1
        %s1369 = scalar_lea.sflag [#allocation6], %s1368
        %s1370 = sand.u32 %s231, 1
        %s1371 = smul.addr %s1370, 8
        %s1372 = scalar_lea.vmem [#allocation13], %s1371
        // Predicated region
        $region77: #{tpu_custom_call.1} parent=51 // pred_check
          %p1373 = pneg %p241
        $region78: #{tpu_custom_call.1} parent=51 // pred_check_branch
          %1375 = sbr.rel (%p1373) target = $region80
        $region79: #{tpu_custom_call.1} parent=51 // pred_region
          %s1377 = ssub.s32 128, 128
          %1378 = vsyncadd %s1369, %s1377
          %s1379 = smul.addr %s33, 2
          %s1380 = sadd.s32 %s34, %s1379
          %s1381 = smul.addr %s1380, 128
          %s1382 = scalar_lea.hbm %s8, %s1381
          %s1384 = sshll.u32 %s1372, 4
          %s1385 = int_to_ptr.vmem [resolvable:$true] %s1384
          %1387 = dma.vmem_to_hbm [thread:$0]  %s1385, 128, %s1382, %s1369
        $region80: #{tpu_custom_call.1} parent=51 // pred_fallthru
          _
      $region52: #{tpu_custom_call.1} parent=5 // pred_fallthru
        _
      %p1388 = scmp.le.s32.totalorder 2, %s24
      // Predicated region
      $region81: #{tpu_custom_call.1} parent=5 // pred_check
        %p1389 = pneg %p1388
      $region82: #{tpu_custom_call.1} parent=5 // pred_check_branch
        %1391 = sbr.rel (%p1389) target = $region84
      $region83: #{tpu_custom_call.1} parent=5 // pred_region
        %s1392 = ssub.s32 %s24, 2
        // Predicated region
        $region85: #{tpu_custom_call.1} parent=83 // pred_check
          %p1393 = pneg %p247
        $region86: #{tpu_custom_call.1} parent=83 // pred_check_branch
          %1395 = sbr.rel (%p1393) target = $region88
        $region87: #{tpu_custom_call.1} parent=83 // pred_region
          %s1396 = sand.u32 %s232, 1
          %s1397 = scalar_lea.sflag [#allocation6], %s1396
          %s1398 = sand.u32 %s232, 1
          %s1399 = smul.addr %s1398, 8
          %s1400 = scalar_lea.vmem [#allocation13], %s1399
          %1401 = dma.done %s1397, 128
        $region88: #{tpu_custom_call.1} parent=83 // pred_fallthru
          _
      $region84: #{tpu_custom_call.1} parent=5 // pred_fallthru
        _
    $region6: #{tpu_custom_call.1} parent=1 // loop_footer
      %s28 = sadd.s32 1, %s24
    $region7: #{tpu_custom_call.1} parent=1 // loop_footer_branch
      %23 = sbr.rel target = $region3
    $region8: #{tpu_custom_call.1} parent=1 // loop_exit
      _
    %1402 = vsyncpa [#allocation5], 1
    %s1403 = scalar_lea.sflag [#allocation5], 1
    %1404 = vsyncpa %s1403, 1
    %1405 = vsyncpa [#allocation8], 1
    %s1406 = scalar_lea.sflag [#allocation8], 1
    %1407 = vsyncpa %s1406, 1
    %1408 = vsyncpa [#allocation11], 1
    %1409 = vsyncpa [#allocation6], 1
    %s1410 = scalar_lea.sflag [#allocation6], 1
    %1411 = vsyncpa %s1410, 1

</llo_original>
